<compile_context>
chip_gen: v7x
topology: tpu7x:2x2x1
jax: 0.10.0
libtpu: 0.0.40
codegen_flags: <defaults>
</compile_context>

<pallas_src>
import functools
import math

import numpy as np
import jax
import jax.numpy as jnp
from jax import lax
from jax.experimental import pallas as pl
from jax.experimental.pallas import tpu as pltpu

MATMUL_DTYPE = jnp.bfloat16     # MXU operand dtype (accumulation is always f32)
LANE = 128
SEG_TILE = 64                   # segments per attention grid step (multiple of 8)


def _device_tiling():
    """Per-generation row tile / scoped-VMEM budget."""
    try:
        kind = jax.devices()[0].device_kind.lower()
    except Exception:
        kind = ""
    if "v5" in kind or "v6" in kind:          # 128 MiB physical VMEM
        return 1024, 96 * 1024 * 1024
    if "v7" in kind or "7x" in kind:          # 64 MiB per TensorCore
        return 512, 48 * 1024 * 1024
    return 256, None                          # unknown: defaults


BLOCK_ROWS, VMEM_LIMIT = _device_tiling()


def _compiler_params(n_parallel):
    kw = dict(dimension_semantics=("parallel",) * n_parallel)
    if VMEM_LIMIT is not None:
        kw["vmem_limit_bytes"] = VMEM_LIMIT
    return pltpu.CompilerParams(**kw)


def _pad_dim(d):
    return ((d + LANE - 1) // LANE) * LANE


def _pad_to(x, shape):
    return jnp.pad(x, [(0, s - d) for d, s in zip(x.shape, shape)])


# ----------------------------------------------------------------------------
# Pallas kernels
# ----------------------------------------------------------------------------

def _ln_matmul_kernel(x_ref, m_ref, g_ref, b_ref, w_ref, wb_ref, o_ref, *, eps, inv_dim):
    """Fused (lane-masked) LayerNorm(x) @ W + b, lane-dense output."""
    x = x_ref[...] * m_ref[...]
    mu = jnp.sum(x, axis=-1, keepdims=True) * inv_dim
    xc = (x - mu) * m_ref[...]
    var = jnp.sum(xc * xc, axis=-1, keepdims=True) * inv_dim
    xn = xc * lax.rsqrt(var + eps) * g_ref[...] + b_ref[...]
    y = jnp.dot(xn.astype(MATMUL_DTYPE), w_ref[...],
                preferred_element_type=jnp.float32) + wb_ref[...]
    o_ref[...] = y.astype(o_ref.dtype)


def _ffn_kernel(x_ref, m_ref, g_ref, b_ref, w1_ref, b1_ref, w2_ref, b2_ref, o_ref,
                *, eps, inv_dim):
    """Fused pre-LN residual FFN: x + fc2(relu(fc1(LayerNorm(x))))."""
    x = x_ref[...]
    xm = x * m_ref[...]
    mu = jnp.sum(xm, axis=-1, keepdims=True) * inv_dim
    xc = (xm - mu) * m_ref[...]
    var = jnp.sum(xc * xc, axis=-1, keepdims=True) * inv_dim
    xn = xc * lax.rsqrt(var + eps) * g_ref[...] + b_ref[...]
    h = jnp.dot(xn.astype(MATMUL_DTYPE), w1_ref[...],
                preferred_element_type=jnp.float32) + b1_ref[...]
    h = jnp.maximum(h, 0.0)
    y = jnp.dot(h.astype(MATMUL_DTYPE), w2_ref[...],
                preferred_element_type=jnp.float32) + b2_ref[...]
    o_ref[...] = x + y


def _segment_attn_kernel(q_ref, k_ref, v_ref, m_ref, s_ref, wo_ref, bo_ref, res_ref,
                         o_ref, *, scale, n_heads, head_dim):
    """Multi-head segment-softmax attention + out_proj + residual on one segment tile.

    Rows are segment-major with per-segment padding to max_deg (mask marks real rows).
    s_ref is the tile-local constant row->segment one-hot (rows, tile_segments); all
    per-segment reductions / broadcasts are small MXU matmuls against it.
    """
    q = q_ref[...].astype(jnp.float32)          # (R, Dp)
    k = k_ref[...].astype(jnp.float32)
    v = v_ref[...].astype(jnp.float32)
    mask = m_ref[...]                           # (R, 1)   1 = real pair, 0 = padding
    S = s_ref[...]                              # (R, TG)  row -> tile-local segment

    qk = q * k
    s = jnp.concatenate(
        [jnp.sum(qk[:, h * head_dim:(h + 1) * head_dim], axis=-1, keepdims=True)
         for h in range(n_heads)], axis=-1) * scale                      # (R, H)

    # Per-segment mean shift (softmax is shift-invariant; avoids masked max loops).
    cnt = lax.dot_general(S, mask, (((0,), (0,)), ((), ())),
                          preferred_element_type=jnp.float32)            # (TG, 1)
    ssum = lax.dot_general(S, s * mask, (((0,), (0,)), ((), ())),
                           preferred_element_type=jnp.float32)           # (TG, H)
    shift_seg = ssum / jnp.maximum(cnt, 1.0)                             # (TG, H)
    shift = jnp.dot(S, shift_seg, preferred_element_type=jnp.float32)    # (R, H)

    e = jnp.exp(s - shift) * mask                                        # (R, H)
    denom_seg = lax.dot_general(S, e, (((0,), (0,)), ((), ())),
                                preferred_element_type=jnp.float32)      # (TG, H)
    denom = jnp.dot(S, denom_seg, preferred_element_type=jnp.float32)    # (R, H)
    w = e / jnp.maximum(denom, 1e-30)        # empty segments -> 0 (bias + residual)

    # Broadcast each head's weight over its lanes, weight v, scatter-sum per segment.
    wv = jnp.concatenate(
        [w[:, h:h + 1] * v[:, h * head_dim:(h + 1) * head_dim]
         for h in range(n_heads)], axis=-1)                              # (R, H*hd)
    upd = lax.dot_general(S, wv, (((0,), (0,)), ((), ())),
                          preferred_element_type=jnp.float32)            # (TG, H*hd)

    o_ref[...] = (jnp.dot(upd.astype(MATMUL_DTYPE), wo_ref[...],
                          preferred_element_type=jnp.float32)
                  + bo_ref[...] + res_ref[...])


# ----------------------------------------------------------------------------
# pallas_call wrappers
# ----------------------------------------------------------------------------

def ln_linear(x, feat_mask, ln, w, b, *, true_dim, out_dtype):
    """Fused LayerNorm + Linear over row tiles (lane-padded feature dims)."""
    R, Dp = x.shape
    Nout = w.shape[1]
    bm = R if R <= BLOCK_ROWS else BLOCK_ROWS
    grid = (pl.cdiv(R, bm),)
    flops = 2 * R * Dp * Nout + 10 * R * Dp
    bytes_acc = (4 * R * Dp + np.dtype(out_dtype).itemsize * R * Nout
                 + 2 * Dp * Nout + 4 * (3 * Dp + Nout))
    return pl.pallas_call(
        functools.partial(_ln_matmul_kernel, eps=1e-5, inv_dim=1.0 / true_dim),
        out_shape=jax.ShapeDtypeStruct((R, Nout), out_dtype),
        grid=grid,
        in_specs=[
            pl.BlockSpec((bm, Dp), lambda i: (i, 0)),
            pl.BlockSpec((1, Dp), lambda i: (0, 0)),
            pl.BlockSpec((1, Dp), lambda i: (0, 0)),
            pl.BlockSpec((1, Dp), lambda i: (0, 0)),
            pl.BlockSpec((Dp, Nout), lambda i: (0, 0)),
            pl.BlockSpec((1, Nout), lambda i: (0, 0)),
        ],
        out_specs=pl.BlockSpec((bm, Nout), lambda i: (i, 0)),
        compiler_params=_compiler_params(1),
        cost_estimate=pl.CostEstimate(flops=int(flops), transcendentals=int(R),
                                      bytes_accessed=int(bytes_acc)),
    )(x, feat_mask, ln["g"], ln["b"], w, b)


def ffn_block(x, feat_mask, ln, ffn, *, true_dim):
    """Fused pre-LN residual FFN block."""
    R, Dp = x.shape
    Hh = ffn["w1"].shape[1]
    bm = R if R <= BLOCK_ROWS else BLOCK_ROWS
    grid = (pl.cdiv(R, bm),)
    flops = 4 * R * Dp * Hh + 12 * R * Dp
    bytes_acc = 8 * R * Dp + 4 * Dp * Hh + 4 * (3 * Dp + Hh + Dp)
    return pl.pallas_call(
        functools.partial(_ffn_kernel, eps=1e-5, inv_dim=1.0 / true_dim),
        out_shape=jax.ShapeDtypeStruct((R, Dp), jnp.float32),
        grid=grid,
        in_specs=[
            pl.BlockSpec((bm, Dp), lambda i: (i, 0)),
            pl.BlockSpec((1, Dp), lambda i: (0, 0)),
            pl.BlockSpec((1, Dp), lambda i: (0, 0)),
            pl.BlockSpec((1, Dp), lambda i: (0, 0)),
            pl.BlockSpec((Dp, Hh), lambda i: (0, 0)),
            pl.BlockSpec((1, Hh), lambda i: (0, 0)),
            pl.BlockSpec((Hh, Dp), lambda i: (0, 0)),
            pl.BlockSpec((1, Dp), lambda i: (0, 0)),
        ],
        out_specs=pl.BlockSpec((bm, Dp), lambda i: (i, 0)),
        compiler_params=_compiler_params(1),
        cost_estimate=pl.CostEstimate(flops=int(flops), transcendentals=int(R),
                                      bytes_accessed=int(bytes_acc)),
    )(x, feat_mask, ln["g"], ln["b"], ffn["w1"], ffn["b1"], ffn["w2"], ffn["b2"])


def segment_attention(q, k, v, mask, wo, bo, res, *, scale, n_heads, head_dim):
    """Segment-tiled multi-head segment-softmax attention + out_proj + residual.

    q/k/v/mask rows are segment-major, each segment padded to max_deg rows.
    Grid is over segment tiles and marked 'parallel' (megacore sharding on v7x).
    """
    rows, Dp = q.shape
    G = res.shape[0]
    md = rows // G
    Dt = wo.shape[0]
    tg = G if G <= SEG_TILE else SEG_TILE
    br = tg * md
    grid = (pl.cdiv(G, tg),)

    # Tile-local constant row -> segment one-hot (same for every grid step).
    sblk = np.zeros((br, tg), np.float32)
    sblk[np.arange(br), np.arange(br) // md] = 1.0
    sblk = jnp.asarray(sblk)

    flops = 2 * rows * Dp + 8 * rows * n_heads + 6 * rows * tg * n_heads \
        + 2 * rows * tg * Dt + 2 * G * Dt * Dp
    bytes_acc = 3 * rows * Dp * 2 + rows * 4 + 2 * G * Dp * 4 + Dt * Dp * 2
    return pl.pallas_call(
        functools.partial(_segment_attn_kernel, scale=scale,
                          n_heads=n_heads, head_dim=head_dim),
        out_shape=jax.ShapeDtypeStruct((G, Dp), jnp.float32),
        grid=grid,
        in_specs=[
            pl.BlockSpec((br, Dp), lambda i: (i, 0)),
            pl.BlockSpec((br, Dp), lambda i: (i, 0)),
            pl.BlockSpec((br, Dp), lambda i: (i, 0)),
            pl.BlockSpec((br, 1), lambda i: (i, 0)),
            pl.BlockSpec((br, tg), lambda i: (0, 0)),
            pl.BlockSpec((Dt, Dp), lambda i: (0, 0)),
            pl.BlockSpec((1, Dp), lambda i: (0, 0)),
            pl.BlockSpec((tg, Dp), lambda i: (i, 0)),
        ],
        out_specs=pl.BlockSpec((tg, Dp), lambda i: (i, 0)),
        compiler_params=_compiler_params(1),
        cost_estimate=pl.CostEstimate(flops=int(flops),
                                      transcendentals=int(rows * n_heads),
                                      bytes_accessed=int(bytes_acc)),
    )(q, k, v, mask, sblk, wo, bo, res)


# ----------------------------------------------------------------------------
# Parameters (deterministic, synthetic, PyTorch-Linear-style init, lane-padded)
# ----------------------------------------------------------------------------

class KeyGen:
    def __init__(self, key):
        self.key = key

    def __call__(self):
        self.key, k = jax.random.split(self.key)
        return k


def _lin(key, din, dout):
    k1, k2 = jax.random.split(key)
    s = 1.0 / math.sqrt(din)
    # weights stored transposed vs. PyTorch: (in_features, out_features)
    return (jax.random.uniform(k1, (din, dout), jnp.float32, -s, s),
            jax.random.uniform(k2, (dout,), jnp.float32, -s, s))


def _ln_params(dim, dim_p):
    return {"g": _pad_to(jnp.ones((1, dim), jnp.float32), (1, dim_p)),
            "b": jnp.zeros((1, dim_p), jnp.float32)}


def _mha_params(kg, node_dim, edge_dim, out_dim, node_dim_p, edge_dim_p, out_dim_p):
    def qkv(din, din_p):
        ws, bs = [], []
        for _ in range(3):
            w, b = _lin(kg(), din, out_dim)
            ws.append(_pad_to(w, (din_p, out_dim_p)))
            bs.append(_pad_to(b, (out_dim_p,)))
        return (jnp.concatenate(ws, axis=1).astype(MATMUL_DTYPE),
                jnp.concatenate(bs, axis=0).reshape(1, 3 * out_dim_p))

    wn, bn = qkv(node_dim, node_dim_p)
    we, be = qkv(edge_dim, edge_dim_p)
    wo, bo = _lin(kg(), out_dim, out_dim)
    return {"wn_qkv": wn, "bn_qkv": bn, "we_qkv": we, "be_qkv": be,
            "wo": _pad_to(wo, (out_dim, out_dim_p)).astype(MATMUL_DTYPE),
            "bo": _pad_to(bo, (out_dim_p,)).reshape(1, out_dim_p)}


def _ffn_params(kg, dim, hid, dim_p):
    w1, b1 = _lin(kg(), dim, hid)
    w2, b2 = _lin(kg(), hid, dim)
    return {"w1": _pad_to(w1, (dim_p, hid)).astype(MATMUL_DTYPE),
            "b1": b1.reshape(1, hid),
            "w2": _pad_to(w2, (hid, dim_p)).astype(MATMUL_DTYPE),
            "b2": _pad_to(b2, (dim_p,)).reshape(1, dim_p)}


def init_layer_params(key, cfg):
    kg = KeyGen(key)
    nd, ed = cfg["node_dim"], cfg["edge_dim"]
    ndp, edp = cfg["node_dim_p"], cfg["edge_dim_p"]
    return {
        "node_attn_ln1": _ln_params(nd, ndp), "edge_attn_ln1": _ln_params(ed, edp),
        "node_mha": _mha_params(kg, nd, ed, nd, ndp, edp, ndp),
        "node_ffn_ln": _ln_params(nd, ndp),
        "node_ffn": _ffn_params(kg, nd, cfg["node_hid_dim"], ndp),
        "node_attn_ln2": _ln_params(nd, ndp), "edge_attn_ln2": _ln_params(ed, edp),
        "edge_mha": _mha_params(kg, nd, ed, ed, ndp, edp, edp),
        "edge_ffn_ln": _ln_params(ed, edp),
        "edge_ffn": _ffn_params(kg, ed, cfg["edge_hid_dim"], edp),
    }


# ----------------------------------------------------------------------------
# LPGNNLayer forward (JAX glue around the fused Pallas kernels)
# ----------------------------------------------------------------------------

def node_mha_fwd(p, ln_n, ln_e, n_mask, e_mask, node_t, edge_t, src, dst,
                 item_idx, item_mask, *, cfg):
    nd, ed = cfg["node_dim"], cfg["edge_dim"]
    dp = cfg["node_dim_p"]
    hd = nd // cfg["n_heads"]
    n_qkv = ln_linear(node_t, n_mask, ln_n, p["wn_qkv"], p["bn_qkv"],
                      true_dim=nd, out_dtype=MATMUL_DTYPE)             # (N, 3*dp)
    e_qkv = ln_linear(edge_t, e_mask, ln_e, p["we_qkv"], p["be_qkv"],
                      true_dim=ed, out_dtype=MATMUL_DTYPE)             # (M, 3*dp)
    # TODO(synk): fold these data-dependent gathers into the attention kernel via
    #             scalar-prefetched indices + manual DMA (kept as bf16 XLA takes).
    q_e = e_qkv[:, :dp] + jnp.take(n_qkv[:, :dp], src, axis=0)
    k_e = e_qkv[:, dp:2 * dp] + jnp.take(n_qkv[:, dp:2 * dp], dst, axis=0)
    v_e = e_qkv[:, 2 * dp:] + jnp.take(n_qkv[:, 2 * dp:], dst, axis=0)
    flat = item_idx.reshape(-1)
    q_r = jnp.take(q_e, flat, axis=0)          # (N*max_deg, dp) segment-major
    k_r = jnp.take(k_e, flat, axis=0)
    v_r = jnp.take(v_e, flat, axis=0)
    return segment_attention(q_r, k_r, v_r, item_mask, p["wo"], p["bo"], node_t,
                             scale=1.0 / math.sqrt(hd),
                             n_heads=cfg["n_heads"], head_dim=hd)


def edge_mha_fwd(p, ln_n, ln_e, n_mask, e_mask, node_t, edge_t, src, dst,
                 pair_k_idx, pair_mask, *, cfg):
    nd, ed = cfg["node_dim"], cfg["edge_dim"]
    dp = cfg["edge_dim_p"]
    hd = ed // cfg["n_heads"]
    n_qkv = ln_linear(node_t, n_mask, ln_n, p["wn_qkv"], p["bn_qkv"],
                      true_dim=nd, out_dtype=MATMUL_DTYPE)             # (N, 3*dp)
    e_qkv = ln_linear(edge_t, e_mask, ln_e, p["we_qkv"], p["be_qkv"],
                      true_dim=ed, out_dtype=MATMUL_DTYPE)             # (M, 3*dp)
    nq, nk, nv = n_qkv[:, :dp], n_qkv[:, dp:2 * dp], n_qkv[:, 2 * dp:]
    cq = e_qkv[:, :dp] + jnp.take(nq, src, axis=0) + jnp.take(nq, dst, axis=0)
    ck = e_qkv[:, dp:2 * dp] + jnp.take(nk, src, axis=0) + jnp.take(nk, dst, axis=0)
    cv = e_qkv[:, 2 * dp:] + jnp.take(nv, src, axis=0) + jnp.take(nv, dst, axis=0)
    mde = pair_mask.shape[0] // edge_t.shape[0]
    q_r = jnp.repeat(cq, mde, axis=0)          # query is constant per segment
    flat = pair_k_idx.reshape(-1)
    k_r = jnp.take(ck, flat, axis=0)
    v_r = jnp.take(cv, flat, axis=0)
    return segment_attention(q_r, k_r, v_r, pair_mask, p["wo"], p["bo"], edge_t,
                             scale=1.0 / math.sqrt(hd),
                             n_heads=cfg["n_heads"], head_dim=hd)


def lpgnn_layer_fwd(params, node_t, edge_t, src, dst, node_item_idx, node_item_mask,
                    pair_k_idx, pair_mask, n_mask, e_mask, *, cfg):
    node_prime = node_mha_fwd(params["node_mha"], params["node_attn_ln1"],
                              params["edge_attn_ln1"], n_mask, e_mask,
                              node_t, edge_t, src, dst,
                              node_item_idx, node_item_mask, cfg=cfg)
    node_new = ffn_block(node_prime, n_mask, params["node_ffn_ln"],
                         params["node_ffn"], true_dim=cfg["node_dim"])
    edge_prime = edge_mha_fwd(params["edge_mha"], params["node_attn_ln2"],
                              params["edge_attn_ln2"], n_mask, e_mask,
                              node_new, edge_t, src, dst,
                              pair_k_idx, pair_mask, cfg=cfg)
    edge_new = ffn_block(edge_prime, e_mask, params["edge_ffn_ln"],
                         params["edge_ffn"], true_dim=cfg["edge_dim"])
    return node_new[:, :cfg["node_dim"]], edge_new[:, :cfg["edge_dim"]]


def build_graph_aux(edge_index_np, num_nodes):
    """Host-side precompute: segment-major padded item lists (node MHA: edges grouped
    by src node; edge MHA: torch.nonzero neighbor pairs grouped by query edge)."""
    src, dst = edge_index_np[0], edge_index_np[1]
    M = edge_index_np.shape[1]

    def rectangularize(num_segments, seg_of_item, items):
        buckets = [[] for _ in range(num_segments)]
        for s, it in zip(seg_of_item, items):
            buckets[int(s)].append(int(it))
        max_deg = max(1, max(len(b) for b in buckets))
        idx = np.zeros((num_segments, max_deg), np.int32)
        msk = np.zeros((num_segments * max_deg, 1), np.float32)
        for g, b in enumerate(buckets):
            for d, it in enumerate(b):
                idx[g, d] = it
                msk[g * max_deg + d, 0] = 1.0
        return jnp.asarray(idx), jnp.asarray(msk)

    node_item_idx, node_item_mask = rectangularize(num_nodes, src, np.arange(M))

    inc = np.zeros((M, num_nodes), np.float32)
    inc[np.arange(M), src] = 1.0
    inc[np.arange(M), dst] = 1.0
    nbr = inc @ inc.T
    qi, kj = np.nonzero(nbr)
    pair_k_idx, pair_mask = rectangularize(M, qi, kj)
    return node_item_idx, node_item_mask, pair_k_idx, pair_mask


# ----------------------------------------------------------------------------
# Main
# ----------------------------------------------------------------------------

if __name__ == "__main__":
    cfg = dict(n_heads=2, node_dim=32, edge_dim=32,
               node_hid_dim=64, edge_hid_dim=64, disable_edge_updates=False)
    cfg["node_dim_p"] = _pad_dim(cfg["node_dim"])
    cfg["edge_dim_p"] = _pad_dim(cfg["edge_dim"])

    # Two directed 4-cycles plus two chords: every node appears as a source (so the
    # scatter output size equals N, as the PyTorch residual add requires) and some
    # nodes have out-degree 2, exercising the segment softmax.
    N = 8
    edge_index_np = np.array([[0, 1, 2, 3, 4, 5, 6, 7, 0, 4],
                              [1, 2, 3, 0, 5, 6, 7, 4, 2, 6]], dtype=np.int32)
    M = edge_index_np.shape[1]

    params = init_layer_params(jax.random.PRNGKey(0), cfg)
    dk = jax.random.split(jax.random.PRNGKey(0), 3)
    node_t = jax.random.normal(dk[1], (N, cfg["node_dim"]), jnp.float32)
    edge_t = jax.random.normal(dk[2], (M, cfg["edge_dim"]), jnp.float32)

    # Lane-pad the residual streams once at layer entry; LN masks the true width.
    node_t_p = _pad_to(node_t, (N, cfg["node_dim_p"]))
    edge_t_p = _pad_to(edge_t, (M, cfg["edge_dim_p"]))
    n_mask = _pad_to(jnp.ones((1, cfg["node_dim"]), jnp.float32), (1, cfg["node_dim_p"]))
    e_mask = _pad_to(jnp.ones((1, cfg["edge_dim"]), jnp.float32), (1, cfg["edge_dim_p"]))

    node_item_idx, node_item_mask, pair_k_idx, pair_mask = \
        build_graph_aux(edge_index_np, N)
    src = jnp.asarray(edge_index_np[0])
    dst = jnp.asarray(edge_index_np[1])

    fwd = jax.jit(functools.partial(lpgnn_layer_fwd, cfg=cfg))
    node_new, edge_new = fwd(params, node_t_p, edge_t_p, src, dst,
                             node_item_idx, node_item_mask,
                             pair_k_idx, pair_mask, n_mask, e_mask)
    jax.block_until_ready((node_new, edge_new))

    assert node_new.shape == (N, cfg["node_dim"])
    assert edge_new.shape == (M, cfg["edge_dim"])
    assert bool(jnp.all(jnp.isfinite(node_new))) and bool(jnp.all(jnp.isfinite(edge_new)))
    print("KERNEL_OK")
</pallas_src>

<mosaic_0001>
module attributes {stable_mosaic.version = 11 : i64} {
  func.func @_ln_matmul_kernel(%arg0: i32, %arg1: memref<8x128xf32, #tpu.memory_space<vmem>>, %arg2: memref<1x128xf32, #tpu.memory_space<vmem>>, %arg3: memref<1x128xf32, #tpu.memory_space<vmem>>, %arg4: memref<1x128xf32, #tpu.memory_space<vmem>>, %arg5: memref<128x384xbf16, #tpu.memory_space<vmem>>, %arg6: memref<1x384xf32, #tpu.memory_space<vmem>>, %arg7: memref<8x384xbf16, #tpu.memory_space<vmem>>) attributes {dimension_semantics = [#tpu.dimension_semantics<parallel>], iteration_bounds = array<i64: 1>, scalar_prefetch = 0 : i64, scratch_operands = 0 : i64, tpu.core_type = #tpu.core_type<tc>, window_params = [{transform_indices = @transform_0, window_bounds = array<i64: 8, 128>}, {pipeline_mode = #tpu.pipeline_mode<synchronous>, transform_indices = @transform_1, window_bounds = array<i64: 1, 128>}, {pipeline_mode = #tpu.pipeline_mode<synchronous>, transform_indices = @transform_2, window_bounds = array<i64: 1, 128>}, {pipeline_mode = #tpu.pipeline_mode<synchronous>, transform_indices = @transform_3, window_bounds = array<i64: 1, 128>}, {pipeline_mode = #tpu.pipeline_mode<synchronous>, transform_indices = @transform_4, window_bounds = array<i64: 128, 384>}, {pipeline_mode = #tpu.pipeline_mode<synchronous>, transform_indices = @transform_5, window_bounds = array<i64: 1, 384>}, {transform_indices = @transform_6, window_bounds = array<i64: 8, 384>}]} {
    %c0 = arith.constant 0 : index
    %c0_0 = arith.constant 0 : index
    %0 = vector.load %arg1[%c0, %c0_0] : memref<8x128xf32, #tpu.memory_space<vmem>>, vector<8x128xf32>
    %c0_1 = arith.constant 0 : index
    %c0_2 = arith.constant 0 : index
    %1 = vector.load %arg2[%c0_1, %c0_2] : memref<1x128xf32, #tpu.memory_space<vmem>>, vector<1x128xf32>
    %2 = vector.broadcast %1 : vector<1x128xf32> to vector<8x128xf32>
    %3 = arith.mulf %0, %2 : vector<8x128xf32>
    %cst = arith.constant dense<0.000000e+00> : vector<8xf32>
    %4 = vector.multi_reduction <add>, %3, %cst [1] : vector<8x128xf32> to vector<8xf32>
    %5 = vector.shape_cast %4 : vector<8xf32> to vector<8x1xf32>
    %cst_3 = arith.constant 3.125000e-02 : f32
    %6 = vector.broadcast %cst_3 : f32 to vector<8x1xf32>
    %7 = arith.mulf %5, %6 : vector<8x1xf32>
    %8 = vector.broadcast %7 : vector<8x1xf32> to vector<8x128xf32>
    %9 = arith.subf %3, %8 : vector<8x128xf32>
    %c0_4 = arith.constant 0 : index
    %c0_5 = arith.constant 0 : index
    %10 = vector.load %arg2[%c0_4, %c0_5] : memref<1x128xf32, #tpu.memory_space<vmem>>, vector<1x128xf32>
    %11 = vector.broadcast %10 : vector<1x128xf32> to vector<8x128xf32>
    %12 = arith.mulf %9, %11 : vector<8x128xf32>
    %13 = arith.mulf %12, %12 : vector<8x128xf32>
    %cst_6 = arith.constant dense<0.000000e+00> : vector<8xf32>
    %14 = vector.multi_reduction <add>, %13, %cst_6 [1] : vector<8x128xf32> to vector<8xf32>
    %15 = vector.shape_cast %14 : vector<8xf32> to vector<8x1xf32>
    %cst_7 = arith.constant 3.125000e-02 : f32
    %16 = vector.broadcast %cst_7 : f32 to vector<8x1xf32>
    %17 = arith.mulf %15, %16 : vector<8x1xf32>
    %cst_8 = arith.constant 9.99999974E-6 : f32
    %18 = vector.broadcast %cst_8 : f32 to vector<8x1xf32>
    %19 = arith.addf %17, %18 : vector<8x1xf32>
    %20 = math.rsqrt %19 : vector<8x1xf32>
    %21 = vector.broadcast %20 : vector<8x1xf32> to vector<8x128xf32>
    %22 = arith.mulf %12, %21 : vector<8x128xf32>
    %c0_9 = arith.constant 0 : index
    %c0_10 = arith.constant 0 : index
    %23 = vector.load %arg3[%c0_9, %c0_10] : memref<1x128xf32, #tpu.memory_space<vmem>>, vector<1x128xf32>
    %24 = vector.broadcast %23 : vector<1x128xf32> to vector<8x128xf32>
    %25 = arith.mulf %22, %24 : vector<8x128xf32>
    %c0_11 = arith.constant 0 : index
    %c0_12 = arith.constant 0 : index
    %26 = vector.load %arg4[%c0_11, %c0_12] : memref<1x128xf32, #tpu.memory_space<vmem>>, vector<1x128xf32>
    %27 = vector.broadcast %26 : vector<1x128xf32> to vector<8x128xf32>
    %28 = arith.addf %25, %27 : vector<8x128xf32>
    %29 = arith.truncf %28 : vector<8x128xf32> to vector<8x128xbf16>
    %c0_13 = arith.constant 0 : index
    %c0_14 = arith.constant 0 : index
    %30 = vector.load %arg5[%c0_13, %c0_14] : memref<128x384xbf16, #tpu.memory_space<vmem>>, vector<128x384xbf16>
    %cst_15 = arith.constant dense<0.000000e+00> : vector<8x384xf32>
    %31 = tpu.matmul %29, %30, %cst_15 {dimension_numbers = #tpu.dot_dimension_numbers<[1], [0], [0], [1], [0, 0, 1, 1], [], []>} : vector<8x128xbf16>, vector<128x384xbf16>, vector<8x384xf32> -> vector<8x384xf32>
    %c0_16 = arith.constant 0 : index
    %c0_17 = arith.constant 0 : index
    %32 = vector.load %arg6[%c0_16, %c0_17] : memref<1x384xf32, #tpu.memory_space<vmem>>, vector<1x384xf32>
    %33 = vector.broadcast %32 : vector<1x384xf32> to vector<8x384xf32>
    %34 = arith.addf %31, %33 : vector<8x384xf32>
    %35 = arith.truncf %34 : vector<8x384xf32> to vector<8x384xbf16>
    %c0_18 = arith.constant 0 : index
    %c0_19 = arith.constant 0 : index
    %36 = vector.load %arg7[%c0_18, %c0_19] : memref<8x384xbf16, #tpu.memory_space<vmem>>, vector<8x384xbf16>
    tpu.vector_store %arg7[%c0_18, %c0_19], %35 {strides = array<i32>} : memref<8x384xbf16, #tpu.memory_space<vmem>>, vector<8x384xbf16>,
    return
  }
  func.func @transform_0(%arg0: i32) -> (i32, i32) {
    %c0_i32 = arith.constant 0 : i32
    %c0_i32_0 = arith.constant 0 : i32
    return %arg0, %c0_i32 : i32, i32
  }
  func.func @transform_1(%arg0: i32) -> (i32, i32) {
    %c0_i32 = arith.constant 0 : i32
    %c0_i32_0 = arith.constant 0 : i32
    %c0_i32_1 = arith.constant 0 : i32
    return %c0_i32, %c0_i32_0 : i32, i32
  }
  func.func @transform_2(%arg0: i32) -> (i32, i32) {
    %c0_i32 = arith.constant 0 : i32
    %c0_i32_0 = arith.constant 0 : i32
    %c0_i32_1 = arith.constant 0 : i32
    return %c0_i32, %c0_i32_0 : i32, i32
  }
  func.func @transform_3(%arg0: i32) -> (i32, i32) {
    %c0_i32 = arith.constant 0 : i32
    %c0_i32_0 = arith.constant 0 : i32
    %c0_i32_1 = arith.constant 0 : i32
    return %c0_i32, %c0_i32_0 : i32, i32
  }
  func.func @transform_4(%arg0: i32) -> (i32, i32) {
    %c0_i32 = arith.constant 0 : i32
    %c0_i32_0 = arith.constant 0 : i32
    %c0_i32_1 = arith.constant 0 : i32
    return %c0_i32, %c0_i32_0 : i32, i32
  }
  func.func @transform_5(%arg0: i32) -> (i32, i32) {
    %c0_i32 = arith.constant 0 : i32
    %c0_i32_0 = arith.constant 0 : i32
    %c0_i32_1 = arith.constant 0 : i32
    return %c0_i32, %c0_i32_0 : i32, i32
  }
  func.func @transform_6(%arg0: i32) -> (i32, i32) {
    %c0_i32 = arith.constant 0 : i32
    %c0_i32_0 = arith.constant 0 : i32
    return %arg0, %c0_i32 : i32, i32
  }
}

module attributes {stable_mosaic.version = 11 : i64} {
  func.func @_ln_matmul_kernel(%arg0: i32, %arg1: memref<10x128xf32, #tpu.memory_space<vmem>>, %arg2: memref<1x128xf32, #tpu.memory_space<vmem>>, %arg3: memref<1x128xf32, #tpu.memory_space<vmem>>, %arg4: memref<1x128xf32, #tpu.memory_space<vmem>>, %arg5: memref<128x384xbf16, #tpu.memory_space<vmem>>, %arg6: memref<1x384xf32, #tpu.memory_space<vmem>>, %arg7: memref<10x384xbf16, #tpu.memory_space<vmem>>) attributes {dimension_semantics = [#tpu.dimension_semantics<parallel>], iteration_bounds = array<i64: 1>, scalar_prefetch = 0 : i64, scratch_operands = 0 : i64, tpu.core_type = #tpu.core_type<tc>, window_params = [{transform_indices = @transform_0, window_bounds = array<i64: 10, 128>}, {pipeline_mode = #tpu.pipeline_mode<synchronous>, transform_indices = @transform_1, window_bounds = array<i64: 1, 128>}, {pipeline_mode = #tpu.pipeline_mode<synchronous>, transform_indices = @transform_2, window_bounds = array<i64: 1, 128>}, {pipeline_mode = #tpu.pipeline_mode<synchronous>, transform_indices = @transform_3, window_bounds = array<i64: 1, 128>}, {pipeline_mode = #tpu.pipeline_mode<synchronous>, transform_indices = @transform_4, window_bounds = array<i64: 128, 384>}, {pipeline_mode = #tpu.pipeline_mode<synchronous>, transform_indices = @transform_5, window_bounds = array<i64: 1, 384>}, {transform_indices = @transform_6, window_bounds = array<i64: 10, 384>}]} {
    %c0 = arith.constant 0 : index
    %c0_0 = arith.constant 0 : index
    %0 = vector.load %arg1[%c0, %c0_0] : memref<10x128xf32, #tpu.memory_space<vmem>>, vector<10x128xf32>
    %c0_1 = arith.constant 0 : index
    %c0_2 = arith.constant 0 : index
    %1 = vector.load %arg2[%c0_1, %c0_2] : memref<1x128xf32, #tpu.memory_space<vmem>>, vector<1x128xf32>
    %2 = vector.broadcast %1 : vector<1x128xf32> to vector<10x128xf32>
    %3 = arith.mulf %0, %2 : vector<10x128xf32>
    %cst = arith.constant dense<0.000000e+00> : vector<10xf32>
    %4 = vector.multi_reduction <add>, %3, %cst [1] : vector<10x128xf32> to vector<10xf32>
    %5 = vector.shape_cast %4 : vector<10xf32> to vector<10x1xf32>
    %cst_3 = arith.constant 3.125000e-02 : f32
    %6 = vector.broadcast %cst_3 : f32 to vector<10x1xf32>
    %7 = arith.mulf %5, %6 : vector<10x1xf32>
    %8 = vector.broadcast %7 : vector<10x1xf32> to vector<10x128xf32>
    %9 = arith.subf %3, %8 : vector<10x128xf32>
    %c0_4 = arith.constant 0 : index
    %c0_5 = arith.constant 0 : index
    %10 = vector.load %arg2[%c0_4, %c0_5] : memref<1x128xf32, #tpu.memory_space<vmem>>, vector<1x128xf32>
    %11 = vector.broadcast %10 : vector<1x128xf32> to vector<10x128xf32>
    %12 = arith.mulf %9, %11 : vector<10x128xf32>
    %13 = arith.mulf %12, %12 : vector<10x128xf32>
    %cst_6 = arith.constant dense<0.000000e+00> : vector<10xf32>
    %14 = vector.multi_reduction <add>, %13, %cst_6 [1] : vector<10x128xf32> to vector<10xf32>
    %15 = vector.shape_cast %14 : vector<10xf32> to vector<10x1xf32>
    %cst_7 = arith.constant 3.125000e-02 : f32
    %16 = vector.broadcast %cst_7 : f32 to vector<10x1xf32>
    %17 = arith.mulf %15, %16 : vector<10x1xf32>
    %cst_8 = arith.constant 9.99999974E-6 : f32
    %18 = vector.broadcast %cst_8 : f32 to vector<10x1xf32>
    %19 = arith.addf %17, %18 : vector<10x1xf32>
    %20 = math.rsqrt %19 : vector<10x1xf32>
    %21 = vector.broadcast %20 : vector<10x1xf32> to vector<10x128xf32>
    %22 = arith.mulf %12, %21 : vector<10x128xf32>
    %c0_9 = arith.constant 0 : index
    %c0_10 = arith.constant 0 : index
    %23 = vector.load %arg3[%c0_9, %c0_10] : memref<1x128xf32, #tpu.memory_space<vmem>>, vector<1x128xf32>
    %24 = vector.broadcast %23 : vector<1x128xf32> to vector<10x128xf32>
    %25 = arith.mulf %22, %24 : vector<10x128xf32>
    %c0_11 = arith.constant 0 : index
    %c0_12 = arith.constant 0 : index
    %26 = vector.load %arg4[%c0_11, %c0_12] : memref<1x128xf32, #tpu.memory_space<vmem>>, vector<1x128xf32>
    %27 = vector.broadcast %26 : vector<1x128xf32> to vector<10x128xf32>
    %28 = arith.addf %25, %27 : vector<10x128xf32>
    %29 = arith.truncf %28 : vector<10x128xf32> to vector<10x128xbf16>
    %c0_13 = arith.constant 0 : index
    %c0_14 = arith.constant 0 : index
    %30 = vector.load %arg5[%c0_13, %c0_14] : memref<128x384xbf16, #tpu.memory_space<vmem>>, vector<128x384xbf16>
    %cst_15 = arith.constant dense<0.000000e+00> : vector<10x384xf32>
    %31 = tpu.matmul %29, %30, %cst_15 {dimension_numbers = #tpu.dot_dimension_numbers<[1], [0], [0], [1], [0, 0, 1, 1], [], []>} : vector<10x128xbf16>, vector<128x384xbf16>, vector<10x384xf32> -> vector<10x384xf32>
    %c0_16 = arith.constant 0 : index
    %c0_17 = arith.constant 0 : index
    %32 = vector.load %arg6[%c0_16, %c0_17] : memref<1x384xf32, #tpu.memory_space<vmem>>, vector<1x384xf32>
    %33 = vector.broadcast %32 : vector<1x384xf32> to vector<10x384xf32>
    %34 = arith.addf %31, %33 : vector<10x384xf32>
    %35 = arith.truncf %34 : vector<10x384xf32> to vector<10x384xbf16>
    %c0_18 = arith.constant 0 : index
    %c0_19 = arith.constant 0 : index
    %36 = vector.load %arg7[%c0_18, %c0_19] : memref<10x384xbf16, #tpu.memory_space<vmem>>, vector<10x384xbf16>
    tpu.vector_store %arg7[%c0_18, %c0_19], %35 {strides = array<i32>} : memref<10x384xbf16, #tpu.memory_space<vmem>>, vector<10x384xbf16>,
    return
  }
  func.func @transform_0(%arg0: i32) -> (i32, i32) {
    %c0_i32 = arith.constant 0 : i32
    %c0_i32_0 = arith.constant 0 : i32
    return %arg0, %c0_i32 : i32, i32
  }
  func.func @transform_1(%arg0: i32) -> (i32, i32) {
    %c0_i32 = arith.constant 0 : i32
    %c0_i32_0 = arith.constant 0 : i32
    %c0_i32_1 = arith.constant 0 : i32
    return %c0_i32, %c0_i32_0 : i32, i32
  }
  func.func @transform_2(%arg0: i32) -> (i32, i32) {
    %c0_i32 = arith.constant 0 : i32
    %c0_i32_0 = arith.constant 0 : i32
    %c0_i32_1 = arith.constant 0 : i32
    return %c0_i32, %c0_i32_0 : i32, i32
  }
  func.func @transform_3(%arg0: i32) -> (i32, i32) {
    %c0_i32 = arith.constant 0 : i32
    %c0_i32_0 = arith.constant 0 : i32
    %c0_i32_1 = arith.constant 0 : i32
    return %c0_i32, %c0_i32_0 : i32, i32
  }
  func.func @transform_4(%arg0: i32) -> (i32, i32) {
    %c0_i32 = arith.constant 0 : i32
    %c0_i32_0 = arith.constant 0 : i32
    %c0_i32_1 = arith.constant 0 : i32
    return %c0_i32, %c0_i32_0 : i32, i32
  }
  func.func @transform_5(%arg0: i32) -> (i32, i32) {
    %c0_i32 = arith.constant 0 : i32
    %c0_i32_0 = arith.constant 0 : i32
    %c0_i32_1 = arith.constant 0 : i32
    return %c0_i32, %c0_i32_0 : i32, i32
  }
  func.func @transform_6(%arg0: i32) -> (i32, i32) {
    %c0_i32 = arith.constant 0 : i32
    %c0_i32_0 = arith.constant 0 : i32
    return %arg0, %c0_i32 : i32, i32
  }
}

module attributes {stable_mosaic.version = 11 : i64} {
  func.func @_segment_attn_kernel(%arg0: i32, %arg1: memref<16x128xbf16, #tpu.memory_space<vmem>>, %arg2: memref<16x128xbf16, #tpu.memory_space<vmem>>, %arg3: memref<16x128xbf16, #tpu.memory_space<vmem>>, %arg4: memref<16x1xf32, #tpu.memory_space<vmem>>, %arg5: memref<16x8xf32, #tpu.memory_space<vmem>>, %arg6: memref<32x128xbf16, #tpu.memory_space<vmem>>, %arg7: memref<1x128xf32, #tpu.memory_space<vmem>>, %arg8: memref<8x128xf32, #tpu.memory_space<vmem>>, %arg9: memref<8x128xf32, #tpu.memory_space<vmem>>) attributes {dimension_semantics = [#tpu.dimension_semantics<parallel>], iteration_bounds = array<i64: 1>, scalar_prefetch = 0 : i64, scratch_operands = 0 : i64, tpu.core_type = #tpu.core_type<tc>, window_params = [{transform_indices = @transform_0, window_bounds = array<i64: 16, 128>}, {transform_indices = @transform_1, window_bounds = array<i64: 16, 128>}, {transform_indices = @transform_2, window_bounds = array<i64: 16, 128>}, {transform_indices = @transform_3, window_bounds = array<i64: 16, 1>}, {pipeline_mode = #tpu.pipeline_mode<synchronous>, transform_indices = @transform_4, window_bounds = array<i64: 16, 8>}, {pipeline_mode = #tpu.pipeline_mode<synchronous>, transform_indices = @transform_5, window_bounds = array<i64: 32, 128>}, {pipeline_mode = #tpu.pipeline_mode<synchronous>, transform_indices = @transform_6, window_bounds = array<i64: 1, 128>}, {transform_indices = @transform_7, window_bounds = array<i64: 8, 128>}, {transform_indices = @transform_8, window_bounds = array<i64: 8, 128>}]} {
    %c0 = arith.constant 0 : index
    %c0_0 = arith.constant 0 : index
    %0 = vector.load %arg1[%c0, %c0_0] : memref<16x128xbf16, #tpu.memory_space<vmem>>, vector<16x128xbf16>
    %1 = arith.extf %0 : vector<16x128xbf16> to vector<16x128xf32>
    %c0_1 = arith.constant 0 : index
    %c0_2 = arith.constant 0 : index
    %2 = vector.load %arg2[%c0_1, %c0_2] : memref<16x128xbf16, #tpu.memory_space<vmem>>, vector<16x128xbf16>
    %3 = arith.extf %2 : vector<16x128xbf16> to vector<16x128xf32>
    %c0_3 = arith.constant 0 : index
    %c0_4 = arith.constant 0 : index
    %4 = vector.load %arg3[%c0_3, %c0_4] : memref<16x128xbf16, #tpu.memory_space<vmem>>, vector<16x128xbf16>
    %5 = arith.extf %4 : vector<16x128xbf16> to vector<16x128xf32>
    %c0_5 = arith.constant 0 : index
    %c0_6 = arith.constant 0 : index
    %6 = vector.load %arg4[%c0_5, %c0_6] : memref<16x1xf32, #tpu.memory_space<vmem>>, vector<16x1xf32>
    %c0_7 = arith.constant 0 : index
    %c0_8 = arith.constant 0 : index
    %7 = vector.load %arg5[%c0_7, %c0_8] : memref<16x8xf32, #tpu.memory_space<vmem>>, vector<16x8xf32>
    %8 = arith.mulf %1, %3 : vector<16x128xf32>
    %9 = vector.extract_strided_slice %8 {offsets = [0, 0], sizes = [16, 16], strides = [1, 1]} : vector<16x128xf32> to vector<16x16xf32>
    %cst = arith.constant dense<0.000000e+00> : vector<16xf32>
    %10 = vector.multi_reduction <add>, %9, %cst [1] : vector<16x16xf32> to vector<16xf32>
    %11 = vector.shape_cast %10 : vector<16xf32> to vector<16x1xf32>
    %12 = vector.extract_strided_slice %8 {offsets = [0, 16], sizes = [16, 16], strides = [1, 1]} : vector<16x128xf32> to vector<16x16xf32>
    %cst_9 = arith.constant dense<0.000000e+00> : vector<16xf32>
    %13 = vector.multi_reduction <add>, %12, %cst_9 [1] : vector<16x16xf32> to vector<16xf32>
    %14 = vector.shape_cast %13 : vector<16xf32> to vector<16x1xf32>
    %15 = tpu.concatenate %11, %14 in 1 : vector<16x1xf32>, vector<16x1xf32> -> vector<16x2xf32>
    %cst_10 = arith.constant 2.500000e-01 : f32
    %16 = vector.broadcast %cst_10 : f32 to vector<16x2xf32>
    %17 = arith.mulf %15, %16 : vector<16x2xf32>
    %cst_11 = arith.constant dense<0.000000e+00> : vector<8x1xf32>
    %18 = tpu.matmul %7, %6, %cst_11 {dimension_numbers = #tpu.dot_dimension_numbers<[0], [0], [1], [1], [0, 1, 1, 1], [], []>} : vector<16x8xf32>, vector<16x1xf32>, vector<8x1xf32> -> vector<8x1xf32>
    %19 = vector.broadcast %6 : vector<16x1xf32> to vector<16x2xf32>
    %20 = arith.mulf %17, %19 : vector<16x2xf32>
    %cst_12 = arith.constant dense<0.000000e+00> : vector<8x2xf32>
    %21 = tpu.matmul %7, %20, %cst_12 {dimension_numbers = #tpu.dot_dimension_numbers<[0], [0], [1], [1], [0, 1, 1, 1], [], []>} : vector<16x8xf32>, vector<16x2xf32>, vector<8x2xf32> -> vector<8x2xf32>
    %cst_13 = arith.constant 1.000000e+00 : f32
    %22 = vector.broadcast %cst_13 : f32 to vector<8x1xf32>
    %23 = arith.maximumf %18, %22 : vector<8x1xf32>
    %24 = vector.broadcast %23 : vector<8x1xf32> to vector<8x2xf32>
    %25 = arith.divf %21, %24 : vector<8x2xf32>
    %cst_14 = arith.constant dense<0.000000e+00> : vector<16x2xf32>
    %26 = tpu.matmul %7, %25, %cst_14 {dimension_numbers = #tpu.dot_dimension_numbers<[1], [0], [0], [1], [0, 0, 1, 1], [], []>} : vector<16x8xf32>, vector<8x2xf32>, vector<16x2xf32> -> vector<16x2xf32>
    %27 = arith.subf %17, %26 : vector<16x2xf32>
    %28 = math.exp %27 : vector<16x2xf32>
    %29 = vector.broadcast %6 : vector<16x1xf32> to vector<16x2xf32>
    %30 = arith.mulf %28, %29 : vector<16x2xf32>
    %cst_15 = arith.constant dense<0.000000e+00> : vector<8x2xf32>
    %31 = tpu.matmul %7, %30, %cst_15 {dimension_numbers = #tpu.dot_dimension_numbers<[0], [0], [1], [1], [0, 1, 1, 1], [], []>} : vector<16x8xf32>, vector<16x2xf32>, vector<8x2xf32> -> vector<8x2xf32>
    %cst_16 = arith.constant dense<0.000000e+00> : vector<16x2xf32>
    %32 = tpu.matmul %7, %31, %cst_16 {dimension_numbers = #tpu.dot_dimension_numbers<[1], [0], [0], [1], [0, 0, 1, 1], [], []>} : vector<16x8xf32>, vector<8x2xf32>, vector<16x2xf32> -> vector<16x2xf32>
    %cst_17 = arith.constant 1.000000e-30 : f32
    %33 = vector.broadcast %cst_17 : f32 to vector<16x2xf32>
    %34 = arith.maximumf %32, %33 : vector<16x2xf32>
    %35 = arith.divf %30, %34 : vector<16x2xf32>
    %36 = vector.extract_strided_slice %35 {offsets = [0, 0], sizes = [16, 1], strides = [1, 1]} : vector<16x2xf32> to vector<16x1xf32>
    %37 = vector.extract_strided_slice %5 {offsets = [0, 0], sizes = [16, 16], strides = [1, 1]} : vector<16x128xf32> to vector<16x16xf32>
    %38 = vector.broadcast %36 : vector<16x1xf32> to vector<16x16xf32>
    %39 = arith.mulf %38, %37 : vector<16x16xf32>
    %40 = vector.extract_strided_slice %35 {offsets = [0, 1], sizes = [16, 1], strides = [1, 1]} : vector<16x2xf32> to vector<16x1xf32>
    %41 = vector.extract_strided_slice %5 {offsets = [0, 16], sizes = [16, 16], strides = [1, 1]} : vector<16x128xf32> to vector<16x16xf32>
    %42 = vector.broadcast %40 : vector<16x1xf32> to vector<16x16xf32>
    %43 = arith.mulf %42, %41 : vector<16x16xf32>
    %44 = tpu.concatenate %39, %43 in 1 : vector<16x16xf32>, vector<16x16xf32> -> vector<16x32xf32>
    %cst_18 = arith.constant dense<0.000000e+00> : vector<8x32xf32>
    %45 = tpu.matmul %7, %44, %cst_18 {dimension_numbers = #tpu.dot_dimension_numbers<[0], [0], [1], [1], [0, 1, 1, 1], [], []>} : vector<16x8xf32>, vector<16x32xf32>, vector<8x32xf32> -> vector<8x32xf32>
    %46 = arith.truncf %45 : vector<8x32xf32> to vector<8x32xbf16>
    %c0_19 = arith.constant 0 : index
    %c0_20 = arith.constant 0 : index
    %47 = vector.load %arg6[%c0_19, %c0_20] : memref<32x128xbf16, #tpu.memory_space<vmem>>, vector<32x128xbf16>
    %cst_21 = arith.constant dense<0.000000e+00> : vector<8x128xf32>
    %48 = tpu.matmul %46, %47, %cst_21 {dimension_numbers = #tpu.dot_dimension_numbers<[1], [0], [0], [1], [0, 0, 1, 1], [], []>} : vector<8x32xbf16>, vector<32x128xbf16>, vector<8x128xf32> -> vector<8x128xf32>
    %c0_22 = arith.constant 0 : index
    %c0_23 = arith.constant 0 : index
    %49 = vector.load %arg7[%c0_22, %c0_23] : memref<1x128xf32, #tpu.memory_space<vmem>>, vector<1x128xf32>
    %50 = vector.broadcast %49 : vector<1x128xf32> to vector<8x128xf32>
    %51 = arith.addf %48, %50 : vector<8x128xf32>
    %c0_24 = arith.constant 0 : index
    %c0_25 = arith.constant 0 : index
    %52 = vector.load %arg8[%c0_24, %c0_25] : memref<8x128xf32, #tpu.memory_space<vmem>>, vector<8x128xf32>
    %53 = arith.addf %51, %52 : vector<8x128xf32>
    %c0_26 = arith.constant 0 : index
    %c0_27 = arith.constant 0 : index
    %54 = vector.load %arg9[%c0_26, %c0_27] : memref<8x128xf32, #tpu.memory_space<vmem>>, vector<8x128xf32>
    tpu.vector_store %arg9[%c0_26, %c0_27], %53 {strides = array<i32>} : memref<8x128xf32, #tpu.memory_space<vmem>>, vector<8x128xf32>,
    return
  }
  func.func @transform_0(%arg0: i32) -> (i32, i32) {
    %c0_i32 = arith.constant 0 : i32
    %c0_i32_0 = arith.constant 0 : i32
    return %arg0, %c0_i32 : i32, i32
  }
  func.func @transform_1(%arg0: i32) -> (i32, i32) {
    %c0_i32 = arith.constant 0 : i32
    %c0_i32_0 = arith.constant 0 : i32
    return %arg0, %c0_i32 : i32, i32
  }
  func.func @transform_2(%arg0: i32) -> (i32, i32) {
    %c0_i32 = arith.constant 0 : i32
    %c0_i32_0 = arith.constant 0 : i32
    return %arg0, %c0_i32 : i32, i32
  }
  func.func @transform_3(%arg0: i32) -> (i32, i32) {
    %c0_i32 = arith.constant 0 : i32
    %c0_i32_0 = arith.constant 0 : i32
    return %arg0, %c0_i32 : i32, i32
  }
  func.func @transform_4(%arg0: i32) -> (i32, i32) {
    %c0_i32 = arith.constant 0 : i32
    %c0_i32_0 = arith.constant 0 : i32
    %c0_i32_1 = arith.constant 0 : i32
    return %c0_i32, %c0_i32_0 : i32, i32
  }
  func.func @transform_5(%arg0: i32) -> (i32, i32) {
    %c0_i32 = arith.constant 0 : i32
    %c0_i32_0 = arith.constant 0 : i32
    %c0_i32_1 = arith.constant 0 : i32
    return %c0_i32, %c0_i32_0 : i32, i32
  }
  func.func @transform_6(%arg0: i32) -> (i32, i32) {
    %c0_i32 = arith.constant 0 : i32
    %c0_i32_0 = arith.constant 0 : i32
    %c0_i32_1 = arith.constant 0 : i32
    return %c0_i32, %c0_i32_0 : i32, i32
  }
  func.func @transform_7(%arg0: i32) -> (i32, i32) {
    %c0_i32 = arith.constant 0 : i32
    %c0_i32_0 = arith.constant 0 : i32
    return %arg0, %c0_i32 : i32, i32
  }
  func.func @transform_8(%arg0: i32) -> (i32, i32) {
    %c0_i32 = arith.constant 0 : i32
    %c0_i32_0 = arith.constant 0 : i32
    return %arg0, %c0_i32 : i32, i32
  }
}

module attributes {stable_mosaic.version = 11 : i64} {
  func.func @_ffn_kernel(%arg0: i32, %arg1: memref<8x128xf32, #tpu.memory_space<vmem>>, %arg2: memref<1x128xf32, #tpu.memory_space<vmem>>, %arg3: memref<1x128xf32, #tpu.memory_space<vmem>>, %arg4: memref<1x128xf32, #tpu.memory_space<vmem>>, %arg5: memref<128x64xbf16, #tpu.memory_space<vmem>>, %arg6: memref<1x64xf32, #tpu.memory_space<vmem>>, %arg7: memref<64x128xbf16, #tpu.memory_space<vmem>>, %arg8: memref<1x128xf32, #tpu.memory_space<vmem>>, %arg9: memref<8x128xf32, #tpu.memory_space<vmem>>) attributes {dimension_semantics = [#tpu.dimension_semantics<parallel>], iteration_bounds = array<i64: 1>, scalar_prefetch = 0 : i64, scratch_operands = 0 : i64, tpu.core_type = #tpu.core_type<tc>, window_params = [{transform_indices = @transform_0, window_bounds = array<i64: 8, 128>}, {pipeline_mode = #tpu.pipeline_mode<synchronous>, transform_indices = @transform_1, window_bounds = array<i64: 1, 128>}, {pipeline_mode = #tpu.pipeline_mode<synchronous>, transform_indices = @transform_2, window_bounds = array<i64: 1, 128>}, {pipeline_mode = #tpu.pipeline_mode<synchronous>, transform_indices = @transform_3, window_bounds = array<i64: 1, 128>}, {pipeline_mode = #tpu.pipeline_mode<synchronous>, transform_indices = @transform_4, window_bounds = array<i64: 128, 64>}, {pipeline_mode = #tpu.pipeline_mode<synchronous>, transform_indices = @transform_5, window_bounds = array<i64: 1, 64>}, {pipeline_mode = #tpu.pipeline_mode<synchronous>, transform_indices = @transform_6, window_bounds = array<i64: 64, 128>}, {pipeline_mode = #tpu.pipeline_mode<synchronous>, transform_indices = @transform_7, window_bounds = array<i64: 1, 128>}, {transform_indices = @transform_8, window_bounds = array<i64: 8, 128>}]} {
    %c0 = arith.constant 0 : index
    %c0_0 = arith.constant 0 : index
    %0 = vector.load %arg1[%c0, %c0_0] : memref<8x128xf32, #tpu.memory_space<vmem>>, vector<8x128xf32>
    %c0_1 = arith.constant 0 : index
    %c0_2 = arith.constant 0 : index
    %1 = vector.load %arg2[%c0_1, %c0_2] : memref<1x128xf32, #tpu.memory_space<vmem>>, vector<1x128xf32>
    %2 = vector.broadcast %1 : vector<1x128xf32> to vector<8x128xf32>
    %3 = arith.mulf %0, %2 : vector<8x128xf32>
    %cst = arith.constant dense<0.000000e+00> : vector<8xf32>
    %4 = vector.multi_reduction <add>, %3, %cst [1] : vector<8x128xf32> to vector<8xf32>
    %5 = vector.shape_cast %4 : vector<8xf32> to vector<8x1xf32>
    %cst_3 = arith.constant 3.125000e-02 : f32
    %6 = vector.broadcast %cst_3 : f32 to vector<8x1xf32>
    %7 = arith.mulf %5, %6 : vector<8x1xf32>
    %8 = vector.broadcast %7 : vector<8x1xf32> to vector<8x128xf32>
    %9 = arith.subf %3, %8 : vector<8x128xf32>
    %c0_4 = arith.constant 0 : index
    %c0_5 = arith.constant 0 : index
    %10 = vector.load %arg2[%c0_4, %c0_5] : memref<1x128xf32, #tpu.memory_space<vmem>>, vector<1x128xf32>
    %11 = vector.broadcast %10 : vector<1x128xf32> to vector<8x128xf32>
    %12 = arith.mulf %9, %11 : vector<8x128xf32>
    %13 = arith.mulf %12, %12 : vector<8x128xf32>
    %cst_6 = arith.constant dense<0.000000e+00> : vector<8xf32>
    %14 = vector.multi_reduction <add>, %13, %cst_6 [1] : vector<8x128xf32> to vector<8xf32>
    %15 = vector.shape_cast %14 : vector<8xf32> to vector<8x1xf32>
    %cst_7 = arith.constant 3.125000e-02 : f32
    %16 = vector.broadcast %cst_7 : f32 to vector<8x1xf32>
    %17 = arith.mulf %15, %16 : vector<8x1xf32>
    %cst_8 = arith.constant 9.99999974E-6 : f32
    %18 = vector.broadcast %cst_8 : f32 to vector<8x1xf32>
    %19 = arith.addf %17, %18 : vector<8x1xf32>
    %20 = math.rsqrt %19 : vector<8x1xf32>
    %21 = vector.broadcast %20 : vector<8x1xf32> to vector<8x128xf32>
    %22 = arith.mulf %12, %21 : vector<8x128xf32>
    %c0_9 = arith.constant 0 : index
    %c0_10 = arith.constant 0 : index
    %23 = vector.load %arg3[%c0_9, %c0_10] : memref<1x128xf32, #tpu.memory_space<vmem>>, vector<1x128xf32>
    %24 = vector.broadcast %23 : vector<1x128xf32> to vector<8x128xf32>
    %25 = arith.mulf %22, %24 : vector<8x128xf32>
    %c0_11 = arith.constant 0 : index
    %c0_12 = arith.constant 0 : index
    %26 = vector.load %arg4[%c0_11, %c0_12] : memref<1x128xf32, #tpu.memory_space<vmem>>, vector<1x128xf32>
    %27 = vector.broadcast %26 : vector<1x128xf32> to vector<8x128xf32>
    %28 = arith.addf %25, %27 : vector<8x128xf32>
    %29 = arith.truncf %28 : vector<8x128xf32> to vector<8x128xbf16>
    %c0_13 = arith.constant 0 : index
    %c0_14 = arith.constant 0 : index
    %30 = vector.load %arg5[%c0_13, %c0_14] : memref<128x64xbf16, #tpu.memory_space<vmem>>, vector<128x64xbf16>
    %cst_15 = arith.constant dense<0.000000e+00> : vector<8x64xf32>
    %31 = tpu.matmul %29, %30, %cst_15 {dimension_numbers = #tpu.dot_dimension_numbers<[1], [0], [0], [1], [0, 0, 1, 1], [], []>} : vector<8x128xbf16>, vector<128x64xbf16>, vector<8x64xf32> -> vector<8x64xf32>
    %c0_16 = arith.constant 0 : index
    %c0_17 = arith.constant 0 : index
    %32 = vector.load %arg6[%c0_16, %c0_17] : memref<1x64xf32, #tpu.memory_space<vmem>>, vector<1x64xf32>
    %33 = vector.broadcast %32 : vector<1x64xf32> to vector<8x64xf32>
    %34 = arith.addf %31, %33 : vector<8x64xf32>
    %cst_18 = arith.constant 0.000000e+00 : f32
    %35 = vector.broadcast %cst_18 : f32 to vector<8x64xf32>
    %36 = arith.maximumf %34, %35 : vector<8x64xf32>
    %37 = arith.truncf %36 : vector<8x64xf32> to vector<8x64xbf16>
    %c0_19 = arith.constant 0 : index
    %c0_20 = arith.constant 0 : index
    %38 = vector.load %arg7[%c0_19, %c0_20] : memref<64x128xbf16, #tpu.memory_space<vmem>>, vector<64x128xbf16>
    %cst_21 = arith.constant dense<0.000000e+00> : vector<8x128xf32>
    %39 = tpu.matmul %37, %38, %cst_21 {dimension_numbers = #tpu.dot_dimension_numbers<[1], [0], [0], [1], [0, 0, 1, 1], [], []>} : vector<8x64xbf16>, vector<64x128xbf16>, vector<8x128xf32> -> vector<8x128xf32>
    %c0_22 = arith.constant 0 : index
    %c0_23 = arith.constant 0 : index
    %40 = vector.load %arg8[%c0_22, %c0_23] : memref<1x128xf32, #tpu.memory_space<vmem>>, vector<1x128xf32>
    %41 = vector.broadcast %40 : vector<1x128xf32> to vector<8x128xf32>
    %42 = arith.addf %39, %41 : vector<8x128xf32>
    %43 = arith.addf %0, %42 : vector<8x128xf32>
    %c0_24 = arith.constant 0 : index
    %c0_25 = arith.constant 0 : index
    %44 = vector.load %arg9[%c0_24, %c0_25] : memref<8x128xf32, #tpu.memory_space<vmem>>, vector<8x128xf32>
    tpu.vector_store %arg9[%c0_24, %c0_25], %43 {strides = array<i32>} : memref<8x128xf32, #tpu.memory_space<vmem>>, vector<8x128xf32>,
    return
  }
  func.func @transform_0(%arg0: i32) -> (i32, i32) {
    %c0_i32 = arith.constant 0 : i32
    %c0_i32_0 = arith.constant 0 : i32
    return %arg0, %c0_i32 : i32, i32
  }
  func.func @transform_1(%arg0: i32) -> (i32, i32) {
    %c0_i32 = arith.constant 0 : i32
    %c0_i32_0 = arith.constant 0 : i32
    %c0_i32_1 = arith.constant 0 : i32
    return %c0_i32, %c0_i32_0 : i32, i32
  }
  func.func @transform_2(%arg0: i32) -> (i32, i32) {
    %c0_i32 = arith.constant 0 : i32
    %c0_i32_0 = arith.constant 0 : i32
    %c0_i32_1 = arith.constant 0 : i32
    return %c0_i32, %c0_i32_0 : i32, i32
  }
  func.func @transform_3(%arg0: i32) -> (i32, i32) {
    %c0_i32 = arith.constant 0 : i32
    %c0_i32_0 = arith.constant 0 : i32
    %c0_i32_1 = arith.constant 0 : i32
    return %c0_i32, %c0_i32_0 : i32, i32
  }
  func.func @transform_4(%arg0: i32) -> (i32, i32) {
    %c0_i32 = arith.constant 0 : i32
    %c0_i32_0 = arith.constant 0 : i32
    %c0_i32_1 = arith.constant 0 : i32
    return %c0_i32, %c0_i32_0 : i32, i32
  }
  func.func @transform_5(%arg0: i32) -> (i32, i32) {
    %c0_i32 = arith.constant 0 : i32
    %c0_i32_0 = arith.constant 0 : i32
    %c0_i32_1 = arith.constant 0 : i32
    return %c0_i32, %c0_i32_0 : i32, i32
  }
  func.func @transform_6(%arg0: i32) -> (i32, i32) {
    %c0_i32 = arith.constant 0 : i32
    %c0_i32_0 = arith.constant 0 : i32
    %c0_i32_1 = arith.constant 0 : i32
    return %c0_i32, %c0_i32_0 : i32, i32
  }
  func.func @transform_7(%arg0: i32) -> (i32, i32) {
    %c0_i32 = arith.constant 0 : i32
    %c0_i32_0 = arith.constant 0 : i32
    %c0_i32_1 = arith.constant 0 : i32
    return %c0_i32, %c0_i32_0 : i32, i32
  }
  func.func @transform_8(%arg0: i32) -> (i32, i32) {
    %c0_i32 = arith.constant 0 : i32
    %c0_i32_0 = arith.constant 0 : i32
    return %arg0, %c0_i32 : i32, i32
  }
}

module attributes {stable_mosaic.version = 11 : i64} {
  func.func @_segment_attn_kernel(%arg0: i32, %arg1: memref<50x128xbf16, #tpu.memory_space<vmem>>, %arg2: memref<50x128xbf16, #tpu.memory_space<vmem>>, %arg3: memref<50x128xbf16, #tpu.memory_space<vmem>>, %arg4: memref<50x1xf32, #tpu.memory_space<vmem>>, %arg5: memref<50x10xf32, #tpu.memory_space<vmem>>, %arg6: memref<32x128xbf16, #tpu.memory_space<vmem>>, %arg7: memref<1x128xf32, #tpu.memory_space<vmem>>, %arg8: memref<10x128xf32, #tpu.memory_space<vmem>>, %arg9: memref<10x128xf32, #tpu.memory_space<vmem>>) attributes {dimension_semantics = [#tpu.dimension_semantics<parallel>], iteration_bounds = array<i64: 1>, scalar_prefetch = 0 : i64, scratch_operands = 0 : i64, tpu.core_type = #tpu.core_type<tc>, window_params = [{transform_indices = @transform_0, window_bounds = array<i64: 50, 128>}, {transform_indices = @transform_1, window_bounds = array<i64: 50, 128>}, {transform_indices = @transform_2, window_bounds = array<i64: 50, 128>}, {transform_indices = @transform_3, window_bounds = array<i64: 50, 1>}, {pipeline_mode = #tpu.pipeline_mode<synchronous>, transform_indices = @transform_4, window_bounds = array<i64: 50, 10>}, {pipeline_mode = #tpu.pipeline_mode<synchronous>, transform_indices = @transform_5, window_bounds = array<i64: 32, 128>}, {pipeline_mode = #tpu.pipeline_mode<synchronous>, transform_indices = @transform_6, window_bounds = array<i64: 1, 128>}, {transform_indices = @transform_7, window_bounds = array<i64: 10, 128>}, {transform_indices = @transform_8, window_bounds = array<i64: 10, 128>}]} {
    %c0 = arith.constant 0 : index
    %c0_0 = arith.constant 0 : index
    %0 = vector.load %arg1[%c0, %c0_0] : memref<50x128xbf16, #tpu.memory_space<vmem>>, vector<50x128xbf16>
    %1 = arith.extf %0 : vector<50x128xbf16> to vector<50x128xf32>
    %c0_1 = arith.constant 0 : index
    %c0_2 = arith.constant 0 : index
    %2 = vector.load %arg2[%c0_1, %c0_2] : memref<50x128xbf16, #tpu.memory_space<vmem>>, vector<50x128xbf16>
    %3 = arith.extf %2 : vector<50x128xbf16> to vector<50x128xf32>
    %c0_3 = arith.constant 0 : index
    %c0_4 = arith.constant 0 : index
    %4 = vector.load %arg3[%c0_3, %c0_4] : memref<50x128xbf16, #tpu.memory_space<vmem>>, vector<50x128xbf16>
    %5 = arith.extf %4 : vector<50x128xbf16> to vector<50x128xf32>
    %c0_5 = arith.constant 0 : index
    %c0_6 = arith.constant 0 : index
    %6 = vector.load %arg4[%c0_5, %c0_6] : memref<50x1xf32, #tpu.memory_space<vmem>>, vector<50x1xf32>
    %c0_7 = arith.constant 0 : index
    %c0_8 = arith.constant 0 : index
    %7 = vector.load %arg5[%c0_7, %c0_8] : memref<50x10xf32, #tpu.memory_space<vmem>>, vector<50x10xf32>
    %8 = arith.mulf %1, %3 : vector<50x128xf32>
    %9 = vector.extract_strided_slice %8 {offsets = [0, 0], sizes = [50, 16], strides = [1, 1]} : vector<50x128xf32> to vector<50x16xf32>
    %cst = arith.constant dense<0.000000e+00> : vector<50xf32>
    %10 = vector.multi_reduction <add>, %9, %cst [1] : vector<50x16xf32> to vector<50xf32>
    %11 = vector.shape_cast %10 : vector<50xf32> to vector<50x1xf32>
    %12 = vector.extract_strided_slice %8 {offsets = [0, 16], sizes = [50, 16], strides = [1, 1]} : vector<50x128xf32> to vector<50x16xf32>
    %cst_9 = arith.constant dense<0.000000e+00> : vector<50xf32>
    %13 = vector.multi_reduction <add>, %12, %cst_9 [1] : vector<50x16xf32> to vector<50xf32>
    %14 = vector.shape_cast %13 : vector<50xf32> to vector<50x1xf32>
    %15 = tpu.concatenate %11, %14 in 1 : vector<50x1xf32>, vector<50x1xf32> -> vector<50x2xf32>
    %cst_10 = arith.constant 2.500000e-01 : f32
    %16 = vector.broadcast %cst_10 : f32 to vector<50x2xf32>
    %17 = arith.mulf %15, %16 : vector<50x2xf32>
    %cst_11 = arith.constant dense<0.000000e+00> : vector<10x1xf32>
    %18 = tpu.matmul %7, %6, %cst_11 {dimension_numbers = #tpu.dot_dimension_numbers<[0], [0], [1], [1], [0, 1, 1, 1], [], []>} : vector<50x10xf32>, vector<50x1xf32>, vector<10x1xf32> -> vector<10x1xf32>
    %19 = vector.broadcast %6 : vector<50x1xf32> to vector<50x2xf32>
    %20 = arith.mulf %17, %19 : vector<50x2xf32>
    %cst_12 = arith.constant dense<0.000000e+00> : vector<10x2xf32>
    %21 = tpu.matmul %7, %20, %cst_12 {dimension_numbers = #tpu.dot_dimension_numbers<[0], [0], [1], [1], [0, 1, 1, 1], [], []>} : vector<50x10xf32>, vector<50x2xf32>, vector<10x2xf32> -> vector<10x2xf32>
    %cst_13 = arith.constant 1.000000e+00 : f32
    %22 = vector.broadcast %cst_13 : f32 to vector<10x1xf32>
    %23 = arith.maximumf %18, %22 : vector<10x1xf32>
    %24 = vector.broadcast %23 : vector<10x1xf32> to vector<10x2xf32>
    %25 = arith.divf %21, %24 : vector<10x2xf32>
    %cst_14 = arith.constant dense<0.000000e+00> : vector<50x2xf32>
    %26 = tpu.matmul %7, %25, %cst_14 {dimension_numbers = #tpu.dot_dimension_numbers<[1], [0], [0], [1], [0, 0, 1, 1], [], []>} : vector<50x10xf32>, vector<10x2xf32>, vector<50x2xf32> -> vector<50x2xf32>
    %27 = arith.subf %17, %26 : vector<50x2xf32>
    %28 = math.exp %27 : vector<50x2xf32>
    %29 = vector.broadcast %6 : vector<50x1xf32> to vector<50x2xf32>
    %30 = arith.mulf %28, %29 : vector<50x2xf32>
    %cst_15 = arith.constant dense<0.000000e+00> : vector<10x2xf32>
    %31 = tpu.matmul %7, %30, %cst_15 {dimension_numbers = #tpu.dot_dimension_numbers<[0], [0], [1], [1], [0, 1, 1, 1], [], []>} : vector<50x10xf32>, vector<50x2xf32>, vector<10x2xf32> -> vector<10x2xf32>
    %cst_16 = arith.constant dense<0.000000e+00> : vector<50x2xf32>
    %32 = tpu.matmul %7, %31, %cst_16 {dimension_numbers = #tpu.dot_dimension_numbers<[1], [0], [0], [1], [0, 0, 1, 1], [], []>} : vector<50x10xf32>, vector<10x2xf32>, vector<50x2xf32> -> vector<50x2xf32>
    %cst_17 = arith.constant 1.000000e-30 : f32
    %33 = vector.broadcast %cst_17 : f32 to vector<50x2xf32>
    %34 = arith.maximumf %32, %33 : vector<50x2xf32>
    %35 = arith.divf %30, %34 : vector<50x2xf32>
    %36 = vector.extract_strided_slice %35 {offsets = [0, 0], sizes = [50, 1], strides = [1, 1]} : vector<50x2xf32> to vector<50x1xf32>
    %37 = vector.extract_strided_slice %5 {offsets = [0, 0], sizes = [50, 16], strides = [1, 1]} : vector<50x128xf32> to vector<50x16xf32>
    %38 = vector.broadcast %36 : vector<50x1xf32> to vector<50x16xf32>
    %39 = arith.mulf %38, %37 : vector<50x16xf32>
    %40 = vector.extract_strided_slice %35 {offsets = [0, 1], sizes = [50, 1], strides = [1, 1]} : vector<50x2xf32> to vector<50x1xf32>
    %41 = vector.extract_strided_slice %5 {offsets = [0, 16], sizes = [50, 16], strides = [1, 1]} : vector<50x128xf32> to vector<50x16xf32>
    %42 = vector.broadcast %40 : vector<50x1xf32> to vector<50x16xf32>
    %43 = arith.mulf %42, %41 : vector<50x16xf32>
    %44 = tpu.concatenate %39, %43 in 1 : vector<50x16xf32>, vector<50x16xf32> -> vector<50x32xf32>
    %cst_18 = arith.constant dense<0.000000e+00> : vector<10x32xf32>
    %45 = tpu.matmul %7, %44, %cst_18 {dimension_numbers = #tpu.dot_dimension_numbers<[0], [0], [1], [1], [0, 1, 1, 1], [], []>} : vector<50x10xf32>, vector<50x32xf32>, vector<10x32xf32> -> vector<10x32xf32>
    %46 = arith.truncf %45 : vector<10x32xf32> to vector<10x32xbf16>
    %c0_19 = arith.constant 0 : index
    %c0_20 = arith.constant 0 : index
    %47 = vector.load %arg6[%c0_19, %c0_20] : memref<32x128xbf16, #tpu.memory_space<vmem>>, vector<32x128xbf16>
    %cst_21 = arith.constant dense<0.000000e+00> : vector<10x128xf32>
    %48 = tpu.matmul %46, %47, %cst_21 {dimension_numbers = #tpu.dot_dimension_numbers<[1], [0], [0], [1], [0, 0, 1, 1], [], []>} : vector<10x32xbf16>, vector<32x128xbf16>, vector<10x128xf32> -> vector<10x128xf32>
    %c0_22 = arith.constant 0 : index
    %c0_23 = arith.constant 0 : index
    %49 = vector.load %arg7[%c0_22, %c0_23] : memref<1x128xf32, #tpu.memory_space<vmem>>, vector<1x128xf32>
    %50 = vector.broadcast %49 : vector<1x128xf32> to vector<10x128xf32>
    %51 = arith.addf %48, %50 : vector<10x128xf32>
    %c0_24 = arith.constant 0 : index
    %c0_25 = arith.constant 0 : index
    %52 = vector.load %arg8[%c0_24, %c0_25] : memref<10x128xf32, #tpu.memory_space<vmem>>, vector<10x128xf32>
    %53 = arith.addf %51, %52 : vector<10x128xf32>
    %c0_26 = arith.constant 0 : index
    %c0_27 = arith.constant 0 : index
    %54 = vector.load %arg9[%c0_26, %c0_27] : memref<10x128xf32, #tpu.memory_space<vmem>>, vector<10x128xf32>
    tpu.vector_store %arg9[%c0_26, %c0_27], %53 {strides = array<i32>} : memref<10x128xf32, #tpu.memory_space<vmem>>, vector<10x128xf32>,
    return
  }
  func.func @transform_0(%arg0: i32) -> (i32, i32) {
    %c0_i32 = arith.constant 0 : i32
    %c0_i32_0 = arith.constant 0 : i32
    return %arg0, %c0_i32 : i32, i32
  }
  func.func @transform_1(%arg0: i32) -> (i32, i32) {
    %c0_i32 = arith.constant 0 : i32
    %c0_i32_0 = arith.constant 0 : i32
    return %arg0, %c0_i32 : i32, i32
  }
  func.func @transform_2(%arg0: i32) -> (i32, i32) {
    %c0_i32 = arith.constant 0 : i32
    %c0_i32_0 = arith.constant 0 : i32
    return %arg0, %c0_i32 : i32, i32
  }
  func.func @transform_3(%arg0: i32) -> (i32, i32) {
    %c0_i32 = arith.constant 0 : i32
    %c0_i32_0 = arith.constant 0 : i32
    return %arg0, %c0_i32 : i32, i32
  }
  func.func @transform_4(%arg0: i32) -> (i32, i32) {
    %c0_i32 = arith.constant 0 : i32
    %c0_i32_0 = arith.constant 0 : i32
    %c0_i32_1 = arith.constant 0 : i32
    return %c0_i32, %c0_i32_0 : i32, i32
  }
  func.func @transform_5(%arg0: i32) -> (i32, i32) {
    %c0_i32 = arith.constant 0 : i32
    %c0_i32_0 = arith.constant 0 : i32
    %c0_i32_1 = arith.constant 0 : i32
    return %c0_i32, %c0_i32_0 : i32, i32
  }
  func.func @transform_6(%arg0: i32) -> (i32, i32) {
    %c0_i32 = arith.constant 0 : i32
    %c0_i32_0 = arith.constant 0 : i32
    %c0_i32_1 = arith.constant 0 : i32
    return %c0_i32, %c0_i32_0 : i32, i32
  }
  func.func @transform_7(%arg0: i32) -> (i32, i32) {
    %c0_i32 = arith.constant 0 : i32
    %c0_i32_0 = arith.constant 0 : i32
    return %arg0, %c0_i32 : i32, i32
  }
  func.func @transform_8(%arg0: i32) -> (i32, i32) {
    %c0_i32 = arith.constant 0 : i32
    %c0_i32_0 = arith.constant 0 : i32
    return %arg0, %c0_i32 : i32, i32
  }
}

module attributes {stable_mosaic.version = 11 : i64} {
  func.func @_ffn_kernel(%arg0: i32, %arg1: memref<10x128xf32, #tpu.memory_space<vmem>>, %arg2: memref<1x128xf32, #tpu.memory_space<vmem>>, %arg3: memref<1x128xf32, #tpu.memory_space<vmem>>, %arg4: memref<1x128xf32, #tpu.memory_space<vmem>>, %arg5: memref<128x64xbf16, #tpu.memory_space<vmem>>, %arg6: memref<1x64xf32, #tpu.memory_space<vmem>>, %arg7: memref<64x128xbf16, #tpu.memory_space<vmem>>, %arg8: memref<1x128xf32, #tpu.memory_space<vmem>>, %arg9: memref<10x128xf32, #tpu.memory_space<vmem>>) attributes {dimension_semantics = [#tpu.dimension_semantics<parallel>], iteration_bounds = array<i64: 1>, scalar_prefetch = 0 : i64, scratch_operands = 0 : i64, tpu.core_type = #tpu.core_type<tc>, window_params = [{transform_indices = @transform_0, window_bounds = array<i64: 10, 128>}, {pipeline_mode = #tpu.pipeline_mode<synchronous>, transform_indices = @transform_1, window_bounds = array<i64: 1, 128>}, {pipeline_mode = #tpu.pipeline_mode<synchronous>, transform_indices = @transform_2, window_bounds = array<i64: 1, 128>}, {pipeline_mode = #tpu.pipeline_mode<synchronous>, transform_indices = @transform_3, window_bounds = array<i64: 1, 128>}, {pipeline_mode = #tpu.pipeline_mode<synchronous>, transform_indices = @transform_4, window_bounds = array<i64: 128, 64>}, {pipeline_mode = #tpu.pipeline_mode<synchronous>, transform_indices = @transform_5, window_bounds = array<i64: 1, 64>}, {pipeline_mode = #tpu.pipeline_mode<synchronous>, transform_indices = @transform_6, window_bounds = array<i64: 64, 128>}, {pipeline_mode = #tpu.pipeline_mode<synchronous>, transform_indices = @transform_7, window_bounds = array<i64: 1, 128>}, {transform_indices = @transform_8, window_bounds = array<i64: 10, 128>}]} {
    %c0 = arith.constant 0 : index
    %c0_0 = arith.constant 0 : index
    %0 = vector.load %arg1[%c0, %c0_0] : memref<10x128xf32, #tpu.memory_space<vmem>>, vector<10x128xf32>
    %c0_1 = arith.constant 0 : index
    %c0_2 = arith.constant 0 : index
    %1 = vector.load %arg2[%c0_1, %c0_2] : memref<1x128xf32, #tpu.memory_space<vmem>>, vector<1x128xf32>
    %2 = vector.broadcast %1 : vector<1x128xf32> to vector<10x128xf32>
    %3 = arith.mulf %0, %2 : vector<10x128xf32>
    %cst = arith.constant dense<0.000000e+00> : vector<10xf32>
    %4 = vector.multi_reduction <add>, %3, %cst [1] : vector<10x128xf32> to vector<10xf32>
    %5 = vector.shape_cast %4 : vector<10xf32> to vector<10x1xf32>
    %cst_3 = arith.constant 3.125000e-02 : f32
    %6 = vector.broadcast %cst_3 : f32 to vector<10x1xf32>
    %7 = arith.mulf %5, %6 : vector<10x1xf32>
    %8 = vector.broadcast %7 : vector<10x1xf32> to vector<10x128xf32>
    %9 = arith.subf %3, %8 : vector<10x128xf32>
    %c0_4 = arith.constant 0 : index
    %c0_5 = arith.constant 0 : index
    %10 = vector.load %arg2[%c0_4, %c0_5] : memref<1x128xf32, #tpu.memory_space<vmem>>, vector<1x128xf32>
    %11 = vector.broadcast %10 : vector<1x128xf32> to vector<10x128xf32>
    %12 = arith.mulf %9, %11 : vector<10x128xf32>
    %13 = arith.mulf %12, %12 : vector<10x128xf32>
    %cst_6 = arith.constant dense<0.000000e+00> : vector<10xf32>
    %14 = vector.multi_reduction <add>, %13, %cst_6 [1] : vector<10x128xf32> to vector<10xf32>
    %15 = vector.shape_cast %14 : vector<10xf32> to vector<10x1xf32>
    %cst_7 = arith.constant 3.125000e-02 : f32
    %16 = vector.broadcast %cst_7 : f32 to vector<10x1xf32>
    %17 = arith.mulf %15, %16 : vector<10x1xf32>
    %cst_8 = arith.constant 9.99999974E-6 : f32
    %18 = vector.broadcast %cst_8 : f32 to vector<10x1xf32>
    %19 = arith.addf %17, %18 : vector<10x1xf32>
    %20 = math.rsqrt %19 : vector<10x1xf32>
    %21 = vector.broadcast %20 : vector<10x1xf32> to vector<10x128xf32>
    %22 = arith.mulf %12, %21 : vector<10x128xf32>
    %c0_9 = arith.constant 0 : index
    %c0_10 = arith.constant 0 : index
    %23 = vector.load %arg3[%c0_9, %c0_10] : memref<1x128xf32, #tpu.memory_space<vmem>>, vector<1x128xf32>
    %24 = vector.broadcast %23 : vector<1x128xf32> to vector<10x128xf32>
    %25 = arith.mulf %22, %24 : vector<10x128xf32>
    %c0_11 = arith.constant 0 : index
    %c0_12 = arith.constant 0 : index
    %26 = vector.load %arg4[%c0_11, %c0_12] : memref<1x128xf32, #tpu.memory_space<vmem>>, vector<1x128xf32>
    %27 = vector.broadcast %26 : vector<1x128xf32> to vector<10x128xf32>
    %28 = arith.addf %25, %27 : vector<10x128xf32>
    %29 = arith.truncf %28 : vector<10x128xf32> to vector<10x128xbf16>
    %c0_13 = arith.constant 0 : index
    %c0_14 = arith.constant 0 : index
    %30 = vector.load %arg5[%c0_13, %c0_14] : memref<128x64xbf16, #tpu.memory_space<vmem>>, vector<128x64xbf16>
    %cst_15 = arith.constant dense<0.000000e+00> : vector<10x64xf32>
    %31 = tpu.matmul %29, %30, %cst_15 {dimension_numbers = #tpu.dot_dimension_numbers<[1], [0], [0], [1], [0, 0, 1, 1], [], []>} : vector<10x128xbf16>, vector<128x64xbf16>, vector<10x64xf32> -> vector<10x64xf32>
    %c0_16 = arith.constant 0 : index
    %c0_17 = arith.constant 0 : index
    %32 = vector.load %arg6[%c0_16, %c0_17] : memref<1x64xf32, #tpu.memory_space<vmem>>, vector<1x64xf32>
    %33 = vector.broadcast %32 : vector<1x64xf32> to vector<10x64xf32>
    %34 = arith.addf %31, %33 : vector<10x64xf32>
    %cst_18 = arith.constant 0.000000e+00 : f32
    %35 = vector.broadcast %cst_18 : f32 to vector<10x64xf32>
    %36 = arith.maximumf %34, %35 : vector<10x64xf32>
    %37 = arith.truncf %36 : vector<10x64xf32> to vector<10x64xbf16>
    %c0_19 = arith.constant 0 : index
    %c0_20 = arith.constant 0 : index
    %38 = vector.load %arg7[%c0_19, %c0_20] : memref<64x128xbf16, #tpu.memory_space<vmem>>, vector<64x128xbf16>
    %cst_21 = arith.constant dense<0.000000e+00> : vector<10x128xf32>
    %39 = tpu.matmul %37, %38, %cst_21 {dimension_numbers = #tpu.dot_dimension_numbers<[1], [0], [0], [1], [0, 0, 1, 1], [], []>} : vector<10x64xbf16>, vector<64x128xbf16>, vector<10x128xf32> -> vector<10x128xf32>
    %c0_22 = arith.constant 0 : index
    %c0_23 = arith.constant 0 : index
    %40 = vector.load %arg8[%c0_22, %c0_23] : memref<1x128xf32, #tpu.memory_space<vmem>>, vector<1x128xf32>
    %41 = vector.broadcast %40 : vector<1x128xf32> to vector<10x128xf32>
    %42 = arith.addf %39, %41 : vector<10x128xf32>
    %43 = arith.addf %0, %42 : vector<10x128xf32>
    %c0_24 = arith.constant 0 : index
    %c0_25 = arith.constant 0 : index
    %44 = vector.load %arg9[%c0_24, %c0_25] : memref<10x128xf32, #tpu.memory_space<vmem>>, vector<10x128xf32>
    tpu.vector_store %arg9[%c0_24, %c0_25], %43 {strides = array<i32>} : memref<10x128xf32, #tpu.memory_space<vmem>>, vector<10x128xf32>,
    return
  }
  func.func @transform_0(%arg0: i32) -> (i32, i32) {
    %c0_i32 = arith.constant 0 : i32
    %c0_i32_0 = arith.constant 0 : i32
    return %arg0, %c0_i32 : i32, i32
  }
  func.func @transform_1(%arg0: i32) -> (i32, i32) {
    %c0_i32 = arith.constant 0 : i32
    %c0_i32_0 = arith.constant 0 : i32
    %c0_i32_1 = arith.constant 0 : i32
    return %c0_i32, %c0_i32_0 : i32, i32
  }
  func.func @transform_2(%arg0: i32) -> (i32, i32) {
    %c0_i32 = arith.constant 0 : i32
    %c0_i32_0 = arith.constant 0 : i32
    %c0_i32_1 = arith.constant 0 : i32
    return %c0_i32, %c0_i32_0 : i32, i32
  }
  func.func @transform_3(%arg0: i32) -> (i32, i32) {
    %c0_i32 = arith.constant 0 : i32
    %c0_i32_0 = arith.constant 0 : i32
    %c0_i32_1 = arith.constant 0 : i32
    return %c0_i32, %c0_i32_0 : i32, i32
  }
  func.func @transform_4(%arg0: i32) -> (i32, i32) {
    %c0_i32 = arith.constant 0 : i32
    %c0_i32_0 = arith.constant 0 : i32
    %c0_i32_1 = arith.constant 0 : i32
    return %c0_i32, %c0_i32_0 : i32, i32
  }
  func.func @transform_5(%arg0: i32) -> (i32, i32) {
    %c0_i32 = arith.constant 0 : i32
    %c0_i32_0 = arith.constant 0 : i32
    %c0_i32_1 = arith.constant 0 : i32
    return %c0_i32, %c0_i32_0 : i32, i32
  }
  func.func @transform_6(%arg0: i32) -> (i32, i32) {
    %c0_i32 = arith.constant 0 : i32
    %c0_i32_0 = arith.constant 0 : i32
    %c0_i32_1 = arith.constant 0 : i32
    return %c0_i32, %c0_i32_0 : i32, i32
  }
  func.func @transform_7(%arg0: i32) -> (i32, i32) {
    %c0_i32 = arith.constant 0 : i32
    %c0_i32_0 = arith.constant 0 : i32
    %c0_i32_1 = arith.constant 0 : i32
    return %c0_i32, %c0_i32_0 : i32, i32
  }
  func.func @transform_8(%arg0: i32) -> (i32, i32) {
    %c0_i32 = arith.constant 0 : i32
    %c0_i32_0 = arith.constant 0 : i32
    return %arg0, %c0_i32 : i32, i32
  }
}

module attributes {stable_mosaic.version = 11 : i64} {
  func.func @_ln_matmul_kernel(%arg0: i32, %arg1: memref<8x128xf32, #tpu.memory_space<vmem>>, %arg2: memref<1x128xf32, #tpu.memory_space<vmem>>, %arg3: memref<1x128xf32, #tpu.memory_space<vmem>>, %arg4: memref<1x128xf32, #tpu.memory_space<vmem>>, %arg5: memref<128x384xbf16, #tpu.memory_space<vmem>>, %arg6: memref<1x384xf32, #tpu.memory_space<vmem>>, %arg7: memref<8x384xbf16, #tpu.memory_space<vmem>>) attributes {dimension_semantics = [#tpu.dimension_semantics<parallel>], iteration_bounds = array<i64: 1>, scalar_prefetch = 0 : i64, scratch_operands = 0 : i64, tpu.core_type = #tpu.core_type<tc>, window_params = [{transform_indices = @transform_0, window_bounds = array<i64: 8, 128>}, {pipeline_mode = #tpu.pipeline_mode<synchronous>, transform_indices = @transform_1, window_bounds = array<i64: 1, 128>}, {pipeline_mode = #tpu.pipeline_mode<synchronous>, transform_indices = @transform_2, window_bounds = array<i64: 1, 128>}, {pipeline_mode = #tpu.pipeline_mode<synchronous>, transform_indices = @transform_3, window_bounds = array<i64: 1, 128>}, {pipeline_mode = #tpu.pipeline_mode<synchronous>, transform_indices = @transform_4, window_bounds = array<i64: 128, 384>}, {pipeline_mode = #tpu.pipeline_mode<synchronous>, transform_indices = @transform_5, window_bounds = array<i64: 1, 384>}, {transform_indices = @transform_6, window_bounds = array<i64: 8, 384>}]} {
    %c0 = arith.constant 0 : index
    %c0_0 = arith.constant 0 : index
    %0 = vector.load %arg1[%c0, %c0_0] : memref<8x128xf32, #tpu.memory_space<vmem>>, vector<8x128xf32>
    %c0_1 = arith.constant 0 : index
    %c0_2 = arith.constant 0 : index
    %1 = vector.load %arg2[%c0_1, %c0_2] : memref<1x128xf32, #tpu.memory_space<vmem>>, vector<1x128xf32>
    %2 = vector.broadcast %1 : vector<1x128xf32> to vector<8x128xf32>
    %3 = arith.mulf %0, %2 : vector<8x128xf32>
    %cst = arith.constant dense<0.000000e+00> : vector<8xf32>
    %4 = vector.multi_reduction <add>, %3, %cst [1] : vector<8x128xf32> to vector<8xf32>
    %5 = vector.shape_cast %4 : vector<8xf32> to vector<8x1xf32>
    %cst_3 = arith.constant 3.125000e-02 : f32
    %6 = vector.broadcast %cst_3 : f32 to vector<8x1xf32>
    %7 = arith.mulf %5, %6 : vector<8x1xf32>
    %8 = vector.broadcast %7 : vector<8x1xf32> to vector<8x128xf32>
    %9 = arith.subf %3, %8 : vector<8x128xf32>
    %c0_4 = arith.constant 0 : index
    %c0_5 = arith.constant 0 : index
    %10 = vector.load %arg2[%c0_4, %c0_5] : memref<1x128xf32, #tpu.memory_space<vmem>>, vector<1x128xf32>
    %11 = vector.broadcast %10 : vector<1x128xf32> to vector<8x128xf32>
    %12 = arith.mulf %9, %11 : vector<8x128xf32>
    %13 = arith.mulf %12, %12 : vector<8x128xf32>
    %cst_6 = arith.constant dense<0.000000e+00> : vector<8xf32>
    %14 = vector.multi_reduction <add>, %13, %cst_6 [1] : vector<8x128xf32> to vector<8xf32>
    %15 = vector.shape_cast %14 : vector<8xf32> to vector<8x1xf32>
    %cst_7 = arith.constant 3.125000e-02 : f32
    %16 = vector.broadcast %cst_7 : f32 to vector<8x1xf32>
    %17 = arith.mulf %15, %16 : vector<8x1xf32>
    %cst_8 = arith.constant 9.99999974E-6 : f32
    %18 = vector.broadcast %cst_8 : f32 to vector<8x1xf32>
    %19 = arith.addf %17, %18 : vector<8x1xf32>
    %20 = math.rsqrt %19 : vector<8x1xf32>
    %21 = vector.broadcast %20 : vector<8x1xf32> to vector<8x128xf32>
    %22 = arith.mulf %12, %21 : vector<8x128xf32>
    %c0_9 = arith.constant 0 : index
    %c0_10 = arith.constant 0 : index
    %23 = vector.load %arg3[%c0_9, %c0_10] : memref<1x128xf32, #tpu.memory_space<vmem>>, vector<1x128xf32>
    %24 = vector.broadcast %23 : vector<1x128xf32> to vector<8x128xf32>
    %25 = arith.mulf %22, %24 : vector<8x128xf32>
    %c0_11 = arith.constant 0 : index
    %c0_12 = arith.constant 0 : index
    %26 = vector.load %arg4[%c0_11, %c0_12] : memref<1x128xf32, #tpu.memory_space<vmem>>, vector<1x128xf32>
    %27 = vector.broadcast %26 : vector<1x128xf32> to vector<8x128xf32>
    %28 = arith.addf %25, %27 : vector<8x128xf32>
    %29 = arith.truncf %28 : vector<8x128xf32> to vector<8x128xbf16>
    %c0_13 = arith.constant 0 : index
    %c0_14 = arith.constant 0 : index
    %30 = vector.load %arg5[%c0_13, %c0_14] : memref<128x384xbf16, #tpu.memory_space<vmem>>, vector<128x384xbf16>
    %cst_15 = arith.constant dense<0.000000e+00> : vector<8x384xf32>
    %31 = tpu.matmul %29, %30, %cst_15 {dimension_numbers = #tpu.dot_dimension_numbers<[1], [0], [0], [1], [0, 0, 1, 1], [], []>} : vector<8x128xbf16>, vector<128x384xbf16>, vector<8x384xf32> -> vector<8x384xf32>
    %c0_16 = arith.constant 0 : index
    %c0_17 = arith.constant 0 : index
    %32 = vector.load %arg6[%c0_16, %c0_17] : memref<1x384xf32, #tpu.memory_space<vmem>>, vector<1x384xf32>
    %33 = vector.broadcast %32 : vector<1x384xf32> to vector<8x384xf32>
    %34 = arith.addf %31, %33 : vector<8x384xf32>
    %35 = arith.truncf %34 : vector<8x384xf32> to vector<8x384xbf16>
    %c0_18 = arith.constant 0 : index
    %c0_19 = arith.constant 0 : index
    %36 = vector.load %arg7[%c0_18, %c0_19] : memref<8x384xbf16, #tpu.memory_space<vmem>>, vector<8x384xbf16>
    tpu.vector_store %arg7[%c0_18, %c0_19], %35 {strides = array<i32>} : memref<8x384xbf16, #tpu.memory_space<vmem>>, vector<8x384xbf16>,
    return
  }
  func.func @transform_0(%arg0: i32) -> (i32, i32) {
    %c0_i32 = arith.constant 0 : i32
    %c0_i32_0 = arith.constant 0 : i32
    return %arg0, %c0_i32 : i32, i32
  }
  func.func @transform_1(%arg0: i32) -> (i32, i32) {
    %c0_i32 = arith.constant 0 : i32
    %c0_i32_0 = arith.constant 0 : i32
    %c0_i32_1 = arith.constant 0 : i32
    return %c0_i32, %c0_i32_0 : i32, i32
  }
  func.func @transform_2(%arg0: i32) -> (i32, i32) {
    %c0_i32 = arith.constant 0 : i32
    %c0_i32_0 = arith.constant 0 : i32
    %c0_i32_1 = arith.constant 0 : i32
    return %c0_i32, %c0_i32_0 : i32, i32
  }
  func.func @transform_3(%arg0: i32) -> (i32, i32) {
    %c0_i32 = arith.constant 0 : i32
    %c0_i32_0 = arith.constant 0 : i32
    %c0_i32_1 = arith.constant 0 : i32
    return %c0_i32, %c0_i32_0 : i32, i32
  }
  func.func @transform_4(%arg0: i32) -> (i32, i32) {
    %c0_i32 = arith.constant 0 : i32
    %c0_i32_0 = arith.constant 0 : i32
    %c0_i32_1 = arith.constant 0 : i32
    return %c0_i32, %c0_i32_0 : i32, i32
  }
  func.func @transform_5(%arg0: i32) -> (i32, i32) {
    %c0_i32 = arith.constant 0 : i32
    %c0_i32_0 = arith.constant 0 : i32
    %c0_i32_1 = arith.constant 0 : i32
    return %c0_i32, %c0_i32_0 : i32, i32
  }
  func.func @transform_6(%arg0: i32) -> (i32, i32) {
    %c0_i32 = arith.constant 0 : i32
    %c0_i32_0 = arith.constant 0 : i32
    return %arg0, %c0_i32 : i32, i32
  }
}

</mosaic_0001>

<llo_original>
// kernel: lpgnn_layer_fwd.8
$region0: #{lpgnn_layer_fwd.8}
  #allocation0 [shape = 'u32[]', space=smem, size = 0x4, offset = 0x4, fixed_abs, tag = 'smem constant byte address 0x4 - core index']
  #allocation1 [shape = 'u32[144,128]{1,0:T(1,128)}', space=vmem, size = 0x12000, scoped, tag = 'internal scratch']
  %s0 = inlined_call_operand.vmem [shape: f32[8,128], index: 0, kind: input, shape index: {}]
  %s1 = inlined_call_operand.vmem [shape: f32[1,128], index: 1, kind: input, shape index: {}]
  %s2 = inlined_call_operand.vmem [shape: f32[1,128], index: 2, kind: input, shape index: {}]
  %s3 = inlined_call_operand.vmem [shape: f32[1,128], index: 3, kind: input, shape index: {}]
  %s4 = inlined_call_operand.hbm [shape: bf16[128,384], index: 4, kind: input, shape index: {}]
  %s5 = inlined_call_operand.vmem [shape: f32[1,384], index: 5, kind: input, shape index: {}]
  %s6 = inlined_call_operand.vmem [shape: bf16[8,384], index: 6, kind: output, shape index: {}]
  %s7 = sld [smem:[#allocation0]]
  $region38: #{lpgnn_layer_fwd.8} parent=0
    _
  %s9 = ssub.s32 1, %s7
  %s10 = scalar_select 0, %s9, %s7
  $region1: #{lpgnn_layer_fwd.8} parent=0
    #allocation2 [shape = 'u8[98304]{0}', space=vmem, size = 0x18000, scoped, tag = 'input window, operand 4, single buffered']
    #allocation3 [shape = 's32[1]{0}', space=sflag, size = 0x4, scoped, tag = 'scoped memory for lpgnn_layer_fwd.8']
    %11 = vsyncpa [#allocation3], 0
    // Predicated region
    $region2: #{lpgnn_layer_fwd.8} parent=1 // pred_check
      _
    $region3: #{lpgnn_layer_fwd.8} parent=1 // pred_check_branch
      %13 = sbr.rel (0) target = $region5
    $region4: #{lpgnn_layer_fwd.8} parent=1 // pred_region
      _
    $region5: #{lpgnn_layer_fwd.8} parent=1 // pred_fallthru
      _
    // Predicated region
    $region6: #{lpgnn_layer_fwd.8} parent=1 // pred_check
      _
    $region7: #{lpgnn_layer_fwd.8} parent=1 // pred_check_branch
      %15 = sbr.rel (0) target = $region9
    $region8: #{lpgnn_layer_fwd.8} parent=1 // pred_region
      _
    $region9: #{lpgnn_layer_fwd.8} parent=1 // pred_fallthru
      _
    // Predicated region
    $region10: #{lpgnn_layer_fwd.8} parent=1 // pred_check
      _
    $region11: #{lpgnn_layer_fwd.8} parent=1 // pred_check_branch
      %17 = sbr.rel (0) target = $region13
    $region12: #{lpgnn_layer_fwd.8} parent=1 // pred_region
      _
    $region13: #{lpgnn_layer_fwd.8} parent=1 // pred_fallthru
      _
    // Predicated region
    $region14: #{lpgnn_layer_fwd.8} parent=1 // pred_check
      _
    $region15: #{lpgnn_layer_fwd.8} parent=1 // pred_check_branch
      %19 = sbr.rel (0) target = $region17
    $region16: #{lpgnn_layer_fwd.8} parent=1 // pred_region
      _
    $region17: #{lpgnn_layer_fwd.8} parent=1 // pred_fallthru
      _
    // Predicated region
    $region18: #{lpgnn_layer_fwd.8} parent=1 // pred_check
      _
    $region19: #{lpgnn_layer_fwd.8} parent=1 // pred_check_branch
      %21 = sbr.rel (0) target = $region21
    $region20: #{lpgnn_layer_fwd.8} parent=1 // pred_region
      %s23 = ssub.s32 3072, 3072
      %24 = vsyncadd [#allocation3], %s23
      %s25 = sshll.u32 [#allocation2], 4
      %s26 = int_to_ptr.vmem [resolvable:$true] %s25
      %31 = dma.hbm_to_vmem [thread:$0]  %s4, 3072, %s26, [#allocation3], 192, 192, 12
    $region21: #{lpgnn_layer_fwd.8} parent=1 // pred_fallthru
      _
    // Predicated region
    $region22: #{lpgnn_layer_fwd.8} parent=1 // pred_check
      _
    $region23: #{lpgnn_layer_fwd.8} parent=1 // pred_check_branch
      %33 = sbr.rel (0) target = $region25
    $region24: #{lpgnn_layer_fwd.8} parent=1 // pred_region
      _
    $region25: #{lpgnn_layer_fwd.8} parent=1 // pred_fallthru
      _
    // Predicated region
    $region26: #{lpgnn_layer_fwd.8} parent=1 // pred_check
      _
    $region27: #{lpgnn_layer_fwd.8} parent=1 // pred_check_branch
      %35 = sbr.rel (0) target = $region29
    $region28: #{lpgnn_layer_fwd.8} parent=1 // pred_region
      %36 = dma.done [#allocation3], 3072
    $region29: #{lpgnn_layer_fwd.8} parent=1 // pred_fallthru
      _
    %v38 = vld [vmem:[%s0] sm:$0xff]
    %v39 = vld [vmem:[%s1] sm:$0x1]
    %v41 = vlaneseq
    %v42 = vshrl.u32 %v41, 7
    %v43 = vsub.s32 0, %v42
    %v44 = vrot.slane %v39, %v43
    %v46 = vmul.f32 %v38, %v44
    %47 = vadd.xlane.f32.xlu0 %v46
    %v48 = vpop.xlane.xlu0 %47
    %v49 = vmul.f32 %v48, 0.03125
    %v50 = vsub.f32 %v46, %v49
    %v51 = vmul.f32 %v50, %v44
    %v52 = vmul.f32 %v51, %v51
    %53 = vadd.xlane.f32.xlu0 %v52
    %v54 = vpop.xlane.xlu0 %53
    %v55 = vmul.f32 %v54, 0.03125
    %v56 = vadd.f32 %v55, 1e-05
    %v57 = vrsqrt.pop %v56
    %v58 = vmul.f32 %v51, %v57
    %v59 = vld [vmem:[%s2] sm:$0x1]
    %v61 = vlaneseq
    %v62 = vshrl.u32 %v61, 7
    %v63 = vsub.s32 0, %v62
    %v64 = vrot.slane %v59, %v63
    %v66 = vmul.f32 %v58, %v64
    %v67 = vld [vmem:[%s3] sm:$0x1]
    %v69 = vlaneseq
    %v70 = vshrl.u32 %v69, 7
    %v71 = vsub.s32 0, %v70
    %v72 = vrot.slane %v67, %v71
    %v74 = vadd.f32 %v66, %v72
    %v75 = vpack.c.bf16 %v74, %v74
    %v76 = vld [vmem:[#allocation2] sm:$0xff]
    %v77 = vld [vmem:[#allocation2 + $0x8] sm:$0xf]
    %v78 = vld [vmem:[#allocation2 + $0xc] sm:$0xff]
    %v79 = vld [vmem:[#allocation2 + $0x14] sm:$0xf]
    %v80 = vld [vmem:[#allocation2 + $0x18] sm:$0xff]
    %v81 = vld [vmem:[#allocation2 + $0x20] sm:$0xf]
    %v82 = vld [vmem:[#allocation2 + $0x24] sm:$0xff]
    %v83 = vld [vmem:[#allocation2 + $0x2c] sm:$0xf]
    %v84 = vld [vmem:[#allocation2 + $0x30] sm:$0xff]
    %v85 = vld [vmem:[#allocation2 + $0x38] sm:$0xf]
    %v86 = vld [vmem:[#allocation2 + $0x3c] sm:$0xff]
    %v87 = vld [vmem:[#allocation2 + $0x44] sm:$0xf]
    %v88 = vld [vmem:[#allocation2 + $0x48] sm:$0xff]
    %v89 = vld [vmem:[#allocation2 + $0x50] sm:$0xf]
    %v90 = vld [vmem:[#allocation2 + $0x54] sm:$0xff]
    %v91 = vld [vmem:[#allocation2 + $0x5c] sm:$0xf]
    %v92 = vld [vmem:[#allocation2 + $0x60] sm:$0xff]
    %v93 = vld [vmem:[#allocation2 + $0x68] sm:$0xf]
    %v94 = vld [vmem:[#allocation2 + $0x6c] sm:$0xff]
    %v95 = vld [vmem:[#allocation2 + $0x74] sm:$0xf]
    %v96 = vld [vmem:[#allocation2 + $0x78] sm:$0xff]
    %v97 = vld [vmem:[#allocation2 + $0x80] sm:$0xf]
    %v98 = vld [vmem:[#allocation2 + $0x84] sm:$0xff]
    %v99 = vld [vmem:[#allocation2 + $0x8c] sm:$0xf]
    %v100 = vld [vmem:[#allocation2 + $0x90] sm:$0xff]
    %v101 = vld [vmem:[#allocation2 + $0x98] sm:$0xf]
    %v102 = vld [vmem:[#allocation2 + $0x9c] sm:$0xff]
    %v103 = vld [vmem:[#allocation2 + $0xa4] sm:$0xf]
    %v104 = vld [vmem:[#allocation2 + $0xa8] sm:$0xff]
    %v105 = vld [vmem:[#allocation2 + $0xb0] sm:$0xf]
    %v106 = vld [vmem:[#allocation2 + $0xb4] sm:$0xff]
    %v107 = vld [vmem:[#allocation2 + $0xbc] sm:$0xf]
    %v108 = vld [vmem:[%s5] sm:$0x7]
    %v110 = vlaneseq
    %v111 = vshrl.u32 %v110, 7
    %v112 = vsub.s32 0, %v111
    %v113 = vrot.slane %v108, %v112
    %v114 = vlaneseq
    %v115 = vshrl.u32 %v114, 7
    %v116 = vsub.s32 1, %v115
    %v117 = vrot.slane %v108, %v116
    %v118 = vlaneseq
    %v119 = vshrl.u32 %v118, 7
    %v120 = vsub.s32 2, %v119
    %v121 = vrot.slane %v108, %v120
    %v157 = vunpack.c.l.b16 %v76
    %v158 = vunpack.c.h.b16 %v76
    %v159 = vunpack.c.l.b16 %v77
    %v160 = vunpack.c.l.b16 %v78
    %v161 = vunpack.c.h.b16 %v78
    %v162 = vunpack.c.l.b16 %v79
    %v163 = vunpack.c.l.b16 %v80
    %v164 = vunpack.c.h.b16 %v80
    %v165 = vunpack.c.l.b16 %v81
    %v166 = vunpack.c.l.b16 %v82
    %v167 = vunpack.c.h.b16 %v82
    %v168 = vunpack.c.l.b16 %v83
    %v169 = vunpack.c.l.b16 %v84
    %v170 = vunpack.c.h.b16 %v84
    %v171 = vunpack.c.l.b16 %v85
    %v172 = vunpack.c.l.b16 %v86
    %v173 = vunpack.c.h.b16 %v86
    %v174 = vunpack.c.l.b16 %v87
    %v175 = vunpack.c.l.b16 %v88
    %v176 = vunpack.c.h.b16 %v88
    %v177 = vunpack.c.l.b16 %v89
    %v178 = vunpack.c.l.b16 %v90
    %v179 = vunpack.c.h.b16 %v90
    %v180 = vunpack.c.l.b16 %v91
    %v181 = vunpack.c.l.b16 %v92
    %v182 = vunpack.c.h.b16 %v92
    %v183 = vunpack.c.l.b16 %v93
    %v184 = vunpack.c.l.b16 %v94
    %v185 = vunpack.c.h.b16 %v94
    %v186 = vunpack.c.l.b16 %v95
    %v187 = vunpack.c.l.b16 %v96
    %v188 = vunpack.c.h.b16 %v96
    %v189 = vunpack.c.l.b16 %v97
    %v190 = vunpack.c.l.b16 %v98
    %v191 = vunpack.c.h.b16 %v98
    %v192 = vunpack.c.l.b16 %v99
    %v193 = vunpack.c.l.b16 %v100
    %v194 = vunpack.c.h.b16 %v100
    %v195 = vunpack.c.l.b16 %v101
    %v196 = vunpack.c.l.b16 %v102
    %v197 = vunpack.c.h.b16 %v102
    %v198 = vunpack.c.l.b16 %v103
    %v199 = vunpack.c.l.b16 %v104
    %v200 = vunpack.c.h.b16 %v104
    %v201 = vunpack.c.l.b16 %v105
    %v202 = vunpack.c.l.b16 %v106
    %v203 = vunpack.c.h.b16 %v106
    %v204 = vunpack.c.l.b16 %v107
    %v205 = vpack.c.b16 %v160, %v157
    %v206 = vpack.c.b16 %v161, %v158
    %v207 = vpack.c.b16 %v162, %v159
    %v208 = vpack.c.b16 %v166, %v163
    %v209 = vpack.c.b16 %v167, %v164
    %v210 = vpack.c.b16 %v168, %v165
    %v211 = vpack.c.b16 %v172, %v169
    %v212 = vpack.c.b16 %v173, %v170
    %v213 = vpack.c.b16 %v174, %v171
    %v214 = vpack.c.b16 %v178, %v175
    %v215 = vpack.c.b16 %v179, %v176
    %v216 = vpack.c.b16 %v180, %v177
    %v217 = vpack.c.b16 %v184, %v181
    %v218 = vpack.c.b16 %v185, %v182
    %v219 = vpack.c.b16 %v186, %v183
    %v220 = vpack.c.b16 %v190, %v187
    %v221 = vpack.c.b16 %v191, %v188
    %v222 = vpack.c.b16 %v192, %v189
    %v223 = vpack.c.b16 %v196, %v193
    %v224 = vpack.c.b16 %v197, %v194
    %v225 = vpack.c.b16 %v198, %v195
    %v226 = vpack.c.b16 %v202, %v199
    %v227 = vpack.c.b16 %v203, %v200
    %v228 = vpack.c.b16 %v204, %v201
    %253 = vmatprep.subr.bf16.mxu0 %v206
    %254 = vmatpush1.bf16.msra.mxu0 %v205
    %255 = vmatprep.subr.bf16.mxu0 %v209
    %256 = vmatpush1.bf16.msra.mxu0 %v208
    %257 = vmatprep.subr.bf16.mxu0 %v212
    %258 = vmatpush1.bf16.msra.mxu0 %v211
    %259 = vmatprep.subr.bf16.mxu0 %v215
    %260 = vmatpush1.bf16.msra.mxu0 %v214
    %261 = vmatprep.subr.bf16.mxu0 %v218
    %262 = vmatpush1.bf16.msra.mxu0 %v217
    %263 = vmatprep.subr.bf16.mxu0 %v221
    %264 = vmatpush1.bf16.msra.mxu0 %v220
    %265 = vmatprep.subr.bf16.mxu0 %v224
    %266 = vmatpush1.bf16.msra.mxu0 %v223
    %267 = vmatprep.subr.bf16.mxu0 %v227
    %268 = vmatpush1.bf16.msra.mxu0 %v226
    %269 = vmatprep.subr.bf16.mxu0 0
    %270 = vmatpush1.bf16.msra.mxu0 0
    %271 = vmatprep.subr.bf16.mxu0 0
    %272 = vmatpush1.bf16.msra.mxu0 0
    %273 = vmatprep.subr.bf16.mxu0 0
    %274 = vmatpush1.bf16.msra.mxu0 0
    %275 = vmatprep.subr.bf16.mxu0 0
    %276 = vmatpush1.bf16.msra.mxu0 0
    %277 = vmatprep.subr.bf16.mxu0 0
    %278 = vmatpush1.bf16.msra.mxu0 0
    %279 = vmatprep.subr.bf16.mxu0 0
    %280 = vmatpush1.bf16.msra.mxu0 0
    %281 = vmatprep.subr.bf16.mxu0 0
    %282 = vmatpush1.bf16.msra.mxu0 0
    %283 = vmatprep.subr.bf16.mxu0 0
    %284 = vmatpush1.bf16.msra.mxu0 0
    %285 = vmatprep.mubr.bf16.mxu0 0
    %286 = vmatmul.mubr.bf16.gmra.mrb[0].mxu0 %v75
    %v287 = vpop.f32.mrb[0].mxu0
    %v288 = vadd.f32 %v113, %v287
    %v289 = vpop.f32.mrb[0].mxu0
    %v290 = vadd.f32 %v117, %v289
    %v291 = vpop.f32.mrb[0].mxu0
    %v292 = vpop.f32.mrb[0].mxu0
    %293 = vdwg.mxu0
    %294 = vmatprep.subr.bf16.mxu0 0
    %295 = vmatpush1.bf16.msra.mxu0 %v207
    %296 = vmatprep.subr.bf16.mxu0 0
    %297 = vmatpush1.bf16.msra.mxu0 %v210
    %298 = vmatprep.subr.bf16.mxu0 0
    %299 = vmatpush1.bf16.msra.mxu0 %v213
    %300 = vmatprep.subr.bf16.mxu0 0
    %301 = vmatpush1.bf16.msra.mxu0 %v216
    %302 = vmatprep.subr.bf16.mxu0 0
    %303 = vmatpush1.bf16.msra.mxu0 %v219
    %304 = vmatprep.subr.bf16.mxu0 0
    %305 = vmatpush1.bf16.msra.mxu0 %v222
    %306 = vmatprep.subr.bf16.mxu0 0
    %307 = vmatpush1.bf16.msra.mxu0 %v225
    %308 = vmatprep.subr.bf16.mxu0 0
    %309 = vmatpush1.bf16.msra.mxu0 %v228
    %310 = vmatprep.subr.bf16.mxu0 0
    %311 = vmatpush1.bf16.msra.mxu0 0
    %312 = vmatprep.subr.bf16.mxu0 0
    %313 = vmatpush1.bf16.msra.mxu0 0
    %314 = vmatprep.subr.bf16.mxu0 0
    %315 = vmatpush1.bf16.msra.mxu0 0
    %316 = vmatprep.subr.bf16.mxu0 0
    %317 = vmatpush1.bf16.msra.mxu0 0
    %318 = vmatprep.subr.bf16.mxu0 0
    %319 = vmatpush1.bf16.msra.mxu0 0
    %320 = vmatprep.subr.bf16.mxu0 0
    %321 = vmatpush1.bf16.msra.mxu0 0
    %322 = vmatprep.subr.bf16.mxu0 0
    %323 = vmatpush1.bf16.msra.mxu0 0
    %324 = vmatprep.subr.bf16.mxu0 0
    %325 = vmatpush1.bf16.msra.mxu0 0
    %326 = vmatprep.mubr.bf16.mxu0 0
    %327 = vmatmul.mubr.bf16.gmra.mrb[0].mxu0 %v75
    %v328 = vpop.f32.mrb[0].mxu0
    %v329 = vadd.f32 %v121, %v328
    %v330 = vpop.f32.mrb[0].mxu0
    %v331 = vpop.f32.mrb[0].mxu0
    %v332 = vpop.f32.mrb[0].mxu0
    %333 = vdwg.mxu0
    %v334 = vpack.c.bf16 %v288, %v288
    %v335 = vpack.c.bf16 %v290, %v290
    %v336 = vpack.c.bf16 %v329, %v329
    %v340 = vunpack.c.l.b16 %v334
    %v341 = vunpack.c.l.b16 %v335
    %v342 = vunpack.c.l.b16 %v336
    %v343 = vpack.c.b16 %v341, %v340
    %v344 = vpack.c.b16 %v342, %v342
    %347 = vst [vmem:[%s6] sm:$0xff] %v343
    %348 = vst [vmem:[%s6 + $0x8] sm:$0xf] %v344
    // Predicated region
    $region30: #{lpgnn_layer_fwd.8} parent=1 // pred_check
      _
    $region31: #{lpgnn_layer_fwd.8} parent=1 // pred_check_branch
      %350 = sbr.rel (0) target = $region33
    $region32: #{lpgnn_layer_fwd.8} parent=1 // pred_region
      _
    $region33: #{lpgnn_layer_fwd.8} parent=1 // pred_fallthru
      _
    // Predicated region
    $region34: #{lpgnn_layer_fwd.8} parent=1 // pred_check
      _
    $region35: #{lpgnn_layer_fwd.8} parent=1 // pred_check_branch
      %352 = sbr.rel (0) target = $region37
    $region36: #{lpgnn_layer_fwd.8} parent=1 // pred_region
      _
    $region37: #{lpgnn_layer_fwd.8} parent=1 // pred_fallthru
      _
    %353 = vsyncpa [#allocation3], 1

// kernel: lpgnn_layer_fwd.9
$region0: #{lpgnn_layer_fwd.9}
  #allocation0 [shape = 'u32[]', space=smem, size = 0x4, offset = 0x4, fixed_abs, tag = 'smem constant byte address 0x4 - core index']
  #allocation1 [shape = 'u32[144,128]{1,0:T(1,128)}', space=vmem, size = 0x12000, scoped, tag = 'internal scratch']
  %s0 = inlined_call_operand.vmem [shape: f32[10,128], index: 0, kind: input, shape index: {}]
  %s1 = inlined_call_operand.vmem [shape: f32[1,128], index: 1, kind: input, shape index: {}]
  %s2 = inlined_call_operand.vmem [shape: f32[1,128], index: 2, kind: input, shape index: {}]
  %s3 = inlined_call_operand.vmem [shape: f32[1,128], index: 3, kind: input, shape index: {}]
  %s4 = inlined_call_operand.vmem [shape: bf16[128,384], index: 4, kind: input, shape index: {}]
  %s5 = inlined_call_operand.vmem [shape: f32[1,384], index: 5, kind: input, shape index: {}]
  %s6 = inlined_call_operand.vmem [shape: bf16[10,384], index: 6, kind: output, shape index: {}]
  %s7 = sld [smem:[#allocation0]]
  $region34: #{lpgnn_layer_fwd.9} parent=0
    _
  %s9 = ssub.s32 1, %s7
  %s10 = scalar_select 0, %s9, %s7
  // Predicated region
  $region2: #{lpgnn_layer_fwd.9} parent=0 // pred_check
    _
  $region3: #{lpgnn_layer_fwd.9} parent=0 // pred_check_branch
    %12 = sbr.rel (0) target = $region5
  $region4: #{lpgnn_layer_fwd.9} parent=0 // pred_region
    _
  $region5: #{lpgnn_layer_fwd.9} parent=0 // pred_fallthru
    _
  // Predicated region
  $region6: #{lpgnn_layer_fwd.9} parent=0 // pred_check
    _
  $region7: #{lpgnn_layer_fwd.9} parent=0 // pred_check_branch
    %14 = sbr.rel (0) target = $region9
  $region8: #{lpgnn_layer_fwd.9} parent=0 // pred_region
    _
  $region9: #{lpgnn_layer_fwd.9} parent=0 // pred_fallthru
    _
  // Predicated region
  $region10: #{lpgnn_layer_fwd.9} parent=0 // pred_check
    _
  $region11: #{lpgnn_layer_fwd.9} parent=0 // pred_check_branch
    %16 = sbr.rel (0) target = $region13
  $region12: #{lpgnn_layer_fwd.9} parent=0 // pred_region
    _
  $region13: #{lpgnn_layer_fwd.9} parent=0 // pred_fallthru
    _
  // Predicated region
  $region14: #{lpgnn_layer_fwd.9} parent=0 // pred_check
    _
  $region15: #{lpgnn_layer_fwd.9} parent=0 // pred_check_branch
    %18 = sbr.rel (0) target = $region17
  $region16: #{lpgnn_layer_fwd.9} parent=0 // pred_region
    _
  $region17: #{lpgnn_layer_fwd.9} parent=0 // pred_fallthru
    _
  // Predicated region
  $region18: #{lpgnn_layer_fwd.9} parent=0 // pred_check
    _
  $region19: #{lpgnn_layer_fwd.9} parent=0 // pred_check_branch
    %20 = sbr.rel (0) target = $region21
  $region20: #{lpgnn_layer_fwd.9} parent=0 // pred_region
    _
  $region21: #{lpgnn_layer_fwd.9} parent=0 // pred_fallthru
    _
  // Predicated region
  $region22: #{lpgnn_layer_fwd.9} parent=0 // pred_check
    _
  $region23: #{lpgnn_layer_fwd.9} parent=0 // pred_check_branch
    %22 = sbr.rel (0) target = $region25
  $region24: #{lpgnn_layer_fwd.9} parent=0 // pred_region
    _
  $region25: #{lpgnn_layer_fwd.9} parent=0 // pred_fallthru
    _
  %v24 = vld [vmem:[%s0] sm:$0xff]
  %v25 = vld [vmem:[%s0 + $0x8] sm:$0x3]
  %v26 = vld [vmem:[%s1] sm:$0x1]
  %v28 = vlaneseq
  %v29 = vshrl.u32 %v28, 7
  %v30 = vsub.s32 0, %v29
  %v31 = vrot.slane %v26, %v30
  %v33 = vmul.f32 %v24, %v31
  %v34 = vmul.f32 %v25, %v31
  %35 = vadd.xlane.f32.xlu0 %v33
  %v36 = vpop.xlane.xlu0 %35
  %vm37 = vcmask 1041408
  %v38 = vsel %vm37, %v34, 0.0
  %39 = vadd.xlane.f32.xlu0 %v38
  %v40 = vpop.xlane.xlu0 %39
  %v41 = vmul.f32 %v36, 0.03125
  %v42 = vmul.f32 %v40, 0.03125
  %v43 = vsub.f32 %v33, %v41
  %v44 = vsub.f32 %v34, %v42
  %v45 = vmul.f32 %v43, %v31
  %v46 = vmul.f32 %v44, %v31
  %v47 = vmul.f32 %v45, %v45
  %v48 = vmul.f32 %v46, %v46
  %49 = vadd.xlane.f32.xlu0 %v47
  %v50 = vpop.xlane.xlu0 %49
  %v51 = vsel %vm37, %v48, 0.0
  %52 = vadd.xlane.f32.xlu0 %v51
  %v53 = vpop.xlane.xlu0 %52
  %v54 = vmul.f32 %v50, 0.03125
  %v55 = vmul.f32 %v53, 0.03125
  %v56 = vadd.f32 %v54, 1e-05
  %v57 = vadd.f32 %v55, 1e-05
  %v58 = vrsqrt.pop %v56
  %v59 = vrsqrt.pop %v57
  %v60 = vmul.f32 %v45, %v58
  %v61 = vmul.f32 %v46, %v59
  %v62 = vld [vmem:[%s2] sm:$0x1]
  %v64 = vlaneseq
  %v65 = vshrl.u32 %v64, 7
  %v66 = vsub.s32 0, %v65
  %v67 = vrot.slane %v62, %v66
  %v69 = vmul.f32 %v60, %v67
  %v70 = vmul.f32 %v61, %v67
  %v71 = vld [vmem:[%s3] sm:$0x1]
  %v73 = vlaneseq
  %v74 = vshrl.u32 %v73, 7
  %v75 = vsub.s32 0, %v74
  %v76 = vrot.slane %v71, %v75
  %v78 = vadd.f32 %v69, %v76
  %v79 = vadd.f32 %v70, %v76
  %v80 = vpack.c.bf16 %v79, %v78
  %v81 = vld [vmem:[%s4] sm:$0xff]
  %v82 = vld [vmem:[%s4 + $0x8] sm:$0xf]
  %v83 = vld [vmem:[%s4 + $0xc] sm:$0xff]
  %v84 = vld [vmem:[%s4 + $0x14] sm:$0xf]
  %v85 = vld [vmem:[%s4 + $0x18] sm:$0xff]
  %v86 = vld [vmem:[%s4 + $0x20] sm:$0xf]
  %v87 = vld [vmem:[%s4 + $0x24] sm:$0xff]
  %v88 = vld [vmem:[%s4 + $0x2c] sm:$0xf]
  %v89 = vld [vmem:[%s4 + $0x30] sm:$0xff]
  %v90 = vld [vmem:[%s4 + $0x38] sm:$0xf]
  %v91 = vld [vmem:[%s4 + $0x3c] sm:$0xff]
  %v92 = vld [vmem:[%s4 + $0x44] sm:$0xf]
  %v93 = vld [vmem:[%s4 + $0x48] sm:$0xff]
  %v94 = vld [vmem:[%s4 + $0x50] sm:$0xf]
  %v95 = vld [vmem:[%s4 + $0x54] sm:$0xff]
  %v96 = vld [vmem:[%s4 + $0x5c] sm:$0xf]
  %v97 = vld [vmem:[%s4 + $0x60] sm:$0xff]
  %v98 = vld [vmem:[%s4 + $0x68] sm:$0xf]
  %v99 = vld [vmem:[%s4 + $0x6c] sm:$0xff]
  %v100 = vld [vmem:[%s4 + $0x74] sm:$0xf]
  %v101 = vld [vmem:[%s4 + $0x78] sm:$0xff]
  %v102 = vld [vmem:[%s4 + $0x80] sm:$0xf]
  %v103 = vld [vmem:[%s4 + $0x84] sm:$0xff]
  %v104 = vld [vmem:[%s4 + $0x8c] sm:$0xf]
  %v105 = vld [vmem:[%s4 + $0x90] sm:$0xff]
  %v106 = vld [vmem:[%s4 + $0x98] sm:$0xf]
  %v107 = vld [vmem:[%s4 + $0x9c] sm:$0xff]
  %v108 = vld [vmem:[%s4 + $0xa4] sm:$0xf]
  %v109 = vld [vmem:[%s4 + $0xa8] sm:$0xff]
  %v110 = vld [vmem:[%s4 + $0xb0] sm:$0xf]
  %v111 = vld [vmem:[%s4 + $0xb4] sm:$0xff]
  %v112 = vld [vmem:[%s4 + $0xbc] sm:$0xf]
  %v113 = vld [vmem:[%s5] sm:$0x7]
  %v115 = vlaneseq
  %v116 = vshrl.u32 %v115, 7
  %v117 = vsub.s32 0, %v116
  %v118 = vrot.slane %v113, %v117
  %v119 = vlaneseq
  %v120 = vshrl.u32 %v119, 7
  %v121 = vsub.s32 1, %v120
  %v122 = vrot.slane %v113, %v121
  %v123 = vlaneseq
  %v124 = vshrl.u32 %v123, 7
  %v125 = vsub.s32 2, %v124
  %v126 = vrot.slane %v113, %v125
  %v162 = vunpack.c.l.b16 %v81
  %v163 = vunpack.c.h.b16 %v81
  %v164 = vunpack.c.l.b16 %v82
  %v165 = vunpack.c.l.b16 %v83
  %v166 = vunpack.c.h.b16 %v83
  %v167 = vunpack.c.l.b16 %v84
  %v168 = vunpack.c.l.b16 %v85
  %v169 = vunpack.c.h.b16 %v85
  %v170 = vunpack.c.l.b16 %v86
  %v171 = vunpack.c.l.b16 %v87
  %v172 = vunpack.c.h.b16 %v87
  %v173 = vunpack.c.l.b16 %v88
  %v174 = vunpack.c.l.b16 %v89
  %v175 = vunpack.c.h.b16 %v89
  %v176 = vunpack.c.l.b16 %v90
  %v177 = vunpack.c.l.b16 %v91
  %v178 = vunpack.c.h.b16 %v91
  %v179 = vunpack.c.l.b16 %v92
  %v180 = vunpack.c.l.b16 %v93
  %v181 = vunpack.c.h.b16 %v93
  %v182 = vunpack.c.l.b16 %v94
  %v183 = vunpack.c.l.b16 %v95
  %v184 = vunpack.c.h.b16 %v95
  %v185 = vunpack.c.l.b16 %v96
  %v186 = vunpack.c.l.b16 %v97
  %v187 = vunpack.c.h.b16 %v97
  %v188 = vunpack.c.l.b16 %v98
  %v189 = vunpack.c.l.b16 %v99
  %v190 = vunpack.c.h.b16 %v99
  %v191 = vunpack.c.l.b16 %v100
  %v192 = vunpack.c.l.b16 %v101
  %v193 = vunpack.c.h.b16 %v101
  %v194 = vunpack.c.l.b16 %v102
  %v195 = vunpack.c.l.b16 %v103
  %v196 = vunpack.c.h.b16 %v103
  %v197 = vunpack.c.l.b16 %v104
  %v198 = vunpack.c.l.b16 %v105
  %v199 = vunpack.c.h.b16 %v105
  %v200 = vunpack.c.l.b16 %v106
  %v201 = vunpack.c.l.b16 %v107
  %v202 = vunpack.c.h.b16 %v107
  %v203 = vunpack.c.l.b16 %v108
  %v204 = vunpack.c.l.b16 %v109
  %v205 = vunpack.c.h.b16 %v109
  %v206 = vunpack.c.l.b16 %v110
  %v207 = vunpack.c.l.b16 %v111
  %v208 = vunpack.c.h.b16 %v111
  %v209 = vunpack.c.l.b16 %v112
  %v210 = vpack.c.b16 %v165, %v162
  %v211 = vpack.c.b16 %v166, %v163
  %v212 = vpack.c.b16 %v167, %v164
  %v213 = vpack.c.b16 %v171, %v168
  %v214 = vpack.c.b16 %v172, %v169
  %v215 = vpack.c.b16 %v173, %v170
  %v216 = vpack.c.b16 %v177, %v174
  %v217 = vpack.c.b16 %v178, %v175
  %v218 = vpack.c.b16 %v179, %v176
  %v219 = vpack.c.b16 %v183, %v180
  %v220 = vpack.c.b16 %v184, %v181
  %v221 = vpack.c.b16 %v185, %v182
  %v222 = vpack.c.b16 %v189, %v186
  %v223 = vpack.c.b16 %v190, %v187
  %v224 = vpack.c.b16 %v191, %v188
  %v225 = vpack.c.b16 %v195, %v192
  %v226 = vpack.c.b16 %v196, %v193
  %v227 = vpack.c.b16 %v197, %v194
  %v228 = vpack.c.b16 %v201, %v198
  %v229 = vpack.c.b16 %v202, %v199
  %v230 = vpack.c.b16 %v203, %v200
  %v231 = vpack.c.b16 %v207, %v204
  %v232 = vpack.c.b16 %v208, %v205
  %v233 = vpack.c.b16 %v209, %v206
  %258 = vmatprep.subr.bf16.mxu0 %v211
  %259 = vmatpush1.bf16.msra.mxu0 %v210
  %260 = vmatprep.subr.bf16.mxu0 %v214
  %261 = vmatpush1.bf16.msra.mxu0 %v213
  %262 = vmatprep.subr.bf16.mxu0 %v217
  %263 = vmatpush1.bf16.msra.mxu0 %v216
  %264 = vmatprep.subr.bf16.mxu0 %v220
  %265 = vmatpush1.bf16.msra.mxu0 %v219
  %266 = vmatprep.subr.bf16.mxu0 %v223
  %267 = vmatpush1.bf16.msra.mxu0 %v222
  %268 = vmatprep.subr.bf16.mxu0 %v226
  %269 = vmatpush1.bf16.msra.mxu0 %v225
  %270 = vmatprep.subr.bf16.mxu0 %v229
  %271 = vmatpush1.bf16.msra.mxu0 %v228
  %272 = vmatprep.subr.bf16.mxu0 %v232
  %273 = vmatpush1.bf16.msra.mxu0 %v231
  %274 = vmatprep.subr.bf16.mxu0 0
  %275 = vmatpush1.bf16.msra.mxu0 0
  %276 = vmatprep.subr.bf16.mxu0 0
  %277 = vmatpush1.bf16.msra.mxu0 0
  %278 = vmatprep.subr.bf16.mxu0 0
  %279 = vmatpush1.bf16.msra.mxu0 0
  %280 = vmatprep.subr.bf16.mxu0 0
  %281 = vmatpush1.bf16.msra.mxu0 0
  %282 = vmatprep.subr.bf16.mxu0 0
  %283 = vmatpush1.bf16.msra.mxu0 0
  %284 = vmatprep.subr.bf16.mxu0 0
  %285 = vmatpush1.bf16.msra.mxu0 0
  %286 = vmatprep.subr.bf16.mxu0 0
  %287 = vmatpush1.bf16.msra.mxu0 0
  %288 = vmatprep.subr.bf16.mxu0 0
  %289 = vmatpush1.bf16.msra.mxu0 0
  %290 = vmatprep.mubr.bf16.mxu0 0
  %291 = vmatmul.mubr.bf16.gmra.mrb[0].mxu0 %v80
  %v292 = vpop.f32.mrb[0].mxu0
  %v293 = vadd.f32 %v118, %v292
  %v294 = vpop.f32.mrb[0].mxu0
  %v295 = vadd.f32 %v122, %v294
  %v296 = vpop.f32.mrb[0].mxu0
  %v297 = vadd.f32 %v118, %v296
  %v298 = vpop.f32.mrb[0].mxu0
  %v299 = vadd.f32 %v122, %v298
  %300 = vdwg.mxu0
  %301 = vmatprep.subr.bf16.mxu0 0
  %302 = vmatpush1.bf16.msra.mxu0 %v212
  %303 = vmatprep.subr.bf16.mxu0 0
  %304 = vmatpush1.bf16.msra.mxu0 %v215
  %305 = vmatprep.subr.bf16.mxu0 0
  %306 = vmatpush1.bf16.msra.mxu0 %v218
  %307 = vmatprep.subr.bf16.mxu0 0
  %308 = vmatpush1.bf16.msra.mxu0 %v221
  %309 = vmatprep.subr.bf16.mxu0 0
  %310 = vmatpush1.bf16.msra.mxu0 %v224
  %311 = vmatprep.subr.bf16.mxu0 0
  %312 = vmatpush1.bf16.msra.mxu0 %v227
  %313 = vmatprep.subr.bf16.mxu0 0
  %314 = vmatpush1.bf16.msra.mxu0 %v230
  %315 = vmatprep.subr.bf16.mxu0 0
  %316 = vmatpush1.bf16.msra.mxu0 %v233
  %317 = vmatprep.subr.bf16.mxu0 0
  %318 = vmatpush1.bf16.msra.mxu0 0
  %319 = vmatprep.subr.bf16.mxu0 0
  %320 = vmatpush1.bf16.msra.mxu0 0
  %321 = vmatprep.subr.bf16.mxu0 0
  %322 = vmatpush1.bf16.msra.mxu0 0
  %323 = vmatprep.subr.bf16.mxu0 0
  %324 = vmatpush1.bf16.msra.mxu0 0
  %325 = vmatprep.subr.bf16.mxu0 0
  %326 = vmatpush1.bf16.msra.mxu0 0
  %327 = vmatprep.subr.bf16.mxu0 0
  %328 = vmatpush1.bf16.msra.mxu0 0
  %329 = vmatprep.subr.bf16.mxu0 0
  %330 = vmatpush1.bf16.msra.mxu0 0
  %331 = vmatprep.subr.bf16.mxu0 0
  %332 = vmatpush1.bf16.msra.mxu0 0
  %333 = vmatprep.mubr.bf16.mxu0 0
  %334 = vmatmul.mubr.bf16.gmra.mrb[0].mxu0 %v80
  %v335 = vpop.f32.mrb[0].mxu0
  %v336 = vadd.f32 %v126, %v335
  %v337 = vpop.f32.mrb[0].mxu0
  %v338 = vpop.f32.mrb[0].mxu0
  %v339 = vadd.f32 %v126, %v338
  %v340 = vpop.f32.mrb[0].mxu0
  %341 = vdwg.mxu0
  %v342 = vpack.c.bf16 %v297, %v293
  %v343 = vpack.c.bf16 %v299, %v295
  %v344 = vpack.c.bf16 %v339, %v336
  %v348 = vunpack.c.l.b16 %v342
  %v349 = vunpack.c.l.b16 %v343
  %v350 = vunpack.c.l.b16 %v344
  %v351 = vunpack.c.h.b16 %v342
  %v352 = vunpack.c.h.b16 %v343
  %v353 = vunpack.c.h.b16 %v344
  %v354 = vpack.c.b16 %v349, %v348
  %v355 = vpack.c.b16 %v350, %v350
  %v356 = vpack.c.b16 %v352, %v351
  %v357 = vpack.c.b16 %v353, %v353
  %362 = vst [vmem:[%s6] sm:$0xff] %v354
  %363 = vst [vmem:[%s6 + $0x8] sm:$0xf] %v355
  %364 = vst [vmem:[%s6 + $0xc] sm:$0x11] %v356
  %365 = vst [vmem:[%s6 + $0x14] sm:$0x1] %v357
  // Predicated region
  $region26: #{lpgnn_layer_fwd.9} parent=0 // pred_check
    _
  $region27: #{lpgnn_layer_fwd.9} parent=0 // pred_check_branch
    %367 = sbr.rel (0) target = $region29
  $region28: #{lpgnn_layer_fwd.9} parent=0 // pred_region
    _
  $region29: #{lpgnn_layer_fwd.9} parent=0 // pred_fallthru
    _
  // Predicated region
  $region30: #{lpgnn_layer_fwd.9} parent=0 // pred_check
    _
  $region31: #{lpgnn_layer_fwd.9} parent=0 // pred_check_branch
    %369 = sbr.rel (0) target = $region33
  $region32: #{lpgnn_layer_fwd.9} parent=0 // pred_region
    _
  $region33: #{lpgnn_layer_fwd.9} parent=0 // pred_fallthru
    _

// kernel: lpgnn_layer_fwd.11
$region0: #{lpgnn_layer_fwd.11}
  #allocation0 [shape = 'u32[]', space=smem, size = 0x4, offset = 0x4, fixed_abs, tag = 'smem constant byte address 0x4 - core index']
  #allocation1 [shape = 'u32[144,128]{1,0:T(1,128)}', space=vmem, size = 0x12000, scoped, tag = 'internal scratch']
  %s0 = inlined_call_operand.vmem [shape: f32[8,128], index: 0, kind: input, shape index: {}]
  %s1 = inlined_call_operand.vmem [shape: f32[1,128], index: 1, kind: input, shape index: {}]
  %s2 = inlined_call_operand.vmem [shape: f32[1,128], index: 2, kind: input, shape index: {}]
  %s3 = inlined_call_operand.vmem [shape: f32[1,128], index: 3, kind: input, shape index: {}]
  %s4 = inlined_call_operand.vmem [shape: bf16[128,64], index: 4, kind: input, shape index: {}]
  %s5 = inlined_call_operand.vmem [shape: f32[1,64], index: 5, kind: input, shape index: {}]
  %s6 = inlined_call_operand.vmem [shape: bf16[64,128], index: 6, kind: input, shape index: {}]
  %s7 = inlined_call_operand.vmem [shape: f32[1,128], index: 7, kind: input, shape index: {}]
  %s8 = inlined_call_operand.vmem [shape: f32[8,128], index: 8, kind: output, shape index: {}]
  %s9 = sld [smem:[#allocation0]]
  $region42: #{lpgnn_layer_fwd.11} parent=0
    _
  %s11 = ssub.s32 1, %s9
  %s12 = scalar_select 0, %s11, %s9
  // Predicated region
  $region2: #{lpgnn_layer_fwd.11} parent=0 // pred_check
    _
  $region3: #{lpgnn_layer_fwd.11} parent=0 // pred_check_branch
    %14 = sbr.rel (0) target = $region5
  $region4: #{lpgnn_layer_fwd.11} parent=0 // pred_region
    _
  $region5: #{lpgnn_layer_fwd.11} parent=0 // pred_fallthru
    _
  // Predicated region
  $region6: #{lpgnn_layer_fwd.11} parent=0 // pred_check
    _
  $region7: #{lpgnn_layer_fwd.11} parent=0 // pred_check_branch
    %16 = sbr.rel (0) target = $region9
  $region8: #{lpgnn_layer_fwd.11} parent=0 // pred_region
    _
  $region9: #{lpgnn_layer_fwd.11} parent=0 // pred_fallthru
    _
  // Predicated region
  $region10: #{lpgnn_layer_fwd.11} parent=0 // pred_check
    _
  $region11: #{lpgnn_layer_fwd.11} parent=0 // pred_check_branch
    %18 = sbr.rel (0) target = $region13
  $region12: #{lpgnn_layer_fwd.11} parent=0 // pred_region
    _
  $region13: #{lpgnn_layer_fwd.11} parent=0 // pred_fallthru
    _
  // Predicated region
  $region14: #{lpgnn_layer_fwd.11} parent=0 // pred_check
    _
  $region15: #{lpgnn_layer_fwd.11} parent=0 // pred_check_branch
    %20 = sbr.rel (0) target = $region17
  $region16: #{lpgnn_layer_fwd.11} parent=0 // pred_region
    _
  $region17: #{lpgnn_layer_fwd.11} parent=0 // pred_fallthru
    _
  // Predicated region
  $region18: #{lpgnn_layer_fwd.11} parent=0 // pred_check
    _
  $region19: #{lpgnn_layer_fwd.11} parent=0 // pred_check_branch
    %22 = sbr.rel (0) target = $region21
  $region20: #{lpgnn_layer_fwd.11} parent=0 // pred_region
    _
  $region21: #{lpgnn_layer_fwd.11} parent=0 // pred_fallthru
    _
  // Predicated region
  $region22: #{lpgnn_layer_fwd.11} parent=0 // pred_check
    _
  $region23: #{lpgnn_layer_fwd.11} parent=0 // pred_check_branch
    %24 = sbr.rel (0) target = $region25
  $region24: #{lpgnn_layer_fwd.11} parent=0 // pred_region
    _
  $region25: #{lpgnn_layer_fwd.11} parent=0 // pred_fallthru
    _
  // Predicated region
  $region26: #{lpgnn_layer_fwd.11} parent=0 // pred_check
    _
  $region27: #{lpgnn_layer_fwd.11} parent=0 // pred_check_branch
    %26 = sbr.rel (0) target = $region29
  $region28: #{lpgnn_layer_fwd.11} parent=0 // pred_region
    _
  $region29: #{lpgnn_layer_fwd.11} parent=0 // pred_fallthru
    _
  // Predicated region
  $region30: #{lpgnn_layer_fwd.11} parent=0 // pred_check
    _
  $region31: #{lpgnn_layer_fwd.11} parent=0 // pred_check_branch
    %28 = sbr.rel (0) target = $region33
  $region32: #{lpgnn_layer_fwd.11} parent=0 // pred_region
    _
  $region33: #{lpgnn_layer_fwd.11} parent=0 // pred_fallthru
    _
  %v30 = vld [vmem:[%s0] sm:$0xff]
  %v31 = vld [vmem:[%s1] sm:$0x1]
  %v33 = vlaneseq
  %v34 = vshrl.u32 %v33, 7
  %v35 = vsub.s32 0, %v34
  %v36 = vrot.slane %v31, %v35
  %v38 = vmul.f32 %v30, %v36
  %39 = vadd.xlane.f32.xlu0 %v38
  %v40 = vpop.xlane.xlu0 %39
  %v41 = vmul.f32 %v40, 0.03125
  %v42 = vsub.f32 %v38, %v41
  %v43 = vmul.f32 %v42, %v36
  %v44 = vmul.f32 %v43, %v43
  %45 = vadd.xlane.f32.xlu0 %v44
  %v46 = vpop.xlane.xlu0 %45
  %v47 = vmul.f32 %v46, 0.03125
  %v48 = vadd.f32 %v47, 1e-05
  %v49 = vrsqrt.pop %v48
  %v50 = vmul.f32 %v43, %v49
  %v51 = vld [vmem:[%s2] sm:$0x1]
  %v53 = vlaneseq
  %v54 = vshrl.u32 %v53, 7
  %v55 = vsub.s32 0, %v54
  %v56 = vrot.slane %v51, %v55
  %v58 = vmul.f32 %v50, %v56
  %v59 = vld [vmem:[%s3] sm:$0x1]
  %v61 = vlaneseq
  %v62 = vshrl.u32 %v61, 7
  %v63 = vsub.s32 0, %v62
  %v64 = vrot.slane %v59, %v63
  %v66 = vadd.f32 %v58, %v64
  %v67 = vpack.c.bf16 %v66, %v66
  %v68 = vld [vmem:[%s4] sm:$0xf]
  %v69 = vld [vmem:[%s4 + $0x4] sm:$0xf]
  %v70 = vld [vmem:[%s4 + $0x8] sm:$0xf]
  %v71 = vld [vmem:[%s4 + $0xc] sm:$0xf]
  %v72 = vld [vmem:[%s4 + $0x10] sm:$0xf]
  %v73 = vld [vmem:[%s4 + $0x14] sm:$0xf]
  %v74 = vld [vmem:[%s4 + $0x18] sm:$0xf]
  %v75 = vld [vmem:[%s4 + $0x1c] sm:$0xf]
  %v76 = vld [vmem:[%s4 + $0x20] sm:$0xf]
  %v77 = vld [vmem:[%s4 + $0x24] sm:$0xf]
  %v78 = vld [vmem:[%s4 + $0x28] sm:$0xf]
  %v79 = vld [vmem:[%s4 + $0x2c] sm:$0xf]
  %v80 = vld [vmem:[%s4 + $0x30] sm:$0xf]
  %v81 = vld [vmem:[%s4 + $0x34] sm:$0xf]
  %v82 = vld [vmem:[%s4 + $0x38] sm:$0xf]
  %v83 = vld [vmem:[%s4 + $0x3c] sm:$0xf]
  %v84 = vld [vmem:[%s5] sm:$0x1]
  %v86 = vlaneseq
  %v87 = vshrl.u32 %v86, 7
  %v88 = vsub.s32 0, %v87
  %v89 = vrot.slane %v84, %v88
  %v107 = vunpack.c.l.b16 %v68
  %v108 = vunpack.c.l.b16 %v69
  %v109 = vunpack.c.l.b16 %v70
  %v110 = vunpack.c.l.b16 %v71
  %v111 = vunpack.c.l.b16 %v72
  %v112 = vunpack.c.l.b16 %v73
  %v113 = vunpack.c.l.b16 %v74
  %v114 = vunpack.c.l.b16 %v75
  %v115 = vunpack.c.l.b16 %v76
  %v116 = vunpack.c.l.b16 %v77
  %v117 = vunpack.c.l.b16 %v78
  %v118 = vunpack.c.l.b16 %v79
  %v119 = vunpack.c.l.b16 %v80
  %v120 = vunpack.c.l.b16 %v81
  %v121 = vunpack.c.l.b16 %v82
  %v122 = vunpack.c.l.b16 %v83
  %v123 = vpack.c.b16 %v108, %v107
  %v124 = vpack.c.b16 %v110, %v109
  %v125 = vpack.c.b16 %v112, %v111
  %v126 = vpack.c.b16 %v114, %v113
  %v127 = vpack.c.b16 %v116, %v115
  %v128 = vpack.c.b16 %v118, %v117
  %v129 = vpack.c.b16 %v120, %v119
  %v130 = vpack.c.b16 %v122, %v121
  %139 = vmatprep.subr.bf16.mxu0 0
  %140 = vmatpush1.bf16.msra.mxu0 %v123
  %141 = vmatprep.subr.bf16.mxu0 0
  %142 = vmatpush1.bf16.msra.mxu0 %v124
  %143 = vmatprep.subr.bf16.mxu0 0
  %144 = vmatpush1.bf16.msra.mxu0 %v125
  %145 = vmatprep.subr.bf16.mxu0 0
  %146 = vmatpush1.bf16.msra.mxu0 %v126
  %147 = vmatprep.subr.bf16.mxu0 0
  %148 = vmatpush1.bf16.msra.mxu0 %v127
  %149 = vmatprep.subr.bf16.mxu0 0
  %150 = vmatpush1.bf16.msra.mxu0 %v128
  %151 = vmatprep.subr.bf16.mxu0 0
  %152 = vmatpush1.bf16.msra.mxu0 %v129
  %153 = vmatprep.subr.bf16.mxu0 0
  %154 = vmatpush1.bf16.msra.mxu0 %v130
  %155 = vmatprep.subr.bf16.mxu0 0
  %156 = vmatpush1.bf16.msra.mxu0 0
  %157 = vmatprep.subr.bf16.mxu0 0
  %158 = vmatpush1.bf16.msra.mxu0 0
  %159 = vmatprep.subr.bf16.mxu0 0
  %160 = vmatpush1.bf16.msra.mxu0 0
  %161 = vmatprep.subr.bf16.mxu0 0
  %162 = vmatpush1.bf16.msra.mxu0 0
  %163 = vmatprep.subr.bf16.mxu0 0
  %164 = vmatpush1.bf16.msra.mxu0 0
  %165 = vmatprep.subr.bf16.mxu0 0
  %166 = vmatpush1.bf16.msra.mxu0 0
  %167 = vmatprep.subr.bf16.mxu0 0
  %168 = vmatpush1.bf16.msra.mxu0 0
  %169 = vmatprep.subr.bf16.mxu0 0
  %170 = vmatpush1.bf16.msra.mxu0 0
  %171 = vmatprep.mubr.bf16.mxu0 0
  %172 = vmatmul.mubr.bf16.gmra.mrb[0].mxu0 %v67
  %v173 = vpop.f32.mrb[0].mxu0
  %v174 = vadd.f32 %v89, %v173
  %v175 = vpop.f32.mrb[0].mxu0
  %v176 = vpop.f32.mrb[0].mxu0
  %v177 = vpop.f32.mrb[0].mxu0
  %178 = vdwg.mxu0
  %v179 = vmax.f32 %v174, 0.0
  %v180 = vpack.c.bf16 %v179, %v179
  %v181 = vld [vmem:[%s6] sm:$0xf]
  %v182 = vld [vmem:[%s6 + $0x4] sm:$0xf]
  %v183 = vld [vmem:[%s6 + $0x8] sm:$0xf]
  %v184 = vld [vmem:[%s6 + $0xc] sm:$0xf]
  %v185 = vld [vmem:[%s6 + $0x10] sm:$0xf]
  %v186 = vld [vmem:[%s6 + $0x14] sm:$0xf]
  %v187 = vld [vmem:[%s6 + $0x18] sm:$0xf]
  %v188 = vld [vmem:[%s6 + $0x1c] sm:$0xf]
  %v189 = vld [vmem:[%s7] sm:$0x1]
  %v191 = vlaneseq
  %v192 = vshrl.u32 %v191, 7
  %v193 = vsub.s32 0, %v192
  %v194 = vrot.slane %v189, %v193
  %v204 = vunpack.c.l.b16 %v181
  %v205 = vunpack.c.l.b16 %v182
  %v206 = vunpack.c.l.b16 %v183
  %v207 = vunpack.c.l.b16 %v184
  %v208 = vunpack.c.l.b16 %v185
  %v209 = vunpack.c.l.b16 %v186
  %v210 = vunpack.c.l.b16 %v187
  %v211 = vunpack.c.l.b16 %v188
  %v212 = vpack.c.b16 %v205, %v204
  %v213 = vpack.c.b16 %v207, %v206
  %v214 = vpack.c.b16 %v209, %v208
  %v215 = vpack.c.b16 %v211, %v210
  %vm220 = vcmask 523264
  %v222 = vsel %vm220, %v180, 0
  %224 = vmatprep.subr.bf16.mxu0 0
  %225 = vmatpush1.bf16.msra.mxu0 %v212
  %226 = vmatprep.subr.bf16.mxu0 0
  %227 = vmatpush1.bf16.msra.mxu0 %v213
  %228 = vmatprep.subr.bf16.mxu0 0
  %229 = vmatpush1.bf16.msra.mxu0 %v214
  %230 = vmatprep.subr.bf16.mxu0 0
  %231 = vmatpush1.bf16.msra.mxu0 %v215
  %232 = vmatprep.subr.bf16.mxu0 0
  %233 = vmatpush1.bf16.msra.mxu0 0
  %234 = vmatprep.subr.bf16.mxu0 0
  %235 = vmatpush1.bf16.msra.mxu0 0
  %236 = vmatprep.subr.bf16.mxu0 0
  %237 = vmatpush1.bf16.msra.mxu0 0
  %238 = vmatprep.subr.bf16.mxu0 0
  %239 = vmatpush1.bf16.msra.mxu0 0
  %240 = vmatprep.subr.bf16.mxu0 0
  %241 = vmatpush1.bf16.msra.mxu0 0
  %242 = vmatprep.subr.bf16.mxu0 0
  %243 = vmatpush1.bf16.msra.mxu0 0
  %244 = vmatprep.subr.bf16.mxu0 0
  %245 = vmatpush1.bf16.msra.mxu0 0
  %246 = vmatprep.subr.bf16.mxu0 0
  %247 = vmatpush1.bf16.msra.mxu0 0
  %248 = vmatprep.subr.bf16.mxu0 0
  %249 = vmatpush1.bf16.msra.mxu0 0
  %250 = vmatprep.subr.bf16.mxu0 0
  %251 = vmatpush1.bf16.msra.mxu0 0
  %252 = vmatprep.subr.bf16.mxu0 0
  %253 = vmatpush1.bf16.msra.mxu0 0
  %254 = vmatprep.subr.bf16.mxu0 0
  %255 = vmatpush1.bf16.msra.mxu0 0
  %256 = vmatprep.mubr.bf16.mxu0 0
  %257 = vmatmul.mubr.bf16.gmra.mrb[0].mxu0 %v222
  %v258 = vpop.f32.mrb[0].mxu0
  %v259 = vadd.f32 %v194, %v258
  %v260 = vpop.f32.mrb[0].mxu0
  %v261 = vpop.f32.mrb[0].mxu0
  %v262 = vpop.f32.mrb[0].mxu0
  %263 = vdwg.mxu0
  %v264 = vadd.f32 %v30, %v259
  %265 = vst [vmem:[%s8] sm:$0xff] %v264
  // Predicated region
  $region34: #{lpgnn_layer_fwd.11} parent=0 // pred_check
    _
  $region35: #{lpgnn_layer_fwd.11} parent=0 // pred_check_branch
    %267 = sbr.rel (0) target = $region37
  $region36: #{lpgnn_layer_fwd.11} parent=0 // pred_region
    _
  $region37: #{lpgnn_layer_fwd.11} parent=0 // pred_fallthru
    _
  // Predicated region
  $region38: #{lpgnn_layer_fwd.11} parent=0 // pred_check
    _
  $region39: #{lpgnn_layer_fwd.11} parent=0 // pred_check_branch
    %269 = sbr.rel (0) target = $region41
  $region40: #{lpgnn_layer_fwd.11} parent=0 // pred_region
    _
  $region41: #{lpgnn_layer_fwd.11} parent=0 // pred_fallthru
    _

// kernel: lpgnn_layer_fwd.10
$region0: #{lpgnn_layer_fwd.10}
  #allocation0 [shape = 'u32[]', space=smem, size = 0x4, offset = 0x4, fixed_abs, tag = 'smem constant byte address 0x4 - core index']
  #allocation1 [shape = 'u32[144,128]{1,0:T(1,128)}', space=vmem, size = 0x12000, scoped, tag = 'internal scratch']
  %s0 = inlined_call_operand.vmem [shape: bf16[16,128], index: 0, kind: input, shape index: {}]
  %s1 = inlined_call_operand.vmem [shape: bf16[16,128], index: 1, kind: input, shape index: {}]
  %s2 = inlined_call_operand.vmem [shape: bf16[16,128], index: 2, kind: input, shape index: {}]
  %s3 = inlined_call_operand.vmem [shape: f32[16,1], index: 3, kind: input, shape index: {}]
  %s4 = inlined_call_operand.vmem [shape: f32[16,8], index: 4, kind: input, shape index: {}]
  %s5 = inlined_call_operand.vmem [shape: bf16[32,128], index: 5, kind: input, shape index: {}]
  %s6 = inlined_call_operand.vmem [shape: f32[1,128], index: 6, kind: input, shape index: {}]
  %s7 = inlined_call_operand.vmem [shape: f32[8,128], index: 7, kind: input, shape index: {}]
  %s8 = inlined_call_operand.vmem [shape: f32[8,128], index: 8, kind: output, shape index: {}]
  %s9 = sld [smem:[#allocation0]]
  $region42: #{lpgnn_layer_fwd.10} parent=0
    _
  %s11 = ssub.s32 1, %s9
  %s12 = scalar_select 0, %s11, %s9
  // Predicated region
  $region2: #{lpgnn_layer_fwd.10} parent=0 // pred_check
    _
  $region3: #{lpgnn_layer_fwd.10} parent=0 // pred_check_branch
    %14 = sbr.rel (0) target = $region5
  $region4: #{lpgnn_layer_fwd.10} parent=0 // pred_region
    _
  $region5: #{lpgnn_layer_fwd.10} parent=0 // pred_fallthru
    _
  // Predicated region
  $region6: #{lpgnn_layer_fwd.10} parent=0 // pred_check
    _
  $region7: #{lpgnn_layer_fwd.10} parent=0 // pred_check_branch
    %16 = sbr.rel (0) target = $region9
  $region8: #{lpgnn_layer_fwd.10} parent=0 // pred_region
    _
  $region9: #{lpgnn_layer_fwd.10} parent=0 // pred_fallthru
    _
  // Predicated region
  $region10: #{lpgnn_layer_fwd.10} parent=0 // pred_check
    _
  $region11: #{lpgnn_layer_fwd.10} parent=0 // pred_check_branch
    %18 = sbr.rel (0) target = $region13
  $region12: #{lpgnn_layer_fwd.10} parent=0 // pred_region
    _
  $region13: #{lpgnn_layer_fwd.10} parent=0 // pred_fallthru
    _
  // Predicated region
  $region14: #{lpgnn_layer_fwd.10} parent=0 // pred_check
    _
  $region15: #{lpgnn_layer_fwd.10} parent=0 // pred_check_branch
    %20 = sbr.rel (0) target = $region17
  $region16: #{lpgnn_layer_fwd.10} parent=0 // pred_region
    _
  $region17: #{lpgnn_layer_fwd.10} parent=0 // pred_fallthru
    _
  // Predicated region
  $region18: #{lpgnn_layer_fwd.10} parent=0 // pred_check
    _
  $region19: #{lpgnn_layer_fwd.10} parent=0 // pred_check_branch
    %22 = sbr.rel (0) target = $region21
  $region20: #{lpgnn_layer_fwd.10} parent=0 // pred_region
    _
  $region21: #{lpgnn_layer_fwd.10} parent=0 // pred_fallthru
    _
  // Predicated region
  $region22: #{lpgnn_layer_fwd.10} parent=0 // pred_check
    _
  $region23: #{lpgnn_layer_fwd.10} parent=0 // pred_check_branch
    %24 = sbr.rel (0) target = $region25
  $region24: #{lpgnn_layer_fwd.10} parent=0 // pred_region
    _
  $region25: #{lpgnn_layer_fwd.10} parent=0 // pred_fallthru
    _
  // Predicated region
  $region26: #{lpgnn_layer_fwd.10} parent=0 // pred_check
    _
  $region27: #{lpgnn_layer_fwd.10} parent=0 // pred_check_branch
    %26 = sbr.rel (0) target = $region29
  $region28: #{lpgnn_layer_fwd.10} parent=0 // pred_region
    _
  $region29: #{lpgnn_layer_fwd.10} parent=0 // pred_fallthru
    _
  // Predicated region
  $region30: #{lpgnn_layer_fwd.10} parent=0 // pred_check
    _
  $region31: #{lpgnn_layer_fwd.10} parent=0 // pred_check_branch
    %28 = sbr.rel (0) target = $region33
  $region32: #{lpgnn_layer_fwd.10} parent=0 // pred_region
    _
  $region33: #{lpgnn_layer_fwd.10} parent=0 // pred_fallthru
    _
  %v30 = vld [vmem:[%s0] sm:$0xf]
  %v31 = vld [vmem:[%s0 + $0x4] sm:$0xf]
  %v32 = vunpack.c.l.bf16 %v30
  %v33 = vunpack.c.l.bf16 %v31
  %v34 = vld [vmem:[%s1] sm:$0xf]
  %v35 = vld [vmem:[%s1 + $0x4] sm:$0xf]
  %v36 = vunpack.c.l.bf16 %v34
  %v37 = vunpack.c.l.bf16 %v35
  %v38 = vld [vmem:[%s2] sm:$0xf]
  %v39 = vld [vmem:[%s2 + $0x4] sm:$0xf]
  %v40 = vunpack.c.l.bf16 %v38
  %v41 = vunpack.c.l.bf16 %v39
  %v42 = vld [vmem:[%s3] sm:$0xff]
  %v43 = vld [vmem:[%s3 + $0x8] sm:$0xff]
  %v44 = vld [vmem:[%s4] sm:$0xff]
  %v45 = vld [vmem:[%s4 + $0x8] sm:$0xff]
  %v46 = vmul.f32 %v32, %v36
  %v47 = vmul.f32 %v33, %v37
  %vm48 = vcmask 130048
  %v49 = vsel %vm48, %v46, 0.0
  %50 = vadd.xlane.f32.xlu0 %v49
  %v51 = vpop.xlane.xlu0 %50
  %v52 = vsel %vm48, %v47, 0.0
  %53 = vadd.xlane.f32.xlu0 %v52
  %v54 = vpop.xlane.xlu0 %53
  %57 = vrot.lane.b32.xlu0 %v46, 112
  %v58 = vpop.permute.xlu0 %57
  %59 = vrot.lane.b32.xlu0 %v47, 112
  %v60 = vpop.permute.xlu0 %59
  %v63 = vsel %vm48, %v58, 0.0
  %64 = vadd.xlane.f32.xlu0 %v63
  %v65 = vpop.xlane.xlu0 %64
  %v66 = vsel %vm48, %v60, 0.0
  %67 = vadd.xlane.f32.xlu0 %v66
  %v68 = vpop.xlane.xlu0 %67
  %vm69 = vcmask 7168
  %v70 = vsel %vm69, %v51, %v65
  %v71 = vsel %vm69, %v54, %v68
  %v72 = vmul.f32 %v70, 0.25
  %v73 = vmul.f32 %v71, 0.25
  %74 = vxpose.xlu0.b32.start [1/16] %v44, 128
  %75 = vxpose.xlu0.b32.cont [2/16] %v45, 128
  %76 = vxpose.xlu0.b32.cont [3/16] 0.0, 128
  %77 = vxpose.xlu0.b32.cont [4/16] 0.0, 128
  %78 = vxpose.xlu0.b32.cont [5/16] 0.0, 128
  %79 = vxpose.xlu0.b32.cont [6/16] 0.0, 128
  %80 = vxpose.xlu0.b32.cont [7/16] 0.0, 128
  %81 = vxpose.xlu0.b32.cont [8/16] 0.0, 128
  %82 = vxpose.xlu0.b32.cont [9/16] 0.0, 128
  %83 = vxpose.xlu0.b32.cont [10/16] 0.0, 128
  %84 = vxpose.xlu0.b32.cont [11/16] 0.0, 128
  %85 = vxpose.xlu0.b32.cont [12/16] 0.0, 128
  %86 = vxpose.xlu0.b32.cont [13/16] 0.0, 128
  %87 = vxpose.xlu0.b32.cont [14/16] 0.0, 128
  %88 = vxpose.xlu0.b32.cont [15/16] 0.0, 128
  %89 = vxpose.xlu0.b32.end [16/16] 0.0, 128
  %v90 = vpop.trf.xlu0
  %v91 = vpop.trf.xlu0
  %v92 = vpop.trf.xlu0
  %v93 = vpop.trf.xlu0
  %v94 = vpop.trf.xlu0
  %v95 = vpop.trf.xlu0
  %v96 = vpop.trf.xlu0
  %v97 = vpop.trf.xlu0
  %v98 = vpop.trf.xlu0
  %v99 = vpop.trf.xlu0
  %v100 = vpop.trf.xlu0
  %v101 = vpop.trf.xlu0
  %v102 = vpop.trf.xlu0
  %v103 = vpop.trf.xlu0
  %v104 = vpop.trf.xlu0
  %v105 = vpop.trf.xlu0
  %v107 = vsel %vm48, %v90, 0
  %109 = vmatprep.subr.mxu0 0.0
  %110 = vmatpush1.msra.mxu0 %v42
  %111 = vmatprep.subr.mxu0 0.0
  %112 = vmatpush1.msra.mxu0 %v43
  %113 = vmatprep.subr.mxu0 0.0
  %114 = vmatpush1.msra.mxu0 0.0
  %115 = vmatprep.subr.mxu0 0.0
  %116 = vmatpush1.msra.mxu0 0.0
  %117 = vmatprep.subr.mxu0 0.0
  %118 = vmatpush1.msra.mxu0 0.0
  %119 = vmatprep.subr.mxu0 0.0
  %120 = vmatpush1.msra.mxu0 0.0
  %121 = vmatprep.subr.mxu0 0.0
  %122 = vmatpush1.msra.mxu0 0.0
  %123 = vmatprep.subr.mxu0 0.0
  %124 = vmatpush1.msra.mxu0 0.0
  %125 = vmatprep.subr.mxu0 0.0
  %126 = vmatpush1.msra.mxu0 0.0
  %127 = vmatprep.subr.mxu0 0.0
  %128 = vmatpush1.msra.mxu0 0.0
  %129 = vmatprep.subr.mxu0 0.0
  %130 = vmatpush1.msra.mxu0 0.0
  %131 = vmatprep.subr.mxu0 0.0
  %132 = vmatpush1.msra.mxu0 0.0
  %133 = vmatprep.subr.mxu0 0.0
  %134 = vmatpush1.msra.mxu0 0.0
  %135 = vmatprep.subr.mxu0 0.0
  %136 = vmatpush1.msra.mxu0 0.0
  %137 = vmatprep.subr.mxu0 0.0
  %138 = vmatpush1.msra.mxu0 0.0
  %139 = vmatprep.subr.mxu0 0.0
  %140 = vmatpush1.msra.mxu0 0.0
  %141 = vmatprep.subr.mxu0 0.0
  %142 = vmatpush1.msra.mxu0 0.0
  %143 = vmatprep.subr.mxu0 0.0
  %144 = vmatpush1.msra.mxu0 0.0
  %145 = vmatprep.subr.mxu0 0.0
  %146 = vmatpush1.msra.mxu0 0.0
  %147 = vmatprep.subr.mxu0 0.0
  %148 = vmatpush1.msra.mxu0 0.0
  %149 = vmatprep.subr.mxu0 0.0
  %150 = vmatpush1.msra.mxu0 0.0
  %151 = vmatprep.subr.mxu0 0.0
  %152 = vmatpush1.msra.mxu0 0.0
  %153 = vmatprep.subr.mxu0 0.0
  %154 = vmatpush1.msra.mxu0 0.0
  %155 = vmatprep.subr.mxu0 0.0
  %156 = vmatpush1.msra.mxu0 0.0
  %157 = vmatprep.subr.mxu0 0.0
  %158 = vmatpush1.msra.mxu0 0.0
  %159 = vmatprep.subr.mxu0 0.0
  %160 = vmatpush1.msra.mxu0 0.0
  %161 = vmatprep.subr.mxu0 0.0
  %162 = vmatpush1.msra.mxu0 0.0
  %163 = vmatprep.subr.mxu0 0.0
  %164 = vmatpush1.msra.mxu0 0.0
  %165 = vmatprep.subr.mxu0 0.0
  %166 = vmatpush1.msra.mxu0 0.0
  %167 = vmatprep.subr.mxu0 0.0
  %168 = vmatpush1.msra.mxu0 0.0
  %169 = vmatprep.subr.mxu0 0.0
  %170 = vmatpush1.msra.mxu0 0.0
  %171 = vmatprep.subr.mxu0 0.0
  %172 = vmatpush1.msra.mxu0 0.0
  %173 = vmatprep.mubr.f32.mxu0 0.0
  %174 = vmatmul.mubr.f32.gmra.mrb[0].mxu0 %v107
  %v175 = vpop.f32.mrb[0].mxu0
  %v176 = vadd.f32 0.0, %v175
  %v177 = vpop.f32.mrb[0].mxu0
  %178 = vdwg.mxu0
  %180 = vset.pattern.permute.xlu0 0
  %181 = vperm.xlu0 %180, %v42
  %v182 = vpop.permute.xlu0 %181
  %185 = vset.pattern.permute.xlu0 0
  %186 = vperm.xlu0 %185, %v43
  %v187 = vpop.permute.xlu0 %186
  %v189 = vmul.f32 %v72, %v182
  %v190 = vmul.f32 %v73, %v187
  %191 = vmatprep.subr.mxu0 0.0
  %192 = vmatpush1.msra.mxu0 %v189
  %193 = vmatprep.subr.mxu0 0.0
  %194 = vmatpush1.msra.mxu0 %v190
  %195 = vmatprep.subr.mxu0 0.0
  %196 = vmatpush1.msra.mxu0 0.0
  %197 = vmatprep.subr.mxu0 0.0
  %198 = vmatpush1.msra.mxu0 0.0
  %199 = vmatprep.subr.mxu0 0.0
  %200 = vmatpush1.msra.mxu0 0.0
  %201 = vmatprep.subr.mxu0 0.0
  %202 = vmatpush1.msra.mxu0 0.0
  %203 = vmatprep.subr.mxu0 0.0
  %204 = vmatpush1.msra.mxu0 0.0
  %205 = vmatprep.subr.mxu0 0.0
  %206 = vmatpush1.msra.mxu0 0.0
  %207 = vmatprep.subr.mxu0 0.0
  %208 = vmatpush1.msra.mxu0 0.0
  %209 = vmatprep.subr.mxu0 0.0
  %210 = vmatpush1.msra.mxu0 0.0
  %211 = vmatprep.subr.mxu0 0.0
  %212 = vmatpush1.msra.mxu0 0.0
  %213 = vmatprep.subr.mxu0 0.0
  %214 = vmatpush1.msra.mxu0 0.0
  %215 = vmatprep.subr.mxu0 0.0
  %216 = vmatpush1.msra.mxu0 0.0
  %217 = vmatprep.subr.mxu0 0.0
  %218 = vmatpush1.msra.mxu0 0.0
  %219 = vmatprep.subr.mxu0 0.0
  %220 = vmatpush1.msra.mxu0 0.0
  %221 = vmatprep.subr.mxu0 0.0
  %222 = vmatpush1.msra.mxu0 0.0
  %223 = vmatprep.subr.mxu0 0.0
  %224 = vmatpush1.msra.mxu0 0.0
  %225 = vmatprep.subr.mxu0 0.0
  %226 = vmatpush1.msra.mxu0 0.0
  %227 = vmatprep.subr.mxu0 0.0
  %228 = vmatpush1.msra.mxu0 0.0
  %229 = vmatprep.subr.mxu0 0.0
  %230 = vmatpush1.msra.mxu0 0.0
  %231 = vmatprep.subr.mxu0 0.0
  %232 = vmatpush1.msra.mxu0 0.0
  %233 = vmatprep.subr.mxu0 0.0
  %234 = vmatpush1.msra.mxu0 0.0
  %235 = vmatprep.subr.mxu0 0.0
  %236 = vmatpush1.msra.mxu0 0.0
  %237 = vmatprep.subr.mxu0 0.0
  %238 = vmatpush1.msra.mxu0 0.0
  %239 = vmatprep.subr.mxu0 0.0
  %240 = vmatpush1.msra.mxu0 0.0
  %241 = vmatprep.subr.mxu0 0.0
  %242 = vmatpush1.msra.mxu0 0.0
  %243 = vmatprep.subr.mxu0 0.0
  %244 = vmatpush1.msra.mxu0 0.0
  %245 = vmatprep.subr.mxu0 0.0
  %246 = vmatpush1.msra.mxu0 0.0
  %247 = vmatprep.subr.mxu0 0.0
  %248 = vmatpush1.msra.mxu0 0.0
  %249 = vmatprep.subr.mxu0 0.0
  %250 = vmatpush1.msra.mxu0 0.0
  %251 = vmatprep.subr.mxu0 0.0
  %252 = vmatpush1.msra.mxu0 0.0
  %253 = vmatprep.subr.mxu0 0.0
  %254 = vmatpush1.msra.mxu0 0.0
  %255 = vmatprep.mubr.f32.mxu0 0.0
  %256 = vmatmul.mubr.f32.gmra.mrb[0].mxu0 %v107
  %v257 = vpop.f32.mrb[0].mxu0
  %v258 = vadd.f32 0.0, %v257
  %v259 = vpop.f32.mrb[0].mxu0
  %260 = vdwg.mxu0
  %v261 = vmax.f32 %v176, 1.0
  %263 = vset.pattern.permute.xlu0 0
  %264 = vperm.xlu0 %263, %v261
  %v265 = vpop.permute.xlu0 %264
  %v267 = vrcp.pop %v265
  %v268 = vmul.f32 %v258, %v267
  %vm269 = vcmask 64512
  %v271 = vsel %vm269, %v44, 0
  %v274 = vsel %vm269, %v45, 0
  %276 = vmatprep.subr.mxu0 0.0
  %277 = vmatpush1.msra.mxu0 %v268
  %278 = vmatprep.subr.mxu0 0.0
  %279 = vmatpush1.msra.mxu0 0.0
  %280 = vmatprep.subr.mxu0 0.0
  %281 = vmatpush1.msra.mxu0 0.0
  %282 = vmatprep.subr.mxu0 0.0
  %283 = vmatpush1.msra.mxu0 0.0
  %284 = vmatprep.subr.mxu0 0.0
  %285 = vmatpush1.msra.mxu0 0.0
  %286 = vmatprep.subr.mxu0 0.0
  %287 = vmatpush1.msra.mxu0 0.0
  %288 = vmatprep.subr.mxu0 0.0
  %289 = vmatpush1.msra.mxu0 0.0
  %290 = vmatprep.subr.mxu0 0.0
  %291 = vmatpush1.msra.mxu0 0.0
  %292 = vmatprep.subr.mxu0 0.0
  %293 = vmatpush1.msra.mxu0 0.0
  %294 = vmatprep.subr.mxu0 0.0
  %295 = vmatpush1.msra.mxu0 0.0
  %296 = vmatprep.subr.mxu0 0.0
  %297 = vmatpush1.msra.mxu0 0.0
  %298 = vmatprep.subr.mxu0 0.0
  %299 = vmatpush1.msra.mxu0 0.0
  %300 = vmatprep.subr.mxu0 0.0
  %301 = vmatpush1.msra.mxu0 0.0
  %302 = vmatprep.subr.mxu0 0.0
  %303 = vmatpush1.msra.mxu0 0.0
  %304 = vmatprep.subr.mxu0 0.0
  %305 = vmatpush1.msra.mxu0 0.0
  %306 = vmatprep.subr.mxu0 0.0
  %307 = vmatpush1.msra.mxu0 0.0
  %308 = vmatprep.subr.mxu0 0.0
  %309 = vmatpush1.msra.mxu0 0.0
  %310 = vmatprep.subr.mxu0 0.0
  %311 = vmatpush1.msra.mxu0 0.0
  %312 = vmatprep.subr.mxu0 0.0
  %313 = vmatpush1.msra.mxu0 0.0
  %314 = vmatprep.subr.mxu0 0.0
  %315 = vmatpush1.msra.mxu0 0.0
  %316 = vmatprep.subr.mxu0 0.0
  %317 = vmatpush1.msra.mxu0 0.0
  %318 = vmatprep.subr.mxu0 0.0
  %319 = vmatpush1.msra.mxu0 0.0
  %320 = vmatprep.subr.mxu0 0.0
  %321 = vmatpush1.msra.mxu0 0.0
  %322 = vmatprep.subr.mxu0 0.0
  %323 = vmatpush1.msra.mxu0 0.0
  %324 = vmatprep.subr.mxu0 0.0
  %325 = vmatpush1.msra.mxu0 0.0
  %326 = vmatprep.subr.mxu0 0.0
  %327 = vmatpush1.msra.mxu0 0.0
  %328 = vmatprep.subr.mxu0 0.0
  %329 = vmatpush1.msra.mxu0 0.0
  %330 = vmatprep.subr.mxu0 0.0
  %331 = vmatpush1.msra.mxu0 0.0
  %332 = vmatprep.subr.mxu0 0.0
  %333 = vmatpush1.msra.mxu0 0.0
  %334 = vmatprep.subr.mxu0 0.0
  %335 = vmatpush1.msra.mxu0 0.0
  %336 = vmatprep.subr.mxu0 0.0
  %337 = vmatpush1.msra.mxu0 0.0
  %338 = vmatprep.subr.mxu0 0.0
  %339 = vmatpush1.msra.mxu0 0.0
  %340 = vmatprep.mubr.f32.mxu0 0.0
  %341 = vmatmul.mubr.f32.gmra.mrb[0].mxu0 %v271
  %v342 = vpop.f32.mrb[0].mxu0
  %v343 = vadd.f32 0.0, %v342
  %v344 = vpop.f32.mrb[0].mxu0
  %345 = vmatprep.mubr.f32.mxu0 0.0
  %346 = vmatmul.mubr.f32.gmra.mrb[0].mxu0 %v274
  %v347 = vpop.f32.mrb[0].mxu0
  %v348 = vadd.f32 0.0, %v347
  %v349 = vpop.f32.mrb[0].mxu0
  %350 = vdwg.mxu0
  %v351 = vsub.f32 %v72, %v343
  %v352 = vsub.f32 %v73, %v348
  %v353 = vmul.f32 %v351, 1.442695
  %v354 = vpow.pop %v353
  %v355 = vmul.f32 %v352, 1.442695
  %v356 = vpow.pop %v355
  %v357 = vmul.f32 %v354, %v182
  %v358 = vmul.f32 %v356, %v187
  %359 = vmatprep.subr.mxu0 0.0
  %360 = vmatpush1.msra.mxu0 %v357
  %361 = vmatprep.subr.mxu0 0.0
  %362 = vmatpush1.msra.mxu0 %v358
  %363 = vmatprep.subr.mxu0 0.0
  %364 = vmatpush1.msra.mxu0 0.0
  %365 = vmatprep.subr.mxu0 0.0
  %366 = vmatpush1.msra.mxu0 0.0
  %367 = vmatprep.subr.mxu0 0.0
  %368 = vmatpush1.msra.mxu0 0.0
  %369 = vmatprep.subr.mxu0 0.0
  %370 = vmatpush1.msra.mxu0 0.0
  %371 = vmatprep.subr.mxu0 0.0
  %372 = vmatpush1.msra.mxu0 0.0
  %373 = vmatprep.subr.mxu0 0.0
  %374 = vmatpush1.msra.mxu0 0.0
  %375 = vmatprep.subr.mxu0 0.0
  %376 = vmatpush1.msra.mxu0 0.0
  %377 = vmatprep.subr.mxu0 0.0
  %378 = vmatpush1.msra.mxu0 0.0
  %379 = vmatprep.subr.mxu0 0.0
  %380 = vmatpush1.msra.mxu0 0.0
  %381 = vmatprep.subr.mxu0 0.0
  %382 = vmatpush1.msra.mxu0 0.0
  %383 = vmatprep.subr.mxu0 0.0
  %384 = vmatpush1.msra.mxu0 0.0
  %385 = vmatprep.subr.mxu0 0.0
  %386 = vmatpush1.msra.mxu0 0.0
  %387 = vmatprep.subr.mxu0 0.0
  %388 = vmatpush1.msra.mxu0 0.0
  %389 = vmatprep.subr.mxu0 0.0
  %390 = vmatpush1.msra.mxu0 0.0
  %391 = vmatprep.subr.mxu0 0.0
  %392 = vmatpush1.msra.mxu0 0.0
  %393 = vmatprep.subr.mxu0 0.0
  %394 = vmatpush1.msra.mxu0 0.0
  %395 = vmatprep.subr.mxu0 0.0
  %396 = vmatpush1.msra.mxu0 0.0
  %397 = vmatprep.subr.mxu0 0.0
  %398 = vmatpush1.msra.mxu0 0.0
  %399 = vmatprep.subr.mxu0 0.0
  %400 = vmatpush1.msra.mxu0 0.0
  %401 = vmatprep.subr.mxu0 0.0
  %402 = vmatpush1.msra.mxu0 0.0
  %403 = vmatprep.subr.mxu0 0.0
  %404 = vmatpush1.msra.mxu0 0.0
  %405 = vmatprep.subr.mxu0 0.0
  %406 = vmatpush1.msra.mxu0 0.0
  %407 = vmatprep.subr.mxu0 0.0
  %408 = vmatpush1.msra.mxu0 0.0
  %409 = vmatprep.subr.mxu0 0.0
  %410 = vmatpush1.msra.mxu0 0.0
  %411 = vmatprep.subr.mxu0 0.0
  %412 = vmatpush1.msra.mxu0 0.0
  %413 = vmatprep.subr.mxu0 0.0
  %414 = vmatpush1.msra.mxu0 0.0
  %415 = vmatprep.subr.mxu0 0.0
  %416 = vmatpush1.msra.mxu0 0.0
  %417 = vmatprep.subr.mxu0 0.0
  %418 = vmatpush1.msra.mxu0 0.0
  %419 = vmatprep.subr.mxu0 0.0
  %420 = vmatpush1.msra.mxu0 0.0
  %421 = vmatprep.subr.mxu0 0.0
  %422 = vmatpush1.msra.mxu0 0.0
  %423 = vmatprep.mubr.f32.mxu0 0.0
  %424 = vmatmul.mubr.f32.gmra.mrb[0].mxu0 %v107
  %v425 = vpop.f32.mrb[0].mxu0
  %v426 = vadd.f32 0.0, %v425
  %v427 = vpop.f32.mrb[0].mxu0
  %428 = vdwg.mxu0
  %429 = vmatprep.subr.mxu0 0.0
  %430 = vmatpush1.msra.mxu0 %v426
  %431 = vmatprep.subr.mxu0 0.0
  %432 = vmatpush1.msra.mxu0 0.0
  %433 = vmatprep.subr.mxu0 0.0
  %434 = vmatpush1.msra.mxu0 0.0
  %435 = vmatprep.subr.mxu0 0.0
  %436 = vmatpush1.msra.mxu0 0.0
  %437 = vmatprep.subr.mxu0 0.0
  %438 = vmatpush1.msra.mxu0 0.0
  %439 = vmatprep.subr.mxu0 0.0
  %440 = vmatpush1.msra.mxu0 0.0
  %441 = vmatprep.subr.mxu0 0.0
  %442 = vmatpush1.msra.mxu0 0.0
  %443 = vmatprep.subr.mxu0 0.0
  %444 = vmatpush1.msra.mxu0 0.0
  %445 = vmatprep.subr.mxu0 0.0
  %446 = vmatpush1.msra.mxu0 0.0
  %447 = vmatprep.subr.mxu0 0.0
  %448 = vmatpush1.msra.mxu0 0.0
  %449 = vmatprep.subr.mxu0 0.0
  %450 = vmatpush1.msra.mxu0 0.0
  %451 = vmatprep.subr.mxu0 0.0
  %452 = vmatpush1.msra.mxu0 0.0
  %453 = vmatprep.subr.mxu0 0.0
  %454 = vmatpush1.msra.mxu0 0.0
  %455 = vmatprep.subr.mxu0 0.0
  %456 = vmatpush1.msra.mxu0 0.0
  %457 = vmatprep.subr.mxu0 0.0
  %458 = vmatpush1.msra.mxu0 0.0
  %459 = vmatprep.subr.mxu0 0.0
  %460 = vmatpush1.msra.mxu0 0.0
  %461 = vmatprep.subr.mxu0 0.0
  %462 = vmatpush1.msra.mxu0 0.0
  %463 = vmatprep.subr.mxu0 0.0
  %464 = vmatpush1.msra.mxu0 0.0
  %465 = vmatprep.subr.mxu0 0.0
  %466 = vmatpush1.msra.mxu0 0.0
  %467 = vmatprep.subr.mxu0 0.0
  %468 = vmatpush1.msra.mxu0 0.0
  %469 = vmatprep.subr.mxu0 0.0
  %470 = vmatpush1.msra.mxu0 0.0
  %471 = vmatprep.subr.mxu0 0.0
  %472 = vmatpush1.msra.mxu0 0.0
  %473 = vmatprep.subr.mxu0 0.0
  %474 = vmatpush1.msra.mxu0 0.0
  %475 = vmatprep.subr.mxu0 0.0
  %476 = vmatpush1.msra.mxu0 0.0
  %477 = vmatprep.subr.mxu0 0.0
  %478 = vmatpush1.msra.mxu0 0.0
  %479 = vmatprep.subr.mxu0 0.0
  %480 = vmatpush1.msra.mxu0 0.0
  %481 = vmatprep.subr.mxu0 0.0
  %482 = vmatpush1.msra.mxu0 0.0
  %483 = vmatprep.subr.mxu0 0.0
  %484 = vmatpush1.msra.mxu0 0.0
  %485 = vmatprep.subr.mxu0 0.0
  %486 = vmatpush1.msra.mxu0 0.0
  %487 = vmatprep.subr.mxu0 0.0
  %488 = vmatpush1.msra.mxu0 0.0
  %489 = vmatprep.subr.mxu0 0.0
  %490 = vmatpush1.msra.mxu0 0.0
  %491 = vmatprep.subr.mxu0 0.0
  %492 = vmatpush1.msra.mxu0 0.0
  %493 = vmatprep.mubr.f32.mxu0 0.0
  %494 = vmatmul.mubr.f32.gmra.mrb[0].mxu0 %v271
  %v495 = vpop.f32.mrb[0].mxu0
  %v496 = vadd.f32 0.0, %v495
  %v497 = vpop.f32.mrb[0].mxu0
  %498 = vmatprep.mubr.f32.mxu0 0.0
  %499 = vmatmul.mubr.f32.gmra.mrb[0].mxu0 %v274
  %v500 = vpop.f32.mrb[0].mxu0
  %v501 = vadd.f32 0.0, %v500
  %v502 = vpop.f32.mrb[0].mxu0
  %503 = vdwg.mxu0
  %v504 = vmax.f32 %v496, 1e-30
  %v505 = vmax.f32 %v501, 1e-30
  %v506 = vrcp.pop %v504
  %v507 = vmul.f32 %v357, %v506
  %v508 = vrcp.pop %v505
  %v509 = vmul.f32 %v358, %v508
  %511 = vset.pattern.permute.xlu0 0
  %512 = vperm.xlu0 %511, %v507
  %v513 = vpop.permute.xlu0 %512
  %516 = vset.pattern.permute.xlu0 0
  %517 = vperm.xlu0 %516, %v509
  %v518 = vpop.permute.xlu0 %517
  %v520 = vmul.f32 %v513, %v40
  %v521 = vmul.f32 %v518, %v41
  %522 = vset.pattern.permute.xlu0 1
  %523 = vperm.xlu0 %522, %v507
  %v524 = vpop.permute.xlu0 %523
  %526 = vset.pattern.permute.xlu0 1
  %527 = vperm.xlu0 %526, %v509
  %v528 = vpop.permute.xlu0 %527
  %v530 = vmul.f32 %v524, %v40
  %v531 = vmul.f32 %v528, %v41
  %v532 = vsel %vm48, %v520, %v530
  %v533 = vsel %vm48, %v521, %v531
  %534 = vmatprep.subr.mxu0 0.0
  %535 = vmatpush1.msra.mxu0 %v532
  %536 = vmatprep.subr.mxu0 0.0
  %537 = vmatpush1.msra.mxu0 %v533
  %538 = vmatprep.subr.mxu0 0.0
  %539 = vmatpush1.msra.mxu0 0.0
  %540 = vmatprep.subr.mxu0 0.0
  %541 = vmatpush1.msra.mxu0 0.0
  %542 = vmatprep.subr.mxu0 0.0
  %543 = vmatpush1.msra.mxu0 0.0
  %544 = vmatprep.subr.mxu0 0.0
  %545 = vmatpush1.msra.mxu0 0.0
  %546 = vmatprep.subr.mxu0 0.0
  %547 = vmatpush1.msra.mxu0 0.0
  %548 = vmatprep.subr.mxu0 0.0
  %549 = vmatpush1.msra.mxu0 0.0
  %550 = vmatprep.subr.mxu0 0.0
  %551 = vmatpush1.msra.mxu0 0.0
  %552 = vmatprep.subr.mxu0 0.0
  %553 = vmatpush1.msra.mxu0 0.0
  %554 = vmatprep.subr.mxu0 0.0
  %555 = vmatpush1.msra.mxu0 0.0
  %556 = vmatprep.subr.mxu0 0.0
  %557 = vmatpush1.msra.mxu0 0.0
  %558 = vmatprep.subr.mxu0 0.0
  %559 = vmatpush1.msra.mxu0 0.0
  %560 = vmatprep.subr.mxu0 0.0
  %561 = vmatpush1.msra.mxu0 0.0
  %562 = vmatprep.subr.mxu0 0.0
  %563 = vmatpush1.msra.mxu0 0.0
  %564 = vmatprep.subr.mxu0 0.0
  %565 = vmatpush1.msra.mxu0 0.0
  %566 = vmatprep.subr.mxu0 0.0
  %567 = vmatpush1.msra.mxu0 0.0
  %568 = vmatprep.subr.mxu0 0.0
  %569 = vmatpush1.msra.mxu0 0.0
  %570 = vmatprep.subr.mxu0 0.0
  %571 = vmatpush1.msra.mxu0 0.0
  %572 = vmatprep.subr.mxu0 0.0
  %573 = vmatpush1.msra.mxu0 0.0
  %574 = vmatprep.subr.mxu0 0.0
  %575 = vmatpush1.msra.mxu0 0.0
  %576 = vmatprep.subr.mxu0 0.0
  %577 = vmatpush1.msra.mxu0 0.0
  %578 = vmatprep.subr.mxu0 0.0
  %579 = vmatpush1.msra.mxu0 0.0
  %580 = vmatprep.subr.mxu0 0.0
  %581 = vmatpush1.msra.mxu0 0.0
  %582 = vmatprep.subr.mxu0 0.0
  %583 = vmatpush1.msra.mxu0 0.0
  %584 = vmatprep.subr.mxu0 0.0
  %585 = vmatpush1.msra.mxu0 0.0
  %586 = vmatprep.subr.mxu0 0.0
  %587 = vmatpush1.msra.mxu0 0.0
  %588 = vmatprep.subr.mxu0 0.0
  %589 = vmatpush1.msra.mxu0 0.0
  %590 = vmatprep.subr.mxu0 0.0
  %591 = vmatpush1.msra.mxu0 0.0
  %592 = vmatprep.subr.mxu0 0.0
  %593 = vmatpush1.msra.mxu0 0.0
  %594 = vmatprep.subr.mxu0 0.0
  %595 = vmatpush1.msra.mxu0 0.0
  %596 = vmatprep.subr.mxu0 0.0
  %597 = vmatpush1.msra.mxu0 0.0
  %598 = vmatprep.mubr.f32.mxu0 0.0
  %599 = vmatmul.mubr.f32.gmra.mrb[0].mxu0 %v107
  %v600 = vpop.f32.mrb[0].mxu0
  %v601 = vadd.f32 0.0, %v600
  %v602 = vpop.f32.mrb[0].mxu0
  %603 = vdwg.mxu0
  %v604 = vpack.c.bf16 %v601, %v601
  %v605 = vld [vmem:[%s5] sm:$0xf]
  %v606 = vld [vmem:[%s5 + $0x4] sm:$0xf]
  %v607 = vld [vmem:[%s5 + $0x8] sm:$0xf]
  %v608 = vld [vmem:[%s5 + $0xc] sm:$0xf]
  %v609 = vld [vmem:[%s6] sm:$0x1]
  %v611 = vlaneseq
  %v612 = vshrl.u32 %v611, 7
  %v613 = vsub.s32 0, %v612
  %v614 = vrot.slane %v609, %v613
  %v620 = vunpack.c.l.b16 %v605
  %v621 = vunpack.c.l.b16 %v606
  %v622 = vunpack.c.l.b16 %v607
  %v623 = vunpack.c.l.b16 %v608
  %v624 = vpack.c.b16 %v621, %v620
  %v625 = vpack.c.b16 %v623, %v622
  %vm628 = vcmask 261120
  %v630 = vsel %vm628, %v604, 0
  %632 = vmatprep.subr.bf16.mxu0 0
  %633 = vmatpush1.bf16.msra.mxu0 %v624
  %634 = vmatprep.subr.bf16.mxu0 0
  %635 = vmatpush1.bf16.msra.mxu0 %v625
  %636 = vmatprep.subr.bf16.mxu0 0
  %637 = vmatpush1.bf16.msra.mxu0 0
  %638 = vmatprep.subr.bf16.mxu0 0
  %639 = vmatpush1.bf16.msra.mxu0 0
  %640 = vmatprep.subr.bf16.mxu0 0
  %641 = vmatpush1.bf16.msra.mxu0 0
  %642 = vmatprep.subr.bf16.mxu0 0
  %643 = vmatpush1.bf16.msra.mxu0 0
  %644 = vmatprep.subr.bf16.mxu0 0
  %645 = vmatpush1.bf16.msra.mxu0 0
  %646 = vmatprep.subr.bf16.mxu0 0
  %647 = vmatpush1.bf16.msra.mxu0 0
  %648 = vmatprep.subr.bf16.mxu0 0
  %649 = vmatpush1.bf16.msra.mxu0 0
  %650 = vmatprep.subr.bf16.mxu0 0
  %651 = vmatpush1.bf16.msra.mxu0 0
  %652 = vmatprep.subr.bf16.mxu0 0
  %653 = vmatpush1.bf16.msra.mxu0 0
  %654 = vmatprep.subr.bf16.mxu0 0
  %655 = vmatpush1.bf16.msra.mxu0 0
  %656 = vmatprep.subr.bf16.mxu0 0
  %657 = vmatpush1.bf16.msra.mxu0 0
  %658 = vmatprep.subr.bf16.mxu0 0
  %659 = vmatpush1.bf16.msra.mxu0 0
  %660 = vmatprep.subr.bf16.mxu0 0
  %661 = vmatpush1.bf16.msra.mxu0 0
  %662 = vmatprep.subr.bf16.mxu0 0
  %663 = vmatpush1.bf16.msra.mxu0 0
  %664 = vmatprep.mubr.bf16.mxu0 0
  %665 = vmatmul.mubr.bf16.gmra.mrb[0].mxu0 %v630
  %v666 = vpop.f32.mrb[0].mxu0
  %v667 = vadd.f32 %v614, %v666
  %v668 = vpop.f32.mrb[0].mxu0
  %v669 = vpop.f32.mrb[0].mxu0
  %v670 = vpop.f32.mrb[0].mxu0
  %671 = vdwg.mxu0
  %v672 = vld [vmem:[%s7] sm:$0xff]
  %v673 = vadd.f32 %v667, %v672
  %674 = vst [vmem:[%s8] sm:$0xff] %v673
  // Predicated region
  $region34: #{lpgnn_layer_fwd.10} parent=0 // pred_check
    _
  $region35: #{lpgnn_layer_fwd.10} parent=0 // pred_check_branch
    %676 = sbr.rel (0) target = $region37
  $region36: #{lpgnn_layer_fwd.10} parent=0 // pred_region
    _
  $region37: #{lpgnn_layer_fwd.10} parent=0 // pred_fallthru
    _
  // Predicated region
  $region38: #{lpgnn_layer_fwd.10} parent=0 // pred_check
    _
  $region39: #{lpgnn_layer_fwd.10} parent=0 // pred_check_branch
    %678 = sbr.rel (0) target = $region41
  $region40: #{lpgnn_layer_fwd.10} parent=0 // pred_region
    _
  $region41: #{lpgnn_layer_fwd.10} parent=0 // pred_fallthru
    _

// kernel: lpgnn_layer_fwd.15
$region0: #{lpgnn_layer_fwd.15}
  #allocation0 [shape = 'u32[]', space=smem, size = 0x4, offset = 0x4, fixed_abs, tag = 'smem constant byte address 0x4 - core index']
  #allocation1 [shape = 'u32[144,128]{1,0:T(1,128)}', space=vmem, size = 0x12000, scoped, tag = 'internal scratch']
  %s0 = inlined_call_operand.vmem [shape: f32[10,128], index: 0, kind: input, shape index: {}]
  %s1 = inlined_call_operand.vmem [shape: f32[1,128], index: 1, kind: input, shape index: {}]
  %s2 = inlined_call_operand.vmem [shape: f32[1,128], index: 2, kind: input, shape index: {}]
  %s3 = inlined_call_operand.vmem [shape: f32[1,128], index: 3, kind: input, shape index: {}]
  %s4 = inlined_call_operand.vmem [shape: bf16[128,64], index: 4, kind: input, shape index: {}]
  %s5 = inlined_call_operand.vmem [shape: f32[1,64], index: 5, kind: input, shape index: {}]
  %s6 = inlined_call_operand.vmem [shape: bf16[64,128], index: 6, kind: input, shape index: {}]
  %s7 = inlined_call_operand.vmem [shape: f32[1,128], index: 7, kind: input, shape index: {}]
  %s8 = inlined_call_operand.hbm [shape: f32[10,128], index: 8, kind: output, shape index: {}]
  %s9 = sld [smem:[#allocation0]]
  $region42: #{lpgnn_layer_fwd.15} parent=0
    _
  %s11 = ssub.s32 1, %s9
  %s12 = scalar_select 0, %s11, %s9
  $region1: #{lpgnn_layer_fwd.15} parent=0
    #allocation2 [shape = 'u8[8192]{0}', space=vmem, size = 0x2000, scoped, tag = 'output window, operand 0, single buffered']
    #allocation3 [shape = 's32[1]{0}', space=sflag, size = 0x4, scoped, tag = 'scoped memory for lpgnn_layer_fwd.15']
    %13 = vsyncpa [#allocation3], 0
    // Predicated region
    $region2: #{lpgnn_layer_fwd.15} parent=1 // pred_check
      _
    $region3: #{lpgnn_layer_fwd.15} parent=1 // pred_check_branch
      %15 = sbr.rel (0) target = $region5
    $region4: #{lpgnn_layer_fwd.15} parent=1 // pred_region
      _
    $region5: #{lpgnn_layer_fwd.15} parent=1 // pred_fallthru
      _
    // Predicated region
    $region6: #{lpgnn_layer_fwd.15} parent=1 // pred_check
      _
    $region7: #{lpgnn_layer_fwd.15} parent=1 // pred_check_branch
      %17 = sbr.rel (0) target = $region9
    $region8: #{lpgnn_layer_fwd.15} parent=1 // pred_region
      _
    $region9: #{lpgnn_layer_fwd.15} parent=1 // pred_fallthru
      _
    // Predicated region
    $region10: #{lpgnn_layer_fwd.15} parent=1 // pred_check
      _
    $region11: #{lpgnn_layer_fwd.15} parent=1 // pred_check_branch
      %19 = sbr.rel (0) target = $region13
    $region12: #{lpgnn_layer_fwd.15} parent=1 // pred_region
      _
    $region13: #{lpgnn_layer_fwd.15} parent=1 // pred_fallthru
      _
    // Predicated region
    $region14: #{lpgnn_layer_fwd.15} parent=1 // pred_check
      _
    $region15: #{lpgnn_layer_fwd.15} parent=1 // pred_check_branch
      %21 = sbr.rel (0) target = $region17
    $region16: #{lpgnn_layer_fwd.15} parent=1 // pred_region
      _
    $region17: #{lpgnn_layer_fwd.15} parent=1 // pred_fallthru
      _
    // Predicated region
    $region18: #{lpgnn_layer_fwd.15} parent=1 // pred_check
      _
    $region19: #{lpgnn_layer_fwd.15} parent=1 // pred_check_branch
      %23 = sbr.rel (0) target = $region21
    $region20: #{lpgnn_layer_fwd.15} parent=1 // pred_region
      _
    $region21: #{lpgnn_layer_fwd.15} parent=1 // pred_fallthru
      _
    // Predicated region
    $region22: #{lpgnn_layer_fwd.15} parent=1 // pred_check
      _
    $region23: #{lpgnn_layer_fwd.15} parent=1 // pred_check_branch
      %25 = sbr.rel (0) target = $region25
    $region24: #{lpgnn_layer_fwd.15} parent=1 // pred_region
      _
    $region25: #{lpgnn_layer_fwd.15} parent=1 // pred_fallthru
      _
    // Predicated region
    $region26: #{lpgnn_layer_fwd.15} parent=1 // pred_check
      _
    $region27: #{lpgnn_layer_fwd.15} parent=1 // pred_check_branch
      %27 = sbr.rel (0) target = $region29
    $region28: #{lpgnn_layer_fwd.15} parent=1 // pred_region
      _
    $region29: #{lpgnn_layer_fwd.15} parent=1 // pred_fallthru
      _
    // Predicated region
    $region30: #{lpgnn_layer_fwd.15} parent=1 // pred_check
      _
    $region31: #{lpgnn_layer_fwd.15} parent=1 // pred_check_branch
      %29 = sbr.rel (0) target = $region33
    $region32: #{lpgnn_layer_fwd.15} parent=1 // pred_region
      _
    $region33: #{lpgnn_layer_fwd.15} parent=1 // pred_fallthru
      _
    %v31 = vld [vmem:[%s0] sm:$0xff]
    %v32 = vld [vmem:[%s0 + $0x8] sm:$0x3]
    %v33 = vld [vmem:[%s1] sm:$0x1]
    %v35 = vlaneseq
    %v36 = vshrl.u32 %v35, 7
    %v37 = vsub.s32 0, %v36
    %v38 = vrot.slane %v33, %v37
    %v40 = vmul.f32 %v31, %v38
    %v41 = vmul.f32 %v32, %v38
    %42 = vadd.xlane.f32.xlu0 %v40
    %v43 = vpop.xlane.xlu0 %42
    %vm44 = vcmask 1041408
    %v45 = vsel %vm44, %v41, 0.0
    %46 = vadd.xlane.f32.xlu0 %v45
    %v47 = vpop.xlane.xlu0 %46
    %v48 = vmul.f32 %v43, 0.03125
    %v49 = vmul.f32 %v47, 0.03125
    %v50 = vsub.f32 %v40, %v48
    %v51 = vsub.f32 %v41, %v49
    %v52 = vmul.f32 %v50, %v38
    %v53 = vmul.f32 %v51, %v38
    %v54 = vmul.f32 %v52, %v52
    %v55 = vmul.f32 %v53, %v53
    %56 = vadd.xlane.f32.xlu0 %v54
    %v57 = vpop.xlane.xlu0 %56
    %v58 = vsel %vm44, %v55, 0.0
    %59 = vadd.xlane.f32.xlu0 %v58
    %v60 = vpop.xlane.xlu0 %59
    %v61 = vmul.f32 %v57, 0.03125
    %v62 = vmul.f32 %v60, 0.03125
    %v63 = vadd.f32 %v61, 1e-05
    %v64 = vadd.f32 %v62, 1e-05
    %v65 = vrsqrt.pop %v63
    %v66 = vrsqrt.pop %v64
    %v67 = vmul.f32 %v52, %v65
    %v68 = vmul.f32 %v53, %v66
    %v69 = vld [vmem:[%s2] sm:$0x1]
    %v71 = vlaneseq
    %v72 = vshrl.u32 %v71, 7
    %v73 = vsub.s32 0, %v72
    %v74 = vrot.slane %v69, %v73
    %v76 = vmul.f32 %v67, %v74
    %v77 = vmul.f32 %v68, %v74
    %v78 = vld [vmem:[%s3] sm:$0x1]
    %v80 = vlaneseq
    %v81 = vshrl.u32 %v80, 7
    %v82 = vsub.s32 0, %v81
    %v83 = vrot.slane %v78, %v82
    %v85 = vadd.f32 %v76, %v83
    %v86 = vadd.f32 %v77, %v83
    %v87 = vpack.c.bf16 %v86, %v85
    %v88 = vld [vmem:[%s4] sm:$0xf]
    %v89 = vld [vmem:[%s4 + $0x4] sm:$0xf]
    %v90 = vld [vmem:[%s4 + $0x8] sm:$0xf]
    %v91 = vld [vmem:[%s4 + $0xc] sm:$0xf]
    %v92 = vld [vmem:[%s4 + $0x10] sm:$0xf]
    %v93 = vld [vmem:[%s4 + $0x14] sm:$0xf]
    %v94 = vld [vmem:[%s4 + $0x18] sm:$0xf]
    %v95 = vld [vmem:[%s4 + $0x1c] sm:$0xf]
    %v96 = vld [vmem:[%s4 + $0x20] sm:$0xf]
    %v97 = vld [vmem:[%s4 + $0x24] sm:$0xf]
    %v98 = vld [vmem:[%s4 + $0x28] sm:$0xf]
    %v99 = vld [vmem:[%s4 + $0x2c] sm:$0xf]
    %v100 = vld [vmem:[%s4 + $0x30] sm:$0xf]
    %v101 = vld [vmem:[%s4 + $0x34] sm:$0xf]
    %v102 = vld [vmem:[%s4 + $0x38] sm:$0xf]
    %v103 = vld [vmem:[%s4 + $0x3c] sm:$0xf]
    %v104 = vld [vmem:[%s5] sm:$0x1]
    %v106 = vlaneseq
    %v107 = vshrl.u32 %v106, 7
    %v108 = vsub.s32 0, %v107
    %v109 = vrot.slane %v104, %v108
    %v127 = vunpack.c.l.b16 %v88
    %v128 = vunpack.c.l.b16 %v89
    %v129 = vunpack.c.l.b16 %v90
    %v130 = vunpack.c.l.b16 %v91
    %v131 = vunpack.c.l.b16 %v92
    %v132 = vunpack.c.l.b16 %v93
    %v133 = vunpack.c.l.b16 %v94
    %v134 = vunpack.c.l.b16 %v95
    %v135 = vunpack.c.l.b16 %v96
    %v136 = vunpack.c.l.b16 %v97
    %v137 = vunpack.c.l.b16 %v98
    %v138 = vunpack.c.l.b16 %v99
    %v139 = vunpack.c.l.b16 %v100
    %v140 = vunpack.c.l.b16 %v101
    %v141 = vunpack.c.l.b16 %v102
    %v142 = vunpack.c.l.b16 %v103
    %v143 = vpack.c.b16 %v128, %v127
    %v144 = vpack.c.b16 %v130, %v129
    %v145 = vpack.c.b16 %v132, %v131
    %v146 = vpack.c.b16 %v134, %v133
    %v147 = vpack.c.b16 %v136, %v135
    %v148 = vpack.c.b16 %v138, %v137
    %v149 = vpack.c.b16 %v140, %v139
    %v150 = vpack.c.b16 %v142, %v141
    %159 = vmatprep.subr.bf16.mxu0 0
    %160 = vmatpush1.bf16.msra.mxu0 %v143
    %161 = vmatprep.subr.bf16.mxu0 0
    %162 = vmatpush1.bf16.msra.mxu0 %v144
    %163 = vmatprep.subr.bf16.mxu0 0
    %164 = vmatpush1.bf16.msra.mxu0 %v145
    %165 = vmatprep.subr.bf16.mxu0 0
    %166 = vmatpush1.bf16.msra.mxu0 %v146
    %167 = vmatprep.subr.bf16.mxu0 0
    %168 = vmatpush1.bf16.msra.mxu0 %v147
    %169 = vmatprep.subr.bf16.mxu0 0
    %170 = vmatpush1.bf16.msra.mxu0 %v148
    %171 = vmatprep.subr.bf16.mxu0 0
    %172 = vmatpush1.bf16.msra.mxu0 %v149
    %173 = vmatprep.subr.bf16.mxu0 0
    %174 = vmatpush1.bf16.msra.mxu0 %v150
    %175 = vmatprep.subr.bf16.mxu0 0
    %176 = vmatpush1.bf16.msra.mxu0 0
    %177 = vmatprep.subr.bf16.mxu0 0
    %178 = vmatpush1.bf16.msra.mxu0 0
    %179 = vmatprep.subr.bf16.mxu0 0
    %180 = vmatpush1.bf16.msra.mxu0 0
    %181 = vmatprep.subr.bf16.mxu0 0
    %182 = vmatpush1.bf16.msra.mxu0 0
    %183 = vmatprep.subr.bf16.mxu0 0
    %184 = vmatpush1.bf16.msra.mxu0 0
    %185 = vmatprep.subr.bf16.mxu0 0
    %186 = vmatpush1.bf16.msra.mxu0 0
    %187 = vmatprep.subr.bf16.mxu0 0
    %188 = vmatpush1.bf16.msra.mxu0 0
    %189 = vmatprep.subr.bf16.mxu0 0
    %190 = vmatpush1.bf16.msra.mxu0 0
    %191 = vmatprep.mubr.bf16.mxu0 0
    %192 = vmatmul.mubr.bf16.gmra.mrb[0].mxu0 %v87
    %v193 = vpop.f32.mrb[0].mxu0
    %v194 = vadd.f32 %v109, %v193
    %v195 = vpop.f32.mrb[0].mxu0
    %v196 = vpop.f32.mrb[0].mxu0
    %v197 = vadd.f32 %v109, %v196
    %v198 = vpop.f32.mrb[0].mxu0
    %199 = vdwg.mxu0
    %v200 = vmax.f32 %v194, 0.0
    %v201 = vmax.f32 %v197, 0.0
    %v202 = vpack.c.bf16 %v201, %v200
    %v203 = vld [vmem:[%s6] sm:$0xf]
    %v204 = vld [vmem:[%s6 + $0x4] sm:$0xf]
    %v205 = vld [vmem:[%s6 + $0x8] sm:$0xf]
    %v206 = vld [vmem:[%s6 + $0xc] sm:$0xf]
    %v207 = vld [vmem:[%s6 + $0x10] sm:$0xf]
    %v208 = vld [vmem:[%s6 + $0x14] sm:$0xf]
    %v209 = vld [vmem:[%s6 + $0x18] sm:$0xf]
    %v210 = vld [vmem:[%s6 + $0x1c] sm:$0xf]
    %v211 = vld [vmem:[%s7] sm:$0x1]
    %v213 = vlaneseq
    %v214 = vshrl.u32 %v213, 7
    %v215 = vsub.s32 0, %v214
    %v216 = vrot.slane %v211, %v215
    %v226 = vunpack.c.l.b16 %v203
    %v227 = vunpack.c.l.b16 %v204
    %v228 = vunpack.c.l.b16 %v205
    %v229 = vunpack.c.l.b16 %v206
    %v230 = vunpack.c.l.b16 %v207
    %v231 = vunpack.c.l.b16 %v208
    %v232 = vunpack.c.l.b16 %v209
    %v233 = vunpack.c.l.b16 %v210
    %v234 = vpack.c.b16 %v227, %v226
    %v235 = vpack.c.b16 %v229, %v228
    %v236 = vpack.c.b16 %v231, %v230
    %v237 = vpack.c.b16 %v233, %v232
    %vm242 = vcmask 523264
    %v244 = vsel %vm242, %v202, 0
    %246 = vmatprep.subr.bf16.mxu0 0
    %247 = vmatpush1.bf16.msra.mxu0 %v234
    %248 = vmatprep.subr.bf16.mxu0 0
    %249 = vmatpush1.bf16.msra.mxu0 %v235
    %250 = vmatprep.subr.bf16.mxu0 0
    %251 = vmatpush1.bf16.msra.mxu0 %v236
    %252 = vmatprep.subr.bf16.mxu0 0
    %253 = vmatpush1.bf16.msra.mxu0 %v237
    %254 = vmatprep.subr.bf16.mxu0 0
    %255 = vmatpush1.bf16.msra.mxu0 0
    %256 = vmatprep.subr.bf16.mxu0 0
    %257 = vmatpush1.bf16.msra.mxu0 0
    %258 = vmatprep.subr.bf16.mxu0 0
    %259 = vmatpush1.bf16.msra.mxu0 0
    %260 = vmatprep.subr.bf16.mxu0 0
    %261 = vmatpush1.bf16.msra.mxu0 0
    %262 = vmatprep.subr.bf16.mxu0 0
    %263 = vmatpush1.bf16.msra.mxu0 0
    %264 = vmatprep.subr.bf16.mxu0 0
    %265 = vmatpush1.bf16.msra.mxu0 0
    %266 = vmatprep.subr.bf16.mxu0 0
    %267 = vmatpush1.bf16.msra.mxu0 0
    %268 = vmatprep.subr.bf16.mxu0 0
    %269 = vmatpush1.bf16.msra.mxu0 0
    %270 = vmatprep.subr.bf16.mxu0 0
    %271 = vmatpush1.bf16.msra.mxu0 0
    %272 = vmatprep.subr.bf16.mxu0 0
    %273 = vmatpush1.bf16.msra.mxu0 0
    %274 = vmatprep.subr.bf16.mxu0 0
    %275 = vmatpush1.bf16.msra.mxu0 0
    %276 = vmatprep.subr.bf16.mxu0 0
    %277 = vmatpush1.bf16.msra.mxu0 0
    %278 = vmatprep.mubr.bf16.mxu0 0
    %279 = vmatmul.mubr.bf16.gmra.mrb[0].mxu0 %v244
    %v280 = vpop.f32.mrb[0].mxu0
    %v281 = vadd.f32 %v216, %v280
    %v282 = vpop.f32.mrb[0].mxu0
    %v283 = vpop.f32.mrb[0].mxu0
    %v284 = vadd.f32 %v216, %v283
    %v285 = vpop.f32.mrb[0].mxu0
    %286 = vdwg.mxu0
    %v287 = vadd.f32 %v31, %v281
    %v288 = vadd.f32 %v32, %v284
    %289 = vst [vmem:[#allocation2] sm:$0xff] %v287
    %290 = vst [vmem:[#allocation2 + $0x8] sm:$0x3] %v288
    // Predicated region
    $region34: #{lpgnn_layer_fwd.15} parent=1 // pred_check
      _
    $region35: #{lpgnn_layer_fwd.15} parent=1 // pred_check_branch
      %292 = sbr.rel (0) target = $region37
    $region36: #{lpgnn_layer_fwd.15} parent=1 // pred_region
      %s294 = ssub.s32 256, 256
      %295 = vsyncadd [#allocation3], %s294
      %s296 = sshll.u32 [#allocation2], 4
      %s297 = int_to_ptr.vmem [resolvable:$true] %s296
      %302 = dma.vmem_to_hbm [thread:$0]  %s297, 256, %s8, [#allocation3], 128, 128, 8
    $region37: #{lpgnn_layer_fwd.15} parent=1 // pred_fallthru
      _
    // Predicated region
    $region38: #{lpgnn_layer_fwd.15} parent=1 // pred_check
      _
    $region39: #{lpgnn_layer_fwd.15} parent=1 // pred_check_branch
      %304 = sbr.rel (0) target = $region41
    $region40: #{lpgnn_layer_fwd.15} parent=1 // pred_region
      %305 = dma.done [#allocation3], 256
    $region41: #{lpgnn_layer_fwd.15} parent=1 // pred_fallthru
      _
    %306 = vsyncpa [#allocation3], 1

// kernel: lpgnn_layer_fwd.12
$region0: #{lpgnn_layer_fwd.12}
  #allocation0 [shape = 'u32[]', space=smem, size = 0x4, offset = 0x4, fixed_abs, tag = 'smem constant byte address 0x4 - core index']
  #allocation1 [shape = 'u32[144,128]{1,0:T(1,128)}', space=vmem, size = 0x12000, scoped, tag = 'internal scratch']
  %s0 = inlined_call_operand.vmem [shape: f32[8,128], index: 0, kind: input, shape index: {}]
  %s1 = inlined_call_operand.vmem [shape: f32[1,128], index: 1, kind: input, shape index: {}]
  %s2 = inlined_call_operand.vmem [shape: f32[1,128], index: 2, kind: input, shape index: {}]
  %s3 = inlined_call_operand.vmem [shape: f32[1,128], index: 3, kind: input, shape index: {}]
  %s4 = inlined_call_operand.vmem [shape: bf16[128,384], index: 4, kind: input, shape index: {}]
  %s5 = inlined_call_operand.vmem [shape: f32[1,384], index: 5, kind: input, shape index: {}]
  %s6 = inlined_call_operand.vmem [shape: bf16[8,384], index: 6, kind: output, shape index: {}]
  %s7 = sld [smem:[#allocation0]]
  $region34: #{lpgnn_layer_fwd.12} parent=0
    _
  %s9 = ssub.s32 1, %s7
  %s10 = scalar_select 0, %s9, %s7
  // Predicated region
  $region2: #{lpgnn_layer_fwd.12} parent=0 // pred_check
    _
  $region3: #{lpgnn_layer_fwd.12} parent=0 // pred_check_branch
    %12 = sbr.rel (0) target = $region5
  $region4: #{lpgnn_layer_fwd.12} parent=0 // pred_region
    _
  $region5: #{lpgnn_layer_fwd.12} parent=0 // pred_fallthru
    _
  // Predicated region
  $region6: #{lpgnn_layer_fwd.12} parent=0 // pred_check
    _
  $region7: #{lpgnn_layer_fwd.12} parent=0 // pred_check_branch
    %14 = sbr.rel (0) target = $region9
  $region8: #{lpgnn_layer_fwd.12} parent=0 // pred_region
    _
  $region9: #{lpgnn_layer_fwd.12} parent=0 // pred_fallthru
    _
  // Predicated region
  $region10: #{lpgnn_layer_fwd.12} parent=0 // pred_check
    _
  $region11: #{lpgnn_layer_fwd.12} parent=0 // pred_check_branch
    %16 = sbr.rel (0) target = $region13
  $region12: #{lpgnn_layer_fwd.12} parent=0 // pred_region
    _
  $region13: #{lpgnn_layer_fwd.12} parent=0 // pred_fallthru
    _
  // Predicated region
  $region14: #{lpgnn_layer_fwd.12} parent=0 // pred_check
    _
  $region15: #{lpgnn_layer_fwd.12} parent=0 // pred_check_branch
    %18 = sbr.rel (0) target = $region17
  $region16: #{lpgnn_layer_fwd.12} parent=0 // pred_region
    _
  $region17: #{lpgnn_layer_fwd.12} parent=0 // pred_fallthru
    _
  // Predicated region
  $region18: #{lpgnn_layer_fwd.12} parent=0 // pred_check
    _
  $region19: #{lpgnn_layer_fwd.12} parent=0 // pred_check_branch
    %20 = sbr.rel (0) target = $region21
  $region20: #{lpgnn_layer_fwd.12} parent=0 // pred_region
    _
  $region21: #{lpgnn_layer_fwd.12} parent=0 // pred_fallthru
    _
  // Predicated region
  $region22: #{lpgnn_layer_fwd.12} parent=0 // pred_check
    _
  $region23: #{lpgnn_layer_fwd.12} parent=0 // pred_check_branch
    %22 = sbr.rel (0) target = $region25
  $region24: #{lpgnn_layer_fwd.12} parent=0 // pred_region
    _
  $region25: #{lpgnn_layer_fwd.12} parent=0 // pred_fallthru
    _
  %v24 = vld [vmem:[%s0] sm:$0xff]
  %v25 = vld [vmem:[%s1] sm:$0x1]
  %v27 = vlaneseq
  %v28 = vshrl.u32 %v27, 7
  %v29 = vsub.s32 0, %v28
  %v30 = vrot.slane %v25, %v29
  %v32 = vmul.f32 %v24, %v30
  %33 = vadd.xlane.f32.xlu0 %v32
  %v34 = vpop.xlane.xlu0 %33
  %v35 = vmul.f32 %v34, 0.03125
  %v36 = vsub.f32 %v32, %v35
  %v37 = vmul.f32 %v36, %v30
  %v38 = vmul.f32 %v37, %v37
  %39 = vadd.xlane.f32.xlu0 %v38
  %v40 = vpop.xlane.xlu0 %39
  %v41 = vmul.f32 %v40, 0.03125
  %v42 = vadd.f32 %v41, 1e-05
  %v43 = vrsqrt.pop %v42
  %v44 = vmul.f32 %v37, %v43
  %v45 = vld [vmem:[%s2] sm:$0x1]
  %v47 = vlaneseq
  %v48 = vshrl.u32 %v47, 7
  %v49 = vsub.s32 0, %v48
  %v50 = vrot.slane %v45, %v49
  %v52 = vmul.f32 %v44, %v50
  %v53 = vld [vmem:[%s3] sm:$0x1]
  %v55 = vlaneseq
  %v56 = vshrl.u32 %v55, 7
  %v57 = vsub.s32 0, %v56
  %v58 = vrot.slane %v53, %v57
  %v60 = vadd.f32 %v52, %v58
  %v61 = vpack.c.bf16 %v60, %v60
  %v62 = vld [vmem:[%s4] sm:$0xff]
  %v63 = vld [vmem:[%s4 + $0x8] sm:$0xf]
  %v64 = vld [vmem:[%s4 + $0xc] sm:$0xff]
  %v65 = vld [vmem:[%s4 + $0x14] sm:$0xf]
  %v66 = vld [vmem:[%s4 + $0x18] sm:$0xff]
  %v67 = vld [vmem:[%s4 + $0x20] sm:$0xf]
  %v68 = vld [vmem:[%s4 + $0x24] sm:$0xff]
  %v69 = vld [vmem:[%s4 + $0x2c] sm:$0xf]
  %v70 = vld [vmem:[%s4 + $0x30] sm:$0xff]
  %v71 = vld [vmem:[%s4 + $0x38] sm:$0xf]
  %v72 = vld [vmem:[%s4 + $0x3c] sm:$0xff]
  %v73 = vld [vmem:[%s4 + $0x44] sm:$0xf]
  %v74 = vld [vmem:[%s4 + $0x48] sm:$0xff]
  %v75 = vld [vmem:[%s4 + $0x50] sm:$0xf]
  %v76 = vld [vmem:[%s4 + $0x54] sm:$0xff]
  %v77 = vld [vmem:[%s4 + $0x5c] sm:$0xf]
  %v78 = vld [vmem:[%s4 + $0x60] sm:$0xff]
  %v79 = vld [vmem:[%s4 + $0x68] sm:$0xf]
  %v80 = vld [vmem:[%s4 + $0x6c] sm:$0xff]
  %v81 = vld [vmem:[%s4 + $0x74] sm:$0xf]
  %v82 = vld [vmem:[%s4 + $0x78] sm:$0xff]
  %v83 = vld [vmem:[%s4 + $0x80] sm:$0xf]
  %v84 = vld [vmem:[%s4 + $0x84] sm:$0xff]
  %v85 = vld [vmem:[%s4 + $0x8c] sm:$0xf]
  %v86 = vld [vmem:[%s4 + $0x90] sm:$0xff]
  %v87 = vld [vmem:[%s4 + $0x98] sm:$0xf]
  %v88 = vld [vmem:[%s4 + $0x9c] sm:$0xff]
  %v89 = vld [vmem:[%s4 + $0xa4] sm:$0xf]
  %v90 = vld [vmem:[%s4 + $0xa8] sm:$0xff]
  %v91 = vld [vmem:[%s4 + $0xb0] sm:$0xf]
  %v92 = vld [vmem:[%s4 + $0xb4] sm:$0xff]
  %v93 = vld [vmem:[%s4 + $0xbc] sm:$0xf]
  %v94 = vld [vmem:[%s5] sm:$0x7]
  %v96 = vlaneseq
  %v97 = vshrl.u32 %v96, 7
  %v98 = vsub.s32 0, %v97
  %v99 = vrot.slane %v94, %v98
  %v100 = vlaneseq
  %v101 = vshrl.u32 %v100, 7
  %v102 = vsub.s32 1, %v101
  %v103 = vrot.slane %v94, %v102
  %v104 = vlaneseq
  %v105 = vshrl.u32 %v104, 7
  %v106 = vsub.s32 2, %v105
  %v107 = vrot.slane %v94, %v106
  %v143 = vunpack.c.l.b16 %v62
  %v144 = vunpack.c.h.b16 %v62
  %v145 = vunpack.c.l.b16 %v63
  %v146 = vunpack.c.l.b16 %v64
  %v147 = vunpack.c.h.b16 %v64
  %v148 = vunpack.c.l.b16 %v65
  %v149 = vunpack.c.l.b16 %v66
  %v150 = vunpack.c.h.b16 %v66
  %v151 = vunpack.c.l.b16 %v67
  %v152 = vunpack.c.l.b16 %v68
  %v153 = vunpack.c.h.b16 %v68
  %v154 = vunpack.c.l.b16 %v69
  %v155 = vunpack.c.l.b16 %v70
  %v156 = vunpack.c.h.b16 %v70
  %v157 = vunpack.c.l.b16 %v71
  %v158 = vunpack.c.l.b16 %v72
  %v159 = vunpack.c.h.b16 %v72
  %v160 = vunpack.c.l.b16 %v73
  %v161 = vunpack.c.l.b16 %v74
  %v162 = vunpack.c.h.b16 %v74
  %v163 = vunpack.c.l.b16 %v75
  %v164 = vunpack.c.l.b16 %v76
  %v165 = vunpack.c.h.b16 %v76
  %v166 = vunpack.c.l.b16 %v77
  %v167 = vunpack.c.l.b16 %v78
  %v168 = vunpack.c.h.b16 %v78
  %v169 = vunpack.c.l.b16 %v79
  %v170 = vunpack.c.l.b16 %v80
  %v171 = vunpack.c.h.b16 %v80
  %v172 = vunpack.c.l.b16 %v81
  %v173 = vunpack.c.l.b16 %v82
  %v174 = vunpack.c.h.b16 %v82
  %v175 = vunpack.c.l.b16 %v83
  %v176 = vunpack.c.l.b16 %v84
  %v177 = vunpack.c.h.b16 %v84
  %v178 = vunpack.c.l.b16 %v85
  %v179 = vunpack.c.l.b16 %v86
  %v180 = vunpack.c.h.b16 %v86
  %v181 = vunpack.c.l.b16 %v87
  %v182 = vunpack.c.l.b16 %v88
  %v183 = vunpack.c.h.b16 %v88
  %v184 = vunpack.c.l.b16 %v89
  %v185 = vunpack.c.l.b16 %v90
  %v186 = vunpack.c.h.b16 %v90
  %v187 = vunpack.c.l.b16 %v91
  %v188 = vunpack.c.l.b16 %v92
  %v189 = vunpack.c.h.b16 %v92
  %v190 = vunpack.c.l.b16 %v93
  %v191 = vpack.c.b16 %v146, %v143
  %v192 = vpack.c.b16 %v147, %v144
  %v193 = vpack.c.b16 %v148, %v145
  %v194 = vpack.c.b16 %v152, %v149
  %v195 = vpack.c.b16 %v153, %v150
  %v196 = vpack.c.b16 %v154, %v151
  %v197 = vpack.c.b16 %v158, %v155
  %v198 = vpack.c.b16 %v159, %v156
  %v199 = vpack.c.b16 %v160, %v157
  %v200 = vpack.c.b16 %v164, %v161
  %v201 = vpack.c.b16 %v165, %v162
  %v202 = vpack.c.b16 %v166, %v163
  %v203 = vpack.c.b16 %v170, %v167
  %v204 = vpack.c.b16 %v171, %v168
  %v205 = vpack.c.b16 %v172, %v169
  %v206 = vpack.c.b16 %v176, %v173
  %v207 = vpack.c.b16 %v177, %v174
  %v208 = vpack.c.b16 %v178, %v175
  %v209 = vpack.c.b16 %v182, %v179
  %v210 = vpack.c.b16 %v183, %v180
  %v211 = vpack.c.b16 %v184, %v181
  %v212 = vpack.c.b16 %v188, %v185
  %v213 = vpack.c.b16 %v189, %v186
  %v214 = vpack.c.b16 %v190, %v187
  %239 = vmatprep.subr.bf16.mxu0 %v192
  %240 = vmatpush1.bf16.msra.mxu0 %v191
  %241 = vmatprep.subr.bf16.mxu0 %v195
  %242 = vmatpush1.bf16.msra.mxu0 %v194
  %243 = vmatprep.subr.bf16.mxu0 %v198
  %244 = vmatpush1.bf16.msra.mxu0 %v197
  %245 = vmatprep.subr.bf16.mxu0 %v201
  %246 = vmatpush1.bf16.msra.mxu0 %v200
  %247 = vmatprep.subr.bf16.mxu0 %v204
  %248 = vmatpush1.bf16.msra.mxu0 %v203
  %249 = vmatprep.subr.bf16.mxu0 %v207
  %250 = vmatpush1.bf16.msra.mxu0 %v206
  %251 = vmatprep.subr.bf16.mxu0 %v210
  %252 = vmatpush1.bf16.msra.mxu0 %v209
  %253 = vmatprep.subr.bf16.mxu0 %v213
  %254 = vmatpush1.bf16.msra.mxu0 %v212
  %255 = vmatprep.subr.bf16.mxu0 0
  %256 = vmatpush1.bf16.msra.mxu0 0
  %257 = vmatprep.subr.bf16.mxu0 0
  %258 = vmatpush1.bf16.msra.mxu0 0
  %259 = vmatprep.subr.bf16.mxu0 0
  %260 = vmatpush1.bf16.msra.mxu0 0
  %261 = vmatprep.subr.bf16.mxu0 0
  %262 = vmatpush1.bf16.msra.mxu0 0
  %263 = vmatprep.subr.bf16.mxu0 0
  %264 = vmatpush1.bf16.msra.mxu0 0
  %265 = vmatprep.subr.bf16.mxu0 0
  %266 = vmatpush1.bf16.msra.mxu0 0
  %267 = vmatprep.subr.bf16.mxu0 0
  %268 = vmatpush1.bf16.msra.mxu0 0
  %269 = vmatprep.subr.bf16.mxu0 0
  %270 = vmatpush1.bf16.msra.mxu0 0
  %271 = vmatprep.mubr.bf16.mxu0 0
  %272 = vmatmul.mubr.bf16.gmra.mrb[0].mxu0 %v61
  %v273 = vpop.f32.mrb[0].mxu0
  %v274 = vadd.f32 %v99, %v273
  %v275 = vpop.f32.mrb[0].mxu0
  %v276 = vadd.f32 %v103, %v275
  %v277 = vpop.f32.mrb[0].mxu0
  %v278 = vpop.f32.mrb[0].mxu0
  %279 = vdwg.mxu0
  %280 = vmatprep.subr.bf16.mxu0 0
  %281 = vmatpush1.bf16.msra.mxu0 %v193
  %282 = vmatprep.subr.bf16.mxu0 0
  %283 = vmatpush1.bf16.msra.mxu0 %v196
  %284 = vmatprep.subr.bf16.mxu0 0
  %285 = vmatpush1.bf16.msra.mxu0 %v199
  %286 = vmatprep.subr.bf16.mxu0 0
  %287 = vmatpush1.bf16.msra.mxu0 %v202
  %288 = vmatprep.subr.bf16.mxu0 0
  %289 = vmatpush1.bf16.msra.mxu0 %v205
  %290 = vmatprep.subr.bf16.mxu0 0
  %291 = vmatpush1.bf16.msra.mxu0 %v208
  %292 = vmatprep.subr.bf16.mxu0 0
  %293 = vmatpush1.bf16.msra.mxu0 %v211
  %294 = vmatprep.subr.bf16.mxu0 0
  %295 = vmatpush1.bf16.msra.mxu0 %v214
  %296 = vmatprep.subr.bf16.mxu0 0
  %297 = vmatpush1.bf16.msra.mxu0 0
  %298 = vmatprep.subr.bf16.mxu0 0
  %299 = vmatpush1.bf16.msra.mxu0 0
  %300 = vmatprep.subr.bf16.mxu0 0
  %301 = vmatpush1.bf16.msra.mxu0 0
  %302 = vmatprep.subr.bf16.mxu0 0
  %303 = vmatpush1.bf16.msra.mxu0 0
  %304 = vmatprep.subr.bf16.mxu0 0
  %305 = vmatpush1.bf16.msra.mxu0 0
  %306 = vmatprep.subr.bf16.mxu0 0
  %307 = vmatpush1.bf16.msra.mxu0 0
  %308 = vmatprep.subr.bf16.mxu0 0
  %309 = vmatpush1.bf16.msra.mxu0 0
  %310 = vmatprep.subr.bf16.mxu0 0
  %311 = vmatpush1.bf16.msra.mxu0 0
  %312 = vmatprep.mubr.bf16.mxu0 0
  %313 = vmatmul.mubr.bf16.gmra.mrb[0].mxu0 %v61
  %v314 = vpop.f32.mrb[0].mxu0
  %v315 = vadd.f32 %v107, %v314
  %v316 = vpop.f32.mrb[0].mxu0
  %v317 = vpop.f32.mrb[0].mxu0
  %v318 = vpop.f32.mrb[0].mxu0
  %319 = vdwg.mxu0
  %v320 = vpack.c.bf16 %v274, %v274
  %v321 = vpack.c.bf16 %v276, %v276
  %v322 = vpack.c.bf16 %v315, %v315
  %v326 = vunpack.c.l.b16 %v320
  %v327 = vunpack.c.l.b16 %v321
  %v328 = vunpack.c.l.b16 %v322
  %v329 = vpack.c.b16 %v327, %v326
  %v330 = vpack.c.b16 %v328, %v328
  %333 = vst [vmem:[%s6] sm:$0xff] %v329
  %334 = vst [vmem:[%s6 + $0x8] sm:$0xf] %v330
  // Predicated region
  $region26: #{lpgnn_layer_fwd.12} parent=0 // pred_check
    _
  $region27: #{lpgnn_layer_fwd.12} parent=0 // pred_check_branch
    %336 = sbr.rel (0) target = $region29
  $region28: #{lpgnn_layer_fwd.12} parent=0 // pred_region
    _
  $region29: #{lpgnn_layer_fwd.12} parent=0 // pred_fallthru
    _
  // Predicated region
  $region30: #{lpgnn_layer_fwd.12} parent=0 // pred_check
    _
  $region31: #{lpgnn_layer_fwd.12} parent=0 // pred_check_branch
    %338 = sbr.rel (0) target = $region33
  $region32: #{lpgnn_layer_fwd.12} parent=0 // pred_region
    _
  $region33: #{lpgnn_layer_fwd.12} parent=0 // pred_fallthru
    _

// kernel: lpgnn_layer_fwd.14
$region0: #{lpgnn_layer_fwd.14}
  #allocation0 [shape = 'u32[]', space=smem, size = 0x4, offset = 0x4, fixed_abs, tag = 'smem constant byte address 0x4 - core index']
  #allocation1 [shape = 'u32[144,128]{1,0:T(1,128)}', space=vmem, size = 0x12000, scoped, tag = 'internal scratch']
  %s0 = inlined_call_operand.vmem [shape: bf16[50,128], index: 0, kind: input, shape index: {}]
  %s1 = inlined_call_operand.vmem [shape: bf16[50,128], index: 1, kind: input, shape index: {}]
  %s2 = inlined_call_operand.vmem [shape: bf16[50,128], index: 2, kind: input, shape index: {}]
  %s3 = inlined_call_operand.vmem [shape: f32[50,1], index: 3, kind: input, shape index: {}]
  %s4 = inlined_call_operand.vmem [shape: f32[50,10], index: 4, kind: input, shape index: {}]
  %s5 = inlined_call_operand.vmem [shape: bf16[32,128], index: 5, kind: input, shape index: {}]
  %s6 = inlined_call_operand.vmem [shape: f32[1,128], index: 6, kind: input, shape index: {}]
  %s7 = inlined_call_operand.vmem [shape: f32[10,128], index: 7, kind: input, shape index: {}]
  %s8 = inlined_call_operand.vmem [shape: f32[10,128], index: 8, kind: output, shape index: {}]
  %s9 = sld [smem:[#allocation0]]
  $region42: #{lpgnn_layer_fwd.14} parent=0
    _
  %s11 = ssub.s32 1, %s9
  %s12 = scalar_select 0, %s11, %s9
  // Predicated region
  $region2: #{lpgnn_layer_fwd.14} parent=0 // pred_check
    _
  $region3: #{lpgnn_layer_fwd.14} parent=0 // pred_check_branch
    %14 = sbr.rel (0) target = $region5
  $region4: #{lpgnn_layer_fwd.14} parent=0 // pred_region
    _
  $region5: #{lpgnn_layer_fwd.14} parent=0 // pred_fallthru
    _
  // Predicated region
  $region6: #{lpgnn_layer_fwd.14} parent=0 // pred_check
    _
  $region7: #{lpgnn_layer_fwd.14} parent=0 // pred_check_branch
    %16 = sbr.rel (0) target = $region9
  $region8: #{lpgnn_layer_fwd.14} parent=0 // pred_region
    _
  $region9: #{lpgnn_layer_fwd.14} parent=0 // pred_fallthru
    _
  // Predicated region
  $region10: #{lpgnn_layer_fwd.14} parent=0 // pred_check
    _
  $region11: #{lpgnn_layer_fwd.14} parent=0 // pred_check_branch
    %18 = sbr.rel (0) target = $region13
  $region12: #{lpgnn_layer_fwd.14} parent=0 // pred_region
    _
  $region13: #{lpgnn_layer_fwd.14} parent=0 // pred_fallthru
    _
  // Predicated region
  $region14: #{lpgnn_layer_fwd.14} parent=0 // pred_check
    _
  $region15: #{lpgnn_layer_fwd.14} parent=0 // pred_check_branch
    %20 = sbr.rel (0) target = $region17
  $region16: #{lpgnn_layer_fwd.14} parent=0 // pred_region
    _
  $region17: #{lpgnn_layer_fwd.14} parent=0 // pred_fallthru
    _
  // Predicated region
  $region18: #{lpgnn_layer_fwd.14} parent=0 // pred_check
    _
  $region19: #{lpgnn_layer_fwd.14} parent=0 // pred_check_branch
    %22 = sbr.rel (0) target = $region21
  $region20: #{lpgnn_layer_fwd.14} parent=0 // pred_region
    _
  $region21: #{lpgnn_layer_fwd.14} parent=0 // pred_fallthru
    _
  // Predicated region
  $region22: #{lpgnn_layer_fwd.14} parent=0 // pred_check
    _
  $region23: #{lpgnn_layer_fwd.14} parent=0 // pred_check_branch
    %24 = sbr.rel (0) target = $region25
  $region24: #{lpgnn_layer_fwd.14} parent=0 // pred_region
    _
  $region25: #{lpgnn_layer_fwd.14} parent=0 // pred_fallthru
    _
  // Predicated region
  $region26: #{lpgnn_layer_fwd.14} parent=0 // pred_check
    _
  $region27: #{lpgnn_layer_fwd.14} parent=0 // pred_check_branch
    %26 = sbr.rel (0) target = $region29
  $region28: #{lpgnn_layer_fwd.14} parent=0 // pred_region
    _
  $region29: #{lpgnn_layer_fwd.14} parent=0 // pred_fallthru
    _
  // Predicated region
  $region30: #{lpgnn_layer_fwd.14} parent=0 // pred_check
    _
  $region31: #{lpgnn_layer_fwd.14} parent=0 // pred_check_branch
    %28 = sbr.rel (0) target = $region33
  $region32: #{lpgnn_layer_fwd.14} parent=0 // pred_region
    _
  $region33: #{lpgnn_layer_fwd.14} parent=0 // pred_fallthru
    _
  %v30 = vld [vmem:[%s0] sm:$0xf]
  %v31 = vld [vmem:[%s0 + $0x4] sm:$0xf]
  %v32 = vld [vmem:[%s0 + $0x8] sm:$0xf]
  %v33 = vld [vmem:[%s0 + $0xc] sm:$0xf]
  %v34 = vld [vmem:[%s0 + $0x10] sm:$0xf]
  %v35 = vld [vmem:[%s0 + $0x14] sm:$0xf]
  %v36 = vld [vmem:[%s0 + $0x18] sm:$0x1]
  %v37 = vunpack.c.l.bf16 %v30
  %v38 = vunpack.c.l.bf16 %v31
  %v39 = vunpack.c.l.bf16 %v32
  %v40 = vunpack.c.l.bf16 %v33
  %v41 = vunpack.c.l.bf16 %v34
  %v42 = vunpack.c.l.bf16 %v35
  %v43 = vunpack.c.l.bf16 %v36
  %v44 = vld [vmem:[%s1] sm:$0xf]
  %v45 = vld [vmem:[%s1 + $0x4] sm:$0xf]
  %v46 = vld [vmem:[%s1 + $0x8] sm:$0xf]
  %v47 = vld [vmem:[%s1 + $0xc] sm:$0xf]
  %v48 = vld [vmem:[%s1 + $0x10] sm:$0xf]
  %v49 = vld [vmem:[%s1 + $0x14] sm:$0xf]
  %v50 = vld [vmem:[%s1 + $0x18] sm:$0x1]
  %v51 = vunpack.c.l.bf16 %v44
  %v52 = vunpack.c.l.bf16 %v45
  %v53 = vunpack.c.l.bf16 %v46
  %v54 = vunpack.c.l.bf16 %v47
  %v55 = vunpack.c.l.bf16 %v48
  %v56 = vunpack.c.l.bf16 %v49
  %v57 = vunpack.c.l.bf16 %v50
  %v58 = vld [vmem:[%s2] sm:$0xf]
  %v59 = vld [vmem:[%s2 + $0x4] sm:$0xf]
  %v60 = vld [vmem:[%s2 + $0x8] sm:$0xf]
  %v61 = vld [vmem:[%s2 + $0xc] sm:$0xf]
  %v62 = vld [vmem:[%s2 + $0x10] sm:$0xf]
  %v63 = vld [vmem:[%s2 + $0x14] sm:$0xf]
  %v64 = vld [vmem:[%s2 + $0x18] sm:$0x1]
  %v65 = vunpack.c.l.bf16 %v58
  %v66 = vunpack.c.l.bf16 %v59
  %v67 = vunpack.c.l.bf16 %v60
  %v68 = vunpack.c.l.bf16 %v61
  %v69 = vunpack.c.l.bf16 %v62
  %v70 = vunpack.c.l.bf16 %v63
  %v71 = vunpack.c.l.bf16 %v64
  %v72 = vld [vmem:[%s3] sm:$0xff]
  %v73 = vld [vmem:[%s3 + $0x8] sm:$0xff]
  %v74 = vld [vmem:[%s3 + $0x10] sm:$0xff]
  %v75 = vld [vmem:[%s3 + $0x18] sm:$0xff]
  %v76 = vld [vmem:[%s3 + $0x20] sm:$0xff]
  %v77 = vld [vmem:[%s3 + $0x28] sm:$0xff]
  %v78 = vld [vmem:[%s3 + $0x30] sm:$0x3]
  %v79 = vld [vmem:[%s4] sm:$0xff]
  %v80 = vld [vmem:[%s4 + $0x8] sm:$0xff]
  %v81 = vld [vmem:[%s4 + $0x10] sm:$0xff]
  %v82 = vld [vmem:[%s4 + $0x18] sm:$0xff]
  %v83 = vld [vmem:[%s4 + $0x20] sm:$0xff]
  %v84 = vld [vmem:[%s4 + $0x28] sm:$0xff]
  %v85 = vld [vmem:[%s4 + $0x30] sm:$0x3]
  %v86 = vmul.f32 %v37, %v51
  %v87 = vmul.f32 %v38, %v52
  %v88 = vmul.f32 %v39, %v53
  %v89 = vmul.f32 %v40, %v54
  %v90 = vmul.f32 %v41, %v55
  %v91 = vmul.f32 %v42, %v56
  %v92 = vmul.f32 %v43, %v57
  %vm93 = vcmask 130048
  %v94 = vsel %vm93, %v86, 0.0
  %95 = vadd.xlane.f32.xlu0 %v94
  %v96 = vpop.xlane.xlu0 %95
  %v97 = vsel %vm93, %v87, 0.0
  %98 = vadd.xlane.f32.xlu0 %v97
  %v99 = vpop.xlane.xlu0 %98
  %v100 = vsel %vm93, %v88, 0.0
  %101 = vadd.xlane.f32.xlu0 %v100
  %v102 = vpop.xlane.xlu0 %101
  %v103 = vsel %vm93, %v89, 0.0
  %104 = vadd.xlane.f32.xlu0 %v103
  %v105 = vpop.xlane.xlu0 %104
  %v106 = vsel %vm93, %v90, 0.0
  %107 = vadd.xlane.f32.xlu0 %v106
  %v108 = vpop.xlane.xlu0 %107
  %v109 = vsel %vm93, %v91, 0.0
  %110 = vadd.xlane.f32.xlu0 %v109
  %v111 = vpop.xlane.xlu0 %110
  %vm112 = vcmask 123904
  %v113 = vsel %vm112, %v92, 0.0
  %114 = vadd.xlane.f32.xlu0 %v113
  %v115 = vpop.xlane.xlu0 %114
  %123 = vrot.lane.b32.xlu0 %v86, 112
  %v124 = vpop.permute.xlu0 %123
  %125 = vrot.lane.b32.xlu0 %v87, 112
  %v126 = vpop.permute.xlu0 %125
  %127 = vrot.lane.b32.xlu0 %v88, 112
  %v128 = vpop.permute.xlu0 %127
  %129 = vrot.lane.b32.xlu0 %v89, 112
  %v130 = vpop.permute.xlu0 %129
  %131 = vrot.lane.b32.xlu0 %v90, 112
  %v132 = vpop.permute.xlu0 %131
  %133 = vrot.lane.b32.xlu0 %v91, 112
  %v134 = vpop.permute.xlu0 %133
  %135 = vrot.lane.b32.xlu0 %v92, 112
  %v136 = vpop.permute.xlu0 %135
  %v144 = vsel %vm93, %v124, 0.0
  %145 = vadd.xlane.f32.xlu0 %v144
  %v146 = vpop.xlane.xlu0 %145
  %v147 = vsel %vm93, %v126, 0.0
  %148 = vadd.xlane.f32.xlu0 %v147
  %v149 = vpop.xlane.xlu0 %148
  %v150 = vsel %vm93, %v128, 0.0
  %151 = vadd.xlane.f32.xlu0 %v150
  %v152 = vpop.xlane.xlu0 %151
  %v153 = vsel %vm93, %v130, 0.0
  %154 = vadd.xlane.f32.xlu0 %v153
  %v155 = vpop.xlane.xlu0 %154
  %v156 = vsel %vm93, %v132, 0.0
  %157 = vadd.xlane.f32.xlu0 %v156
  %v158 = vpop.xlane.xlu0 %157
  %v159 = vsel %vm93, %v134, 0.0
  %160 = vadd.xlane.f32.xlu0 %v159
  %v161 = vpop.xlane.xlu0 %160
  %v162 = vsel %vm112, %v136, 0.0
  %163 = vadd.xlane.f32.xlu0 %v162
  %v164 = vpop.xlane.xlu0 %163
  %vm165 = vcmask 7168
  %v166 = vsel %vm165, %v96, %v146
  %v167 = vsel %vm165, %v99, %v149
  %v168 = vsel %vm165, %v102, %v152
  %v169 = vsel %vm165, %v105, %v155
  %v170 = vsel %vm165, %v108, %v158
  %v171 = vsel %vm165, %v111, %v161
  %v172 = vsel %vm165, %v115, %v164
  %v173 = vmul.f32 %v166, 0.25
  %v174 = vmul.f32 %v167, 0.25
  %v175 = vmul.f32 %v168, 0.25
  %v176 = vmul.f32 %v169, 0.25
  %v177 = vmul.f32 %v170, 0.25
  %v178 = vmul.f32 %v171, 0.25
  %v179 = vmul.f32 %v172, 0.25
  %180 = vxpose.xlu0.b32.start [1/16] %v79, 128
  %181 = vxpose.xlu0.b32.cont [2/16] %v80, 128
  %182 = vxpose.xlu0.b32.cont [3/16] %v81, 128
  %183 = vxpose.xlu0.b32.cont [4/16] %v82, 128
  %184 = vxpose.xlu0.b32.cont [5/16] %v83, 128
  %185 = vxpose.xlu0.b32.cont [6/16] %v84, 128
  %186 = vxpose.xlu0.b32.cont [7/16] %v85, 128
  %187 = vxpose.xlu0.b32.cont [8/16] 0.0, 128
  %188 = vxpose.xlu0.b32.cont [9/16] 0.0, 128
  %189 = vxpose.xlu0.b32.cont [10/16] 0.0, 128
  %190 = vxpose.xlu0.b32.cont [11/16] 0.0, 128
  %191 = vxpose.xlu0.b32.cont [12/16] 0.0, 128
  %192 = vxpose.xlu0.b32.cont [13/16] 0.0, 128
  %193 = vxpose.xlu0.b32.cont [14/16] 0.0, 128
  %194 = vxpose.xlu0.b32.cont [15/16] 0.0, 128
  %195 = vxpose.xlu0.b32.end [16/16] 0.0, 128
  %v196 = vpop.trf.xlu0
  %v197 = vpop.trf.xlu0
  %v198 = vpop.trf.xlu0
  %v199 = vpop.trf.xlu0
  %v200 = vpop.trf.xlu0
  %v201 = vpop.trf.xlu0
  %v202 = vpop.trf.xlu0
  %v203 = vpop.trf.xlu0
  %v204 = vpop.trf.xlu0
  %v205 = vpop.trf.xlu0
  %v206 = vpop.trf.xlu0
  %v207 = vpop.trf.xlu0
  %v208 = vpop.trf.xlu0
  %v209 = vpop.trf.xlu0
  %v210 = vpop.trf.xlu0
  %v211 = vpop.trf.xlu0
  %vm212 = vcmask 408576
  %v214 = vsel %vm212, %v196, 0
  %v217 = vsel %vm212, %v197, 0
  %vm219 = vcmask 1041408
  %v221 = vsel %vm219, %v78, 0
  %223 = vmatprep.subr.mxu0 0.0
  %224 = vmatpush1.msra.mxu0 %v72
  %225 = vmatprep.subr.mxu0 0.0
  %226 = vmatpush1.msra.mxu0 %v73
  %227 = vmatprep.subr.mxu0 0.0
  %228 = vmatpush1.msra.mxu0 %v74
  %229 = vmatprep.subr.mxu0 0.0
  %230 = vmatpush1.msra.mxu0 %v75
  %231 = vmatprep.subr.mxu0 0.0
  %232 = vmatpush1.msra.mxu0 %v76
  %233 = vmatprep.subr.mxu0 0.0
  %234 = vmatpush1.msra.mxu0 %v77
  %235 = vmatprep.subr.mxu0 0.0
  %236 = vmatpush1.msra.mxu0 %v221
  %237 = vmatprep.subr.mxu0 0.0
  %238 = vmatpush1.msra.mxu0 0.0
  %239 = vmatprep.subr.mxu0 0.0
  %240 = vmatpush1.msra.mxu0 0.0
  %241 = vmatprep.subr.mxu0 0.0
  %242 = vmatpush1.msra.mxu0 0.0
  %243 = vmatprep.subr.mxu0 0.0
  %244 = vmatpush1.msra.mxu0 0.0
  %245 = vmatprep.subr.mxu0 0.0
  %246 = vmatpush1.msra.mxu0 0.0
  %247 = vmatprep.subr.mxu0 0.0
  %248 = vmatpush1.msra.mxu0 0.0
  %249 = vmatprep.subr.mxu0 0.0
  %250 = vmatpush1.msra.mxu0 0.0
  %251 = vmatprep.subr.mxu0 0.0
  %252 = vmatpush1.msra.mxu0 0.0
  %253 = vmatprep.subr.mxu0 0.0
  %254 = vmatpush1.msra.mxu0 0.0
  %255 = vmatprep.subr.mxu0 0.0
  %256 = vmatpush1.msra.mxu0 0.0
  %257 = vmatprep.subr.mxu0 0.0
  %258 = vmatpush1.msra.mxu0 0.0
  %259 = vmatprep.subr.mxu0 0.0
  %260 = vmatpush1.msra.mxu0 0.0
  %261 = vmatprep.subr.mxu0 0.0
  %262 = vmatpush1.msra.mxu0 0.0
  %263 = vmatprep.subr.mxu0 0.0
  %264 = vmatpush1.msra.mxu0 0.0
  %265 = vmatprep.subr.mxu0 0.0
  %266 = vmatpush1.msra.mxu0 0.0
  %267 = vmatprep.subr.mxu0 0.0
  %268 = vmatpush1.msra.mxu0 0.0
  %269 = vmatprep.subr.mxu0 0.0
  %270 = vmatpush1.msra.mxu0 0.0
  %271 = vmatprep.subr.mxu0 0.0
  %272 = vmatpush1.msra.mxu0 0.0
  %273 = vmatprep.subr.mxu0 0.0
  %274 = vmatpush1.msra.mxu0 0.0
  %275 = vmatprep.subr.mxu0 0.0
  %276 = vmatpush1.msra.mxu0 0.0
  %277 = vmatprep.subr.mxu0 0.0
  %278 = vmatpush1.msra.mxu0 0.0
  %279 = vmatprep.subr.mxu0 0.0
  %280 = vmatpush1.msra.mxu0 0.0
  %281 = vmatprep.subr.mxu0 0.0
  %282 = vmatpush1.msra.mxu0 0.0
  %283 = vmatprep.subr.mxu0 0.0
  %284 = vmatpush1.msra.mxu0 0.0
  %285 = vmatprep.subr.mxu0 0.0
  %286 = vmatpush1.msra.mxu0 0.0
  %287 = vmatprep.mubr.f32.mxu0 0.0
  %288 = vmatmul.mubr.f32.gmra.mrb[0].mxu0 %v214
  %v289 = vpop.f32.mrb[0].mxu0
  %v290 = vadd.f32 0.0, %v289
  %v291 = vpop.f32.mrb[0].mxu0
  %292 = vmatprep.mubr.f32.mxu0 0.0
  %293 = vmatmul.mubr.f32.gmra.mrb[0].mxu0 %v217
  %v294 = vpop.f32.mrb[0].mxu0
  %v295 = vadd.f32 0.0, %v294
  %v296 = vpop.f32.mrb[0].mxu0
  %297 = vdwg.mxu0
  %299 = vset.pattern.permute.xlu0 0
  %300 = vperm.xlu0 %299, %v72
  %v301 = vpop.permute.xlu0 %300
  %304 = vset.pattern.permute.xlu0 0
  %305 = vperm.xlu0 %304, %v73
  %v306 = vpop.permute.xlu0 %305
  %309 = vset.pattern.permute.xlu0 0
  %310 = vperm.xlu0 %309, %v74
  %v311 = vpop.permute.xlu0 %310
  %314 = vset.pattern.permute.xlu0 0
  %315 = vperm.xlu0 %314, %v75
  %v316 = vpop.permute.xlu0 %315
  %319 = vset.pattern.permute.xlu0 0
  %320 = vperm.xlu0 %319, %v76
  %v321 = vpop.permute.xlu0 %320
  %324 = vset.pattern.permute.xlu0 0
  %325 = vperm.xlu0 %324, %v77
  %v326 = vpop.permute.xlu0 %325
  %328 = vset.pattern.permute.xlu0 0
  %329 = vperm.xlu0 %328, %v78
  %v330 = vpop.permute.xlu0 %329
  %v332 = vmul.f32 %v173, %v301
  %v333 = vmul.f32 %v174, %v306
  %v334 = vmul.f32 %v175, %v311
  %v335 = vmul.f32 %v176, %v316
  %v336 = vmul.f32 %v177, %v321
  %v337 = vmul.f32 %v178, %v326
  %v338 = vmul.f32 %v179, %v330
  %v340 = vsel %vm219, %v338, 0
  %342 = vmatprep.subr.mxu0 0.0
  %343 = vmatpush1.msra.mxu0 %v332
  %344 = vmatprep.subr.mxu0 0.0
  %345 = vmatpush1.msra.mxu0 %v333
  %346 = vmatprep.subr.mxu0 0.0
  %347 = vmatpush1.msra.mxu0 %v334
  %348 = vmatprep.subr.mxu0 0.0
  %349 = vmatpush1.msra.mxu0 %v335
  %350 = vmatprep.subr.mxu0 0.0
  %351 = vmatpush1.msra.mxu0 %v336
  %352 = vmatprep.subr.mxu0 0.0
  %353 = vmatpush1.msra.mxu0 %v337
  %354 = vmatprep.subr.mxu0 0.0
  %355 = vmatpush1.msra.mxu0 %v340
  %356 = vmatprep.subr.mxu0 0.0
  %357 = vmatpush1.msra.mxu0 0.0
  %358 = vmatprep.subr.mxu0 0.0
  %359 = vmatpush1.msra.mxu0 0.0
  %360 = vmatprep.subr.mxu0 0.0
  %361 = vmatpush1.msra.mxu0 0.0
  %362 = vmatprep.subr.mxu0 0.0
  %363 = vmatpush1.msra.mxu0 0.0
  %364 = vmatprep.subr.mxu0 0.0
  %365 = vmatpush1.msra.mxu0 0.0
  %366 = vmatprep.subr.mxu0 0.0
  %367 = vmatpush1.msra.mxu0 0.0
  %368 = vmatprep.subr.mxu0 0.0
  %369 = vmatpush1.msra.mxu0 0.0
  %370 = vmatprep.subr.mxu0 0.0
  %371 = vmatpush1.msra.mxu0 0.0
  %372 = vmatprep.subr.mxu0 0.0
  %373 = vmatpush1.msra.mxu0 0.0
  %374 = vmatprep.subr.mxu0 0.0
  %375 = vmatpush1.msra.mxu0 0.0
  %376 = vmatprep.subr.mxu0 0.0
  %377 = vmatpush1.msra.mxu0 0.0
  %378 = vmatprep.subr.mxu0 0.0
  %379 = vmatpush1.msra.mxu0 0.0
  %380 = vmatprep.subr.mxu0 0.0
  %381 = vmatpush1.msra.mxu0 0.0
  %382 = vmatprep.subr.mxu0 0.0
  %383 = vmatpush1.msra.mxu0 0.0
  %384 = vmatprep.subr.mxu0 0.0
  %385 = vmatpush1.msra.mxu0 0.0
  %386 = vmatprep.subr.mxu0 0.0
  %387 = vmatpush1.msra.mxu0 0.0
  %388 = vmatprep.subr.mxu0 0.0
  %389 = vmatpush1.msra.mxu0 0.0
  %390 = vmatprep.subr.mxu0 0.0
  %391 = vmatpush1.msra.mxu0 0.0
  %392 = vmatprep.subr.mxu0 0.0
  %393 = vmatpush1.msra.mxu0 0.0
  %394 = vmatprep.subr.mxu0 0.0
  %395 = vmatpush1.msra.mxu0 0.0
  %396 = vmatprep.subr.mxu0 0.0
  %397 = vmatpush1.msra.mxu0 0.0
  %398 = vmatprep.subr.mxu0 0.0
  %399 = vmatpush1.msra.mxu0 0.0
  %400 = vmatprep.subr.mxu0 0.0
  %401 = vmatpush1.msra.mxu0 0.0
  %402 = vmatprep.subr.mxu0 0.0
  %403 = vmatpush1.msra.mxu0 0.0
  %404 = vmatprep.subr.mxu0 0.0
  %405 = vmatpush1.msra.mxu0 0.0
  %406 = vmatprep.mubr.f32.mxu0 0.0
  %407 = vmatmul.mubr.f32.gmra.mrb[0].mxu0 %v214
  %v408 = vpop.f32.mrb[0].mxu0
  %v409 = vadd.f32 0.0, %v408
  %v410 = vpop.f32.mrb[0].mxu0
  %411 = vmatprep.mubr.f32.mxu0 0.0
  %412 = vmatmul.mubr.f32.gmra.mrb[0].mxu0 %v217
  %v413 = vpop.f32.mrb[0].mxu0
  %v414 = vadd.f32 0.0, %v413
  %v415 = vpop.f32.mrb[0].mxu0
  %416 = vdwg.mxu0
  %v417 = vmax.f32 %v290, 1.0
  %v418 = vmax.f32 %v295, 1.0
  %420 = vset.pattern.permute.xlu0 0
  %421 = vperm.xlu0 %420, %v417
  %v422 = vpop.permute.xlu0 %421
  %425 = vset.pattern.permute.xlu0 0
  %426 = vperm.xlu0 %425, %v418
  %v427 = vpop.permute.xlu0 %426
  %v429 = vrcp.pop %v422
  %v430 = vmul.f32 %v409, %v429
  %v431 = vrcp.pop %v427
  %v432 = vmul.f32 %v414, %v431
  %vm433 = vcmask 80896
  %v435 = vsel %vm433, %v79, 0
  %v438 = vsel %vm433, %v80, 0
  %v441 = vsel %vm433, %v81, 0
  %v444 = vsel %vm433, %v82, 0
  %v447 = vsel %vm433, %v83, 0
  %v450 = vsel %vm433, %v84, 0
  %v453 = vsel %vm433, %v85, 0
  %v456 = vsel %vm219, %v432, 0
  %458 = vmatprep.subr.mxu0 0.0
  %459 = vmatpush1.msra.mxu0 %v430
  %460 = vmatprep.subr.mxu0 0.0
  %461 = vmatpush1.msra.mxu0 %v456
  %462 = vmatprep.subr.mxu0 0.0
  %463 = vmatpush1.msra.mxu0 0.0
  %464 = vmatprep.subr.mxu0 0.0
  %465 = vmatpush1.msra.mxu0 0.0
  %466 = vmatprep.subr.mxu0 0.0
  %467 = vmatpush1.msra.mxu0 0.0
  %468 = vmatprep.subr.mxu0 0.0
  %469 = vmatpush1.msra.mxu0 0.0
  %470 = vmatprep.subr.mxu0 0.0
  %471 = vmatpush1.msra.mxu0 0.0
  %472 = vmatprep.subr.mxu0 0.0
  %473 = vmatpush1.msra.mxu0 0.0
  %474 = vmatprep.subr.mxu0 0.0
  %475 = vmatpush1.msra.mxu0 0.0
  %476 = vmatprep.subr.mxu0 0.0
  %477 = vmatpush1.msra.mxu0 0.0
  %478 = vmatprep.subr.mxu0 0.0
  %479 = vmatpush1.msra.mxu0 0.0
  %480 = vmatprep.subr.mxu0 0.0
  %481 = vmatpush1.msra.mxu0 0.0
  %482 = vmatprep.subr.mxu0 0.0
  %483 = vmatpush1.msra.mxu0 0.0
  %484 = vmatprep.subr.mxu0 0.0
  %485 = vmatpush1.msra.mxu0 0.0
  %486 = vmatprep.subr.mxu0 0.0
  %487 = vmatpush1.msra.mxu0 0.0
  %488 = vmatprep.subr.mxu0 0.0
  %489 = vmatpush1.msra.mxu0 0.0
  %490 = vmatprep.subr.mxu0 0.0
  %491 = vmatpush1.msra.mxu0 0.0
  %492 = vmatprep.subr.mxu0 0.0
  %493 = vmatpush1.msra.mxu0 0.0
  %494 = vmatprep.subr.mxu0 0.0
  %495 = vmatpush1.msra.mxu0 0.0
  %496 = vmatprep.subr.mxu0 0.0
  %497 = vmatpush1.msra.mxu0 0.0
  %498 = vmatprep.subr.mxu0 0.0
  %499 = vmatpush1.msra.mxu0 0.0
  %500 = vmatprep.subr.mxu0 0.0
  %501 = vmatpush1.msra.mxu0 0.0
  %502 = vmatprep.subr.mxu0 0.0
  %503 = vmatpush1.msra.mxu0 0.0
  %504 = vmatprep.subr.mxu0 0.0
  %505 = vmatpush1.msra.mxu0 0.0
  %506 = vmatprep.subr.mxu0 0.0
  %507 = vmatpush1.msra.mxu0 0.0
  %508 = vmatprep.subr.mxu0 0.0
  %509 = vmatpush1.msra.mxu0 0.0
  %510 = vmatprep.subr.mxu0 0.0
  %511 = vmatpush1.msra.mxu0 0.0
  %512 = vmatprep.subr.mxu0 0.0
  %513 = vmatpush1.msra.mxu0 0.0
  %514 = vmatprep.subr.mxu0 0.0
  %515 = vmatpush1.msra.mxu0 0.0
  %516 = vmatprep.subr.mxu0 0.0
  %517 = vmatpush1.msra.mxu0 0.0
  %518 = vmatprep.subr.mxu0 0.0
  %519 = vmatpush1.msra.mxu0 0.0
  %520 = vmatprep.subr.mxu0 0.0
  %521 = vmatpush1.msra.mxu0 0.0
  %522 = vmatprep.mubr.f32.mxu0 0.0
  %523 = vmatmul.mubr.f32.gmra.mrb[0].mxu0 %v435
  %v524 = vpop.f32.mrb[0].mxu0
  %v525 = vadd.f32 0.0, %v524
  %v526 = vpop.f32.mrb[0].mxu0
  %527 = vmatprep.mubr.f32.mxu0 0.0
  %528 = vmatmul.mubr.f32.gmra.mrb[0].mxu0 %v438
  %v529 = vpop.f32.mrb[0].mxu0
  %v530 = vadd.f32 0.0, %v529
  %v531 = vpop.f32.mrb[0].mxu0
  %532 = vmatprep.mubr.f32.mxu0 0.0
  %533 = vmatmul.mubr.f32.gmra.mrb[0].mxu0 %v441
  %v534 = vpop.f32.mrb[0].mxu0
  %v535 = vadd.f32 0.0, %v534
  %v536 = vpop.f32.mrb[0].mxu0
  %537 = vmatprep.mubr.f32.mxu0 0.0
  %538 = vmatmul.mubr.f32.gmra.mrb[0].mxu0 %v444
  %v539 = vpop.f32.mrb[0].mxu0
  %v540 = vadd.f32 0.0, %v539
  %v541 = vpop.f32.mrb[0].mxu0
  %542 = vmatprep.mubr.f32.mxu0 0.0
  %543 = vmatmul.mubr.f32.gmra.mrb[0].mxu0 %v447
  %v544 = vpop.f32.mrb[0].mxu0
  %v545 = vadd.f32 0.0, %v544
  %v546 = vpop.f32.mrb[0].mxu0
  %547 = vmatprep.mubr.f32.mxu0 0.0
  %548 = vmatmul.mubr.f32.gmra.mrb[0].mxu0 %v450
  %v549 = vpop.f32.mrb[0].mxu0
  %v550 = vadd.f32 0.0, %v549
  %v551 = vpop.f32.mrb[0].mxu0
  %552 = vmatprep.mubr.f32.mxu0 0.0
  %553 = vmatmul.mubr.f32.gmra.mrb[0].mxu0 %v453
  %v554 = vpop.f32.mrb[0].mxu0
  %v555 = vadd.f32 0.0, %v554
  %v556 = vpop.f32.mrb[0].mxu0
  %557 = vdwg.mxu0
  %v558 = vsub.f32 %v173, %v525
  %v559 = vsub.f32 %v174, %v530
  %v560 = vsub.f32 %v175, %v535
  %v561 = vsub.f32 %v176, %v540
  %v562 = vsub.f32 %v177, %v545
  %v563 = vsub.f32 %v178, %v550
  %v564 = vsub.f32 %v179, %v555
  %v565 = vmul.f32 %v558, 1.442695
  %v566 = vpow.pop %v565
  %v567 = vmul.f32 %v559, 1.442695
  %v568 = vpow.pop %v567
  %v569 = vmul.f32 %v560, 1.442695
  %v570 = vpow.pop %v569
  %v571 = vmul.f32 %v561, 1.442695
  %v572 = vpow.pop %v571
  %v573 = vmul.f32 %v562, 1.442695
  %v574 = vpow.pop %v573
  %v575 = vmul.f32 %v563, 1.442695
  %v576 = vpow.pop %v575
  %v577 = vmul.f32 %v564, 1.442695
  %v578 = vpow.pop %v577
  %v579 = vmul.f32 %v566, %v301
  %v580 = vmul.f32 %v568, %v306
  %v581 = vmul.f32 %v570, %v311
  %v582 = vmul.f32 %v572, %v316
  %v583 = vmul.f32 %v574, %v321
  %v584 = vmul.f32 %v576, %v326
  %v585 = vmul.f32 %v578, %v330
  %v587 = vsel %vm219, %v585, 0
  %589 = vmatprep.subr.mxu0 0.0
  %590 = vmatpush1.msra.mxu0 %v579
  %591 = vmatprep.subr.mxu0 0.0
  %592 = vmatpush1.msra.mxu0 %v580
  %593 = vmatprep.subr.mxu0 0.0
  %594 = vmatpush1.msra.mxu0 %v581
  %595 = vmatprep.subr.mxu0 0.0
  %596 = vmatpush1.msra.mxu0 %v582
  %597 = vmatprep.subr.mxu0 0.0
  %598 = vmatpush1.msra.mxu0 %v583
  %599 = vmatprep.subr.mxu0 0.0
  %600 = vmatpush1.msra.mxu0 %v584
  %601 = vmatprep.subr.mxu0 0.0
  %602 = vmatpush1.msra.mxu0 %v587
  %603 = vmatprep.subr.mxu0 0.0
  %604 = vmatpush1.msra.mxu0 0.0
  %605 = vmatprep.subr.mxu0 0.0
  %606 = vmatpush1.msra.mxu0 0.0
  %607 = vmatprep.subr.mxu0 0.0
  %608 = vmatpush1.msra.mxu0 0.0
  %609 = vmatprep.subr.mxu0 0.0
  %610 = vmatpush1.msra.mxu0 0.0
  %611 = vmatprep.subr.mxu0 0.0
  %612 = vmatpush1.msra.mxu0 0.0
  %613 = vmatprep.subr.mxu0 0.0
  %614 = vmatpush1.msra.mxu0 0.0
  %615 = vmatprep.subr.mxu0 0.0
  %616 = vmatpush1.msra.mxu0 0.0
  %617 = vmatprep.subr.mxu0 0.0
  %618 = vmatpush1.msra.mxu0 0.0
  %619 = vmatprep.subr.mxu0 0.0
  %620 = vmatpush1.msra.mxu0 0.0
  %621 = vmatprep.subr.mxu0 0.0
  %622 = vmatpush1.msra.mxu0 0.0
  %623 = vmatprep.subr.mxu0 0.0
  %624 = vmatpush1.msra.mxu0 0.0
  %625 = vmatprep.subr.mxu0 0.0
  %626 = vmatpush1.msra.mxu0 0.0
  %627 = vmatprep.subr.mxu0 0.0
  %628 = vmatpush1.msra.mxu0 0.0
  %629 = vmatprep.subr.mxu0 0.0
  %630 = vmatpush1.msra.mxu0 0.0
  %631 = vmatprep.subr.mxu0 0.0
  %632 = vmatpush1.msra.mxu0 0.0
  %633 = vmatprep.subr.mxu0 0.0
  %634 = vmatpush1.msra.mxu0 0.0
  %635 = vmatprep.subr.mxu0 0.0
  %636 = vmatpush1.msra.mxu0 0.0
  %637 = vmatprep.subr.mxu0 0.0
  %638 = vmatpush1.msra.mxu0 0.0
  %639 = vmatprep.subr.mxu0 0.0
  %640 = vmatpush1.msra.mxu0 0.0
  %641 = vmatprep.subr.mxu0 0.0
  %642 = vmatpush1.msra.mxu0 0.0
  %643 = vmatprep.subr.mxu0 0.0
  %644 = vmatpush1.msra.mxu0 0.0
  %645 = vmatprep.subr.mxu0 0.0
  %646 = vmatpush1.msra.mxu0 0.0
  %647 = vmatprep.subr.mxu0 0.0
  %648 = vmatpush1.msra.mxu0 0.0
  %649 = vmatprep.subr.mxu0 0.0
  %650 = vmatpush1.msra.mxu0 0.0
  %651 = vmatprep.subr.mxu0 0.0
  %652 = vmatpush1.msra.mxu0 0.0
  %653 = vmatprep.mubr.f32.mxu0 0.0
  %654 = vmatmul.mubr.f32.gmra.mrb[0].mxu0 %v214
  %v655 = vpop.f32.mrb[0].mxu0
  %v656 = vadd.f32 0.0, %v655
  %v657 = vpop.f32.mrb[0].mxu0
  %658 = vmatprep.mubr.f32.mxu0 0.0
  %659 = vmatmul.mubr.f32.gmra.mrb[0].mxu0 %v217
  %v660 = vpop.f32.mrb[0].mxu0
  %v661 = vadd.f32 0.0, %v660
  %v662 = vpop.f32.mrb[0].mxu0
  %663 = vdwg.mxu0
  %v665 = vsel %vm219, %v661, 0
  %667 = vmatprep.subr.mxu0 0.0
  %668 = vmatpush1.msra.mxu0 %v656
  %669 = vmatprep.subr.mxu0 0.0
  %670 = vmatpush1.msra.mxu0 %v665
  %671 = vmatprep.subr.mxu0 0.0
  %672 = vmatpush1.msra.mxu0 0.0
  %673 = vmatprep.subr.mxu0 0.0
  %674 = vmatpush1.msra.mxu0 0.0
  %675 = vmatprep.subr.mxu0 0.0
  %676 = vmatpush1.msra.mxu0 0.0
  %677 = vmatprep.subr.mxu0 0.0
  %678 = vmatpush1.msra.mxu0 0.0
  %679 = vmatprep.subr.mxu0 0.0
  %680 = vmatpush1.msra.mxu0 0.0
  %681 = vmatprep.subr.mxu0 0.0
  %682 = vmatpush1.msra.mxu0 0.0
  %683 = vmatprep.subr.mxu0 0.0
  %684 = vmatpush1.msra.mxu0 0.0
  %685 = vmatprep.subr.mxu0 0.0
  %686 = vmatpush1.msra.mxu0 0.0
  %687 = vmatprep.subr.mxu0 0.0
  %688 = vmatpush1.msra.mxu0 0.0
  %689 = vmatprep.subr.mxu0 0.0
  %690 = vmatpush1.msra.mxu0 0.0
  %691 = vmatprep.subr.mxu0 0.0
  %692 = vmatpush1.msra.mxu0 0.0
  %693 = vmatprep.subr.mxu0 0.0
  %694 = vmatpush1.msra.mxu0 0.0
  %695 = vmatprep.subr.mxu0 0.0
  %696 = vmatpush1.msra.mxu0 0.0
  %697 = vmatprep.subr.mxu0 0.0
  %698 = vmatpush1.msra.mxu0 0.0
  %699 = vmatprep.subr.mxu0 0.0
  %700 = vmatpush1.msra.mxu0 0.0
  %701 = vmatprep.subr.mxu0 0.0
  %702 = vmatpush1.msra.mxu0 0.0
  %703 = vmatprep.subr.mxu0 0.0
  %704 = vmatpush1.msra.mxu0 0.0
  %705 = vmatprep.subr.mxu0 0.0
  %706 = vmatpush1.msra.mxu0 0.0
  %707 = vmatprep.subr.mxu0 0.0
  %708 = vmatpush1.msra.mxu0 0.0
  %709 = vmatprep.subr.mxu0 0.0
  %710 = vmatpush1.msra.mxu0 0.0
  %711 = vmatprep.subr.mxu0 0.0
  %712 = vmatpush1.msra.mxu0 0.0
  %713 = vmatprep.subr.mxu0 0.0
  %714 = vmatpush1.msra.mxu0 0.0
  %715 = vmatprep.subr.mxu0 0.0
  %716 = vmatpush1.msra.mxu0 0.0
  %717 = vmatprep.subr.mxu0 0.0
  %718 = vmatpush1.msra.mxu0 0.0
  %719 = vmatprep.subr.mxu0 0.0
  %720 = vmatpush1.msra.mxu0 0.0
  %721 = vmatprep.subr.mxu0 0.0
  %722 = vmatpush1.msra.mxu0 0.0
  %723 = vmatprep.subr.mxu0 0.0
  %724 = vmatpush1.msra.mxu0 0.0
  %725 = vmatprep.subr.mxu0 0.0
  %726 = vmatpush1.msra.mxu0 0.0
  %727 = vmatprep.subr.mxu0 0.0
  %728 = vmatpush1.msra.mxu0 0.0
  %729 = vmatprep.subr.mxu0 0.0
  %730 = vmatpush1.msra.mxu0 0.0
  %731 = vmatprep.mubr.f32.mxu0 0.0
  %732 = vmatmul.mubr.f32.gmra.mrb[0].mxu0 %v435
  %v733 = vpop.f32.mrb[0].mxu0
  %v734 = vadd.f32 0.0, %v733
  %v735 = vpop.f32.mrb[0].mxu0
  %736 = vmatprep.mubr.f32.mxu0 0.0
  %737 = vmatmul.mubr.f32.gmra.mrb[0].mxu0 %v438
  %v738 = vpop.f32.mrb[0].mxu0
  %v739 = vadd.f32 0.0, %v738
  %v740 = vpop.f32.mrb[0].mxu0
  %741 = vmatprep.mubr.f32.mxu0 0.0
  %742 = vmatmul.mubr.f32.gmra.mrb[0].mxu0 %v441
  %v743 = vpop.f32.mrb[0].mxu0
  %v744 = vadd.f32 0.0, %v743
  %v745 = vpop.f32.mrb[0].mxu0
  %746 = vmatprep.mubr.f32.mxu0 0.0
  %747 = vmatmul.mubr.f32.gmra.mrb[0].mxu0 %v444
  %v748 = vpop.f32.mrb[0].mxu0
  %v749 = vadd.f32 0.0, %v748
  %v750 = vpop.f32.mrb[0].mxu0
  %751 = vmatprep.mubr.f32.mxu0 0.0
  %752 = vmatmul.mubr.f32.gmra.mrb[0].mxu0 %v447
  %v753 = vpop.f32.mrb[0].mxu0
  %v754 = vadd.f32 0.0, %v753
  %v755 = vpop.f32.mrb[0].mxu0
  %756 = vmatprep.mubr.f32.mxu0 0.0
  %757 = vmatmul.mubr.f32.gmra.mrb[0].mxu0 %v450
  %v758 = vpop.f32.mrb[0].mxu0
  %v759 = vadd.f32 0.0, %v758
  %v760 = vpop.f32.mrb[0].mxu0
  %761 = vmatprep.mubr.f32.mxu0 0.0
  %762 = vmatmul.mubr.f32.gmra.mrb[0].mxu0 %v453
  %v763 = vpop.f32.mrb[0].mxu0
  %v764 = vadd.f32 0.0, %v763
  %v765 = vpop.f32.mrb[0].mxu0
  %766 = vdwg.mxu0
  %v767 = vmax.f32 %v734, 1e-30
  %v768 = vmax.f32 %v739, 1e-30
  %v769 = vmax.f32 %v744, 1e-30
  %v770 = vmax.f32 %v749, 1e-30
  %v771 = vmax.f32 %v754, 1e-30
  %v772 = vmax.f32 %v759, 1e-30
  %v773 = vmax.f32 %v764, 1e-30
  %v774 = vrcp.pop %v767
  %v775 = vmul.f32 %v579, %v774
  %v776 = vrcp.pop %v768
  %v777 = vmul.f32 %v580, %v776
  %v778 = vrcp.pop %v769
  %v779 = vmul.f32 %v581, %v778
  %v780 = vrcp.pop %v770
  %v781 = vmul.f32 %v582, %v780
  %v782 = vrcp.pop %v771
  %v783 = vmul.f32 %v583, %v782
  %v784 = vrcp.pop %v772
  %v785 = vmul.f32 %v584, %v784
  %v786 = vrcp.pop %v773
  %v787 = vmul.f32 %v585, %v786
  %789 = vset.pattern.permute.xlu0 0
  %790 = vperm.xlu0 %789, %v775
  %v791 = vpop.permute.xlu0 %790
  %794 = vset.pattern.permute.xlu0 0
  %795 = vperm.xlu0 %794, %v777
  %v796 = vpop.permute.xlu0 %795
  %799 = vset.pattern.permute.xlu0 0
  %800 = vperm.xlu0 %799, %v779
  %v801 = vpop.permute.xlu0 %800
  %804 = vset.pattern.permute.xlu0 0
  %805 = vperm.xlu0 %804, %v781
  %v806 = vpop.permute.xlu0 %805
  %809 = vset.pattern.permute.xlu0 0
  %810 = vperm.xlu0 %809, %v783
  %v811 = vpop.permute.xlu0 %810
  %814 = vset.pattern.permute.xlu0 0
  %815 = vperm.xlu0 %814, %v785
  %v816 = vpop.permute.xlu0 %815
  %819 = vset.pattern.permute.xlu0 0
  %820 = vperm.xlu0 %819, %v787
  %v821 = vpop.permute.xlu0 %820
  %v823 = vmul.f32 %v791, %v65
  %v824 = vmul.f32 %v796, %v66
  %v825 = vmul.f32 %v801, %v67
  %v826 = vmul.f32 %v806, %v68
  %v827 = vmul.f32 %v811, %v69
  %v828 = vmul.f32 %v816, %v70
  %v829 = vmul.f32 %v821, %v71
  %830 = vset.pattern.permute.xlu0 1
  %831 = vperm.xlu0 %830, %v775
  %v832 = vpop.permute.xlu0 %831
  %834 = vset.pattern.permute.xlu0 1
  %835 = vperm.xlu0 %834, %v777
  %v836 = vpop.permute.xlu0 %835
  %838 = vset.pattern.permute.xlu0 1
  %839 = vperm.xlu0 %838, %v779
  %v840 = vpop.permute.xlu0 %839
  %842 = vset.pattern.permute.xlu0 1
  %843 = vperm.xlu0 %842, %v781
  %v844 = vpop.permute.xlu0 %843
  %846 = vset.pattern.permute.xlu0 1
  %847 = vperm.xlu0 %846, %v783
  %v848 = vpop.permute.xlu0 %847
  %850 = vset.pattern.permute.xlu0 1
  %851 = vperm.xlu0 %850, %v785
  %v852 = vpop.permute.xlu0 %851
  %854 = vset.pattern.permute.xlu0 1
  %855 = vperm.xlu0 %854, %v787
  %v856 = vpop.permute.xlu0 %855
  %v858 = vmul.f32 %v832, %v65
  %v859 = vmul.f32 %v836, %v66
  %v860 = vmul.f32 %v840, %v67
  %v861 = vmul.f32 %v844, %v68
  %v862 = vmul.f32 %v848, %v69
  %v863 = vmul.f32 %v852, %v70
  %v864 = vmul.f32 %v856, %v71
  %v865 = vsel %vm93, %v823, %v858
  %v866 = vsel %vm93, %v824, %v859
  %v867 = vsel %vm93, %v825, %v860
  %v868 = vsel %vm93, %v826, %v861
  %v869 = vsel %vm93, %v827, %v862
  %v870 = vsel %vm93, %v828, %v863
  %v871 = vsel %vm93, %v829, %v864
  %v873 = vsel %vm219, %v871, 0
  %875 = vmatprep.subr.mxu0 0.0
  %876 = vmatpush1.msra.mxu0 %v865
  %877 = vmatprep.subr.mxu0 0.0
  %878 = vmatpush1.msra.mxu0 %v866
  %879 = vmatprep.subr.mxu0 0.0
  %880 = vmatpush1.msra.mxu0 %v867
  %881 = vmatprep.subr.mxu0 0.0
  %882 = vmatpush1.msra.mxu0 %v868
  %883 = vmatprep.subr.mxu0 0.0
  %884 = vmatpush1.msra.mxu0 %v869
  %885 = vmatprep.subr.mxu0 0.0
  %886 = vmatpush1.msra.mxu0 %v870
  %887 = vmatprep.subr.mxu0 0.0
  %888 = vmatpush1.msra.mxu0 %v873
  %889 = vmatprep.subr.mxu0 0.0
  %890 = vmatpush1.msra.mxu0 0.0
  %891 = vmatprep.subr.mxu0 0.0
  %892 = vmatpush1.msra.mxu0 0.0
  %893 = vmatprep.subr.mxu0 0.0
  %894 = vmatpush1.msra.mxu0 0.0
  %895 = vmatprep.subr.mxu0 0.0
  %896 = vmatpush1.msra.mxu0 0.0
  %897 = vmatprep.subr.mxu0 0.0
  %898 = vmatpush1.msra.mxu0 0.0
  %899 = vmatprep.subr.mxu0 0.0
  %900 = vmatpush1.msra.mxu0 0.0
  %901 = vmatprep.subr.mxu0 0.0
  %902 = vmatpush1.msra.mxu0 0.0
  %903 = vmatprep.subr.mxu0 0.0
  %904 = vmatpush1.msra.mxu0 0.0
  %905 = vmatprep.subr.mxu0 0.0
  %906 = vmatpush1.msra.mxu0 0.0
  %907 = vmatprep.subr.mxu0 0.0
  %908 = vmatpush1.msra.mxu0 0.0
  %909 = vmatprep.subr.mxu0 0.0
  %910 = vmatpush1.msra.mxu0 0.0
  %911 = vmatprep.subr.mxu0 0.0
  %912 = vmatpush1.msra.mxu0 0.0
  %913 = vmatprep.subr.mxu0 0.0
  %914 = vmatpush1.msra.mxu0 0.0
  %915 = vmatprep.subr.mxu0 0.0
  %916 = vmatpush1.msra.mxu0 0.0
  %917 = vmatprep.subr.mxu0 0.0
  %918 = vmatpush1.msra.mxu0 0.0
  %919 = vmatprep.subr.mxu0 0.0
  %920 = vmatpush1.msra.mxu0 0.0
  %921 = vmatprep.subr.mxu0 0.0
  %922 = vmatpush1.msra.mxu0 0.0
  %923 = vmatprep.subr.mxu0 0.0
  %924 = vmatpush1.msra.mxu0 0.0
  %925 = vmatprep.subr.mxu0 0.0
  %926 = vmatpush1.msra.mxu0 0.0
  %927 = vmatprep.subr.mxu0 0.0
  %928 = vmatpush1.msra.mxu0 0.0
  %929 = vmatprep.subr.mxu0 0.0
  %930 = vmatpush1.msra.mxu0 0.0
  %931 = vmatprep.subr.mxu0 0.0
  %932 = vmatpush1.msra.mxu0 0.0
  %933 = vmatprep.subr.mxu0 0.0
  %934 = vmatpush1.msra.mxu0 0.0
  %935 = vmatprep.subr.mxu0 0.0
  %936 = vmatpush1.msra.mxu0 0.0
  %937 = vmatprep.subr.mxu0 0.0
  %938 = vmatpush1.msra.mxu0 0.0
  %939 = vmatprep.mubr.f32.mxu0 0.0
  %940 = vmatmul.mubr.f32.gmra.mrb[0].mxu0 %v214
  %v941 = vpop.f32.mrb[0].mxu0
  %v942 = vadd.f32 0.0, %v941
  %v943 = vpop.f32.mrb[0].mxu0
  %944 = vmatprep.mubr.f32.mxu0 0.0
  %945 = vmatmul.mubr.f32.gmra.mrb[0].mxu0 %v217
  %v946 = vpop.f32.mrb[0].mxu0
  %v947 = vadd.f32 0.0, %v946
  %v948 = vpop.f32.mrb[0].mxu0
  %949 = vdwg.mxu0
  %v950 = vpack.c.bf16 %v947, %v942
  %v951 = vld [vmem:[%s5] sm:$0xf]
  %v952 = vld [vmem:[%s5 + $0x4] sm:$0xf]
  %v953 = vld [vmem:[%s5 + $0x8] sm:$0xf]
  %v954 = vld [vmem:[%s5 + $0xc] sm:$0xf]
  %v955 = vld [vmem:[%s6] sm:$0x1]
  %v957 = vlaneseq
  %v958 = vshrl.u32 %v957, 7
  %v959 = vsub.s32 0, %v958
  %v960 = vrot.slane %v955, %v959
  %v966 = vunpack.c.l.b16 %v951
  %v967 = vunpack.c.l.b16 %v952
  %v968 = vunpack.c.l.b16 %v953
  %v969 = vunpack.c.l.b16 %v954
  %v970 = vpack.c.b16 %v967, %v966
  %v971 = vpack.c.b16 %v969, %v968
  %vm974 = vcmask 261120
  %v976 = vsel %vm974, %v950, 0
  %978 = vmatprep.subr.bf16.mxu0 0
  %979 = vmatpush1.bf16.msra.mxu0 %v970
  %980 = vmatprep.subr.bf16.mxu0 0
  %981 = vmatpush1.bf16.msra.mxu0 %v971
  %982 = vmatprep.subr.bf16.mxu0 0
  %983 = vmatpush1.bf16.msra.mxu0 0
  %984 = vmatprep.subr.bf16.mxu0 0
  %985 = vmatpush1.bf16.msra.mxu0 0
  %986 = vmatprep.subr.bf16.mxu0 0
  %987 = vmatpush1.bf16.msra.mxu0 0
  %988 = vmatprep.subr.bf16.mxu0 0
  %989 = vmatpush1.bf16.msra.mxu0 0
  %990 = vmatprep.subr.bf16.mxu0 0
  %991 = vmatpush1.bf16.msra.mxu0 0
  %992 = vmatprep.subr.bf16.mxu0 0
  %993 = vmatpush1.bf16.msra.mxu0 0
  %994 = vmatprep.subr.bf16.mxu0 0
  %995 = vmatpush1.bf16.msra.mxu0 0
  %996 = vmatprep.subr.bf16.mxu0 0
  %997 = vmatpush1.bf16.msra.mxu0 0
  %998 = vmatprep.subr.bf16.mxu0 0
  %999 = vmatpush1.bf16.msra.mxu0 0
  %1000 = vmatprep.subr.bf16.mxu0 0
  %1001 = vmatpush1.bf16.msra.mxu0 0
  %1002 = vmatprep.subr.bf16.mxu0 0
  %1003 = vmatpush1.bf16.msra.mxu0 0
  %1004 = vmatprep.subr.bf16.mxu0 0
  %1005 = vmatpush1.bf16.msra.mxu0 0
  %1006 = vmatprep.subr.bf16.mxu0 0
  %1007 = vmatpush1.bf16.msra.mxu0 0
  %1008 = vmatprep.subr.bf16.mxu0 0
  %1009 = vmatpush1.bf16.msra.mxu0 0
  %1010 = vmatprep.mubr.bf16.mxu0 0
  %1011 = vmatmul.mubr.bf16.gmra.mrb[0].mxu0 %v976
  %v1012 = vpop.f32.mrb[0].mxu0
  %v1013 = vadd.f32 %v960, %v1012
  %v1014 = vpop.f32.mrb[0].mxu0
  %v1015 = vpop.f32.mrb[0].mxu0
  %v1016 = vadd.f32 %v960, %v1015
  %v1017 = vpop.f32.mrb[0].mxu0
  %1018 = vdwg.mxu0
  %v1019 = vld [vmem:[%s7] sm:$0xff]
  %v1020 = vld [vmem:[%s7 + $0x8] sm:$0x3]
  %v1021 = vadd.f32 %v1013, %v1019
  %v1022 = vadd.f32 %v1016, %v1020
  %1023 = vst [vmem:[%s8] sm:$0xff] %v1021
  %1024 = vst [vmem:[%s8 + $0x8] sm:$0x3] %v1022
  // Predicated region
  $region34: #{lpgnn_layer_fwd.14} parent=0 // pred_check
    _
  $region35: #{lpgnn_layer_fwd.14} parent=0 // pred_check_branch
    %1026 = sbr.rel (0) target = $region37
  $region36: #{lpgnn_layer_fwd.14} parent=0 // pred_region
    _
  $region37: #{lpgnn_layer_fwd.14} parent=0 // pred_fallthru
    _
  // Predicated region
  $region38: #{lpgnn_layer_fwd.14} parent=0 // pred_check
    _
  $region39: #{lpgnn_layer_fwd.14} parent=0 // pred_check_branch
    %1028 = sbr.rel (0) target = $region41
  $region40: #{lpgnn_layer_fwd.14} parent=0 // pred_region
    _
  $region41: #{lpgnn_layer_fwd.14} parent=0 // pred_fallthru
    _

</llo_original>
